<compile_context>
chip_gen: v7x
topology: tpu7x:2x2x1
jax: 0.10.0
libtpu: 0.0.40
codegen_flags: <defaults>
</compile_context>

<pallas_src>
import functools

import jax
import jax.numpy as jnp
from jax.experimental import pallas as pl
from jax.experimental.pallas import tpu as pltpu

LANE = 128      # channel dims padded to lane-dense multiples of 128
SUBLANE = 8


def _round_up(x, m):
    return (x + m - 1) // m * m


def _vmem_capacity_bytes():
    try:
        return int(pltpu.get_tpu_info().vmem_capacity_bytes)
    except Exception:
        return 64 * 1024 * 1024   # conservative fallback (v7x per-core VMEM)


def _pack_tap_weights(w, ci_p, co_p):
    """(Cout, Cin, 3, 3) -> (9*Cin_p, Cout_p) bf16.

    Tap t = kh*3+kw occupies the contiguous row slab [t*Cin_p, (t+1)*Cin_p),
    so a pair of consecutive taps is one contiguous (2*Cin_p, Cout_p) slice
    for K=256 MXU dots on v6e/v7x.
    """
    co, ci = w.shape[0], w.shape[1]
    wt = jnp.transpose(w, (2, 3, 1, 0))                       # (3,3,Cin,Cout)
    wt = jnp.pad(wt, ((0, 0), (0, 0), (0, ci_p - ci), (0, co_p - co)))
    return wt.reshape(9 * ci_p, co_p).astype(jnp.bfloat16)


def _accum_taps(tap, w_ref, kdim, m):
    """sum_t tap(t) @ W_t with taps paired along the lane/K axis (K = 2*kdim)."""
    cout = w_ref.shape[-1]
    acc = jnp.zeros((m, cout), jnp.float32)
    for p in range(4):
        lhs = jnp.concatenate([tap(2 * p), tap(2 * p + 1)], axis=-1)
        acc = acc + jnp.dot(lhs, w_ref[2 * p * kdim:(2 * p + 2) * kdim, :],
                            preferred_element_type=jnp.float32)
    acc = acc + jnp.dot(tap(8), w_ref[8 * kdim:9 * kdim, :],
                        preferred_element_type=jnp.float32)
    return acc


def _instance_norm_relu(acc, valid, inv_count, eps):
    """Masked single-pass InstanceNorm2d (affine=False) + ReLU, stats in f32.

    `valid` is an (M, 1) mask selecting the real H*W pixels of the H*(W+2)
    compute grid; junk rows are forced to exactly 0 on output (they become
    conv2's zero border / are sliced off the final output).
    """
    masked = jnp.where(valid, acc, 0.0)
    s = jnp.sum(masked, axis=0, keepdims=True)
    ss = jnp.sum(masked * masked, axis=0, keepdims=True)
    mean = s * inv_count
    var = jnp.maximum(ss * inv_count - mean * mean, 0.0)
    inv = jax.lax.rsqrt(var + eps)
    y = jnp.maximum((acc - mean) * inv, 0.0)
    return jnp.where(valid, y, 0.0)


def _double_conv_kernel(x_ref, w1_ref, w2_ref, o_ref, h_ref, *,
                        H, W, Wp, eps, fold_conv1):
    """One batch element: (conv3x3 -> IN -> ReLU) x 2, entirely in VMEM."""
    M1 = H * Wp                         # (H, W+2) compute grid, 2 junk cols/row
    c1_p = h_ref.shape[-1]
    R2 = h_ref.shape[0]

    col = jax.lax.broadcasted_iota(jnp.int32, (M1, 1), 0) % Wp
    valid = col < W
    inv_count = 1.0 / float(H * W)

    # ---- conv1 ---------------------------------------------------------------
    if fold_conv1:
        # 9 taps folded into one dot against host-side im2col patches.
        acc1 = jnp.dot(x_ref[0], w1_ref[...], preferred_element_type=jnp.float32)
    else:
        kdim1 = x_ref.shape[-1]

        def tap1(t):
            kh, kw = divmod(t, 3)
            s = kh * Wp + kw
            return x_ref[0, s:s + M1, :]

        acc1 = _accum_taps(tap1, w1_ref, kdim1, M1)

    y1 = _instance_norm_relu(acc1, valid, inv_count, eps)       # (M1, c1_p) f32

    # ---- stash ReLU(IN(conv1)) in a flat, zero-bordered bf16 VMEM scratch -----
    # Writing the (H, Wp) grid at flat offset Wp+1 places real pixels at their
    # padded positions; the masked-to-zero junk columns land exactly on the
    # left/right border, so only the top border (+1 elem) and the bottom
    # border (+slack) rows need explicit zeroing each step.
    h_ref[0:Wp + 1, :] = jnp.zeros((Wp + 1, c1_p), h_ref.dtype)
    h_ref[Wp + 1 + M1:R2, :] = jnp.zeros((R2 - (Wp + 1 + M1), c1_p), h_ref.dtype)
    h_ref[Wp + 1:Wp + 1 + M1, :] = y1.astype(h_ref.dtype)

    # ---- conv2 from the VMEM scratch (taps = contiguous leading-dim slices) --
    def tap2(t):
        kh, kw = divmod(t, 3)
        s = kh * Wp + kw
        return h_ref[s:s + M1, :]

    acc2 = _accum_taps(tap2, w2_ref, c1_p, M1)
    y2 = _instance_norm_relu(acc2, valid, inv_count, eps)       # (M1, c2_p) f32
    o_ref[0] = y2.astype(o_ref.dtype)


def double_conv_forward(x_nchw, params, *, eps=1e-5, fold_conv1=None):
    """Forward pass of the PyTorch `double_conv` module (NCHW in / NCHW out).

    The Conv2d biases in `params` are accepted but not used by the kernel:
    InstanceNorm's mean subtraction cancels them exactly.
    """
    w1, w2 = params["w1"], params["w2"]
    N, cin, H, W = x_nchw.shape
    c1, c2 = w1.shape[0], w2.shape[0]
    Hp, Wp = H + 2, W + 2
    M1 = H * Wp

    c1_p = _round_up(c1, LANE)
    c2_p = _round_up(c2, LANE)
    if fold_conv1 is None:
        fold_conv1 = 9 * cin <= 2 * LANE        # tiny-Cin first layer: fold taps

    x_nhwc = jnp.transpose(x_nchw, (0, 2, 3, 1))

    if fold_conv1:
        # Host-side im2col over the (H, Wp) compute grid -> conv1 is ONE dot.
        k1 = 9 * cin
        k1_rows = _round_up(k1, LANE)
        xp = jnp.pad(x_nhwc, ((0, 0), (1, 1), (1, 3), (0, 0)))
        taps = [xp[:, kh:kh + H, kw:kw + Wp, :]
                for kh in range(3) for kw in range(3)]
        patches = jnp.concatenate(taps, axis=-1).reshape(N, M1, k1)
        x_in = jnp.pad(patches, ((0, 0), (0, 0), (0, k1_rows - k1)))
        x_in = x_in.astype(jnp.bfloat16)
        rows_in = M1

        w1t = jnp.transpose(w1, (2, 3, 1, 0)).reshape(k1, c1)   # rows: (kh,kw,ci)
        w1p = jnp.pad(w1t, ((0, k1_rows - k1), (0, c1_p - c1))).astype(jnp.bfloat16)
    else:
        # Flattened zero-padded image: conv1 taps are contiguous row slices.
        cin_p = _round_up(cin, LANE)
        rows_in = _round_up(Hp * Wp + 2, SUBLANE)   # +2 slack for tap (2,2) reads
        xp = jnp.pad(x_nhwc, ((0, 0), (1, 1), (1, 1), (0, cin_p - cin)))
        x_in = jnp.pad(xp.reshape(N, Hp * Wp, cin_p),
                       ((0, 0), (0, rows_in - Hp * Wp), (0, 0)))
        x_in = x_in.astype(jnp.bfloat16)
        k1_rows = 9 * cin_p
        w1p = _pack_tap_weights(w1, cin_p, c1_p)

    w2p = _pack_tap_weights(w2, c1_p, c2_p)
    R2 = _round_up(Hp * Wp + 2, SUBLANE)            # bf16 scratch rows (+ slack)

    kernel = functools.partial(_double_conv_kernel, H=H, W=W, Wp=Wp,
                               eps=float(eps), fold_conv1=fold_conv1)

    # Advisory cost + a VMEM limit derived from the real block sizes.
    flops = 2 * N * M1 * (int(k1_rows) * c1_p + 9 * c1_p * c2_p)
    bytes_accessed = 2 * (int(x_in.size) + int(w1p.size) + int(w2p.size)
                          + N * M1 * c2_p)
    block_bytes = (2 * rows_in * int(x_in.shape[-1]) * 2   # double-buffered in
                   + 2 * M1 * c2_p * 2                     # double-buffered out
                   + int(w1p.size) * 2 + int(w2p.size) * 2
                   + R2 * c1_p * 2                         # bf16 scratch
                   + 12 * M1 * max(c1_p, c2_p) * 4)        # f32 temporaries
    vmem_limit = max(block_bytes + (8 << 20), 32 << 20)
    vmem_limit = min(vmem_limit, int(0.75 * _vmem_capacity_bytes()))

    # TODO(synk): for large H*W on v7x (64 MiB VMEM), add a spatial row-band
    # grid axis with streamed InstanceNorm sum/sumsq finalized under pl.when
    # (also gives a second "parallel" axis so both v7x TensorCores stay busy
    # when N == 1).
    out = pl.pallas_call(
        kernel,
        out_shape=jax.ShapeDtypeStruct((N, M1, c2_p), jnp.bfloat16),
        grid=(N,),
        in_specs=[
            pl.BlockSpec((1, rows_in, int(x_in.shape[-1])), lambda n: (n, 0, 0)),
            # Weights: block-index-constant -> DMA'd once, VMEM-resident.
            pl.BlockSpec(tuple(w1p.shape), lambda n: (0, 0)),
            pl.BlockSpec(tuple(w2p.shape), lambda n: (0, 0)),
        ],
        out_specs=pl.BlockSpec((1, M1, c2_p), lambda n: (n, 0, 0)),
        scratch_shapes=[pltpu.VMEM((R2, c1_p), jnp.bfloat16)],
        compiler_params=pltpu.CompilerParams(
            dimension_semantics=("parallel",),
            vmem_limit_bytes=int(vmem_limit)),
        cost_estimate=pl.CostEstimate(flops=int(flops),
                                      transcendentals=int(N * (c1_p + c2_p)),
                                      bytes_accessed=int(bytes_accessed)),
    )(x_in, w1p, w2p)

    # Drop junk columns + channel padding, NHWC -> NCHW, back to f32 (one
    # fused XLA pass at the module boundary).
    out = out.reshape(N, H, Wp, c2_p)[:, :, :W, :c2]
    return jnp.transpose(out, (0, 3, 1, 2)).astype(jnp.float32)


# ----------------------------------------------------------------------------
# Pure-JAX (XLA) reference mirroring the PyTorch module.  With
# emulate_bf16=True it quantizes the same tensors the kernel quantizes
# (inputs, weights, intermediate activation) so a tight tolerance is valid.
# ----------------------------------------------------------------------------
def _reference_double_conv(x, params, *, eps=1e-5, emulate_bf16=False):
    if emulate_bf16:
        q = lambda a: a.astype(jnp.bfloat16).astype(jnp.float32)
    else:
        q = lambda a: a

    def conv(x, w, b):
        y = jax.lax.conv_general_dilated(
            q(x), q(w), window_strides=(1, 1), padding=((1, 1), (1, 1)),
            dimension_numbers=("NCHW", "OIHW", "NCHW"))
        return y + b[None, :, None, None]

    def in_relu(y):
        mean = jnp.mean(y, axis=(2, 3), keepdims=True)
        var = jnp.mean(jnp.square(y - mean), axis=(2, 3), keepdims=True)
        return jnp.maximum((y - mean) * jax.lax.rsqrt(var + eps), 0.0)

    y = in_relu(conv(x, params["w1"], params["b1"]))
    return in_relu(conv(y, params["w2"], params["b2"]))


def init_params(key, in_ch, out_ch):
    k1, k2, k3, k4 = jax.random.split(key, 4)

    def conv_w(k, cout, cin):
        fan_in = float(cin * 9)
        return (jax.random.normal(k, (cout, cin, 3, 3), jnp.float32)
                / jnp.sqrt(fan_in))

    return {
        "w1": conv_w(k1, out_ch, in_ch),
        "b1": 0.1 * jax.random.normal(k2, (out_ch,), jnp.float32),
        "w2": conv_w(k3, out_ch, out_ch),
        "b2": 0.1 * jax.random.normal(k4, (out_ch,), jnp.float32),
    }


if __name__ == "__main__":
    key = jax.random.PRNGKey(0)
    k_x, k_p = jax.random.split(key)

    N, in_ch, out_ch, H, W = 2, 4, 8, 16, 16
    x = jax.random.normal(k_x, (N, in_ch, H, W), jnp.float32)
    params = init_params(k_p, in_ch, out_ch)

    out = jax.block_until_ready(jax.jit(double_conv_forward)(x, params))
    assert out.shape == (N, out_ch, H, W), out.shape

    # Tight check vs a reference that emulates the kernel's bf16 quantization
    # points, plus a loose sanity check vs the pure-f32 reference.
    ref_bf16 = jax.block_until_ready(
        _reference_double_conv(x, params, emulate_bf16=True))
    err = float(jnp.max(jnp.abs(out - ref_bf16)))
    assert err < 5e-2, f"max abs err vs bf16-emulating reference: {err}"

    ref_f32 = jax.block_until_ready(_reference_double_conv(x, params))
    assert bool(jnp.allclose(out, ref_f32, atol=2e-1, rtol=1e-1)), (
        f"max abs err vs f32 reference: {float(jnp.max(jnp.abs(out - ref_f32)))}")

    # Also exercise the per-tap conv1 path (used when in_ch is large).
    out_unfolded = jax.block_until_ready(
        jax.jit(functools.partial(double_conv_forward, fold_conv1=False))(
            x, params))
    err_u = float(jnp.max(jnp.abs(out_unfolded - ref_bf16)))
    assert err_u < 5e-2, f"max abs err (per-tap conv1 path): {err_u}"

    print("KERNEL_OK")
</pallas_src>

<mosaic_0001>
module attributes {stable_mosaic.version = 11 : i64} {
  func.func @_double_conv_kernel(%arg0: i32, %arg1: memref<1x288x128xbf16, #tpu.memory_space<vmem>>, %arg2: memref<128x128xbf16, #tpu.memory_space<vmem>>, %arg3: memref<1152x128xbf16, #tpu.memory_space<vmem>>, %arg4: memref<1x288x128xbf16, #tpu.memory_space<vmem>>, %arg5: memref<328x128xbf16, #tpu.memory_space<vmem>>) attributes {dimension_semantics = [#tpu.dimension_semantics<parallel>], iteration_bounds = array<i64: 2>, scalar_prefetch = 0 : i64, scratch_operands = 1 : i64, tpu.core_type = #tpu.core_type<tc>, window_params = [{transform_indices = @transform_0, window_bounds = array<i64: 1, 288, 128>}, {pipeline_mode = #tpu.pipeline_mode<synchronous>, transform_indices = @transform_1, window_bounds = array<i64: 128, 128>}, {pipeline_mode = #tpu.pipeline_mode<synchronous>, transform_indices = @transform_2, window_bounds = array<i64: 1152, 128>}, {transform_indices = @transform_3, window_bounds = array<i64: 1, 288, 128>}]} {
    %0 = tpu.iota {dimensions = array<i32: 0>} : vector<288x1xi32>
    %c18_i32 = arith.constant 18 : i32
    %c0_i32 = arith.constant 0 : i32
    %1 = arith.cmpi eq, %c18_i32, %c0_i32 : i32
    %c1_i32 = arith.constant 1 : i32
    %2 = arith.select %1, %c1_i32, %c18_i32 : i32
    %3 = vector.broadcast %2 : i32 to vector<288x1xi32>
    %4 = arith.remsi %0, %3 : vector<288x1xi32>
    %c0_i32_0 = arith.constant 0 : i32
    %5 = vector.broadcast %c0_i32_0 : i32 to vector<288x1xi32>
    %6 = arith.cmpi ne, %4, %5 : vector<288x1xi32>
    %c0_i32_1 = arith.constant 0 : i32
    %7 = vector.broadcast %c0_i32_1 : i32 to vector<288x1xi32>
    %8 = arith.cmpi slt, %4, %7 : vector<288x1xi32>
    %c0_i32_2 = arith.constant 0 : i32
    %9 = arith.cmpi slt, %2, %c0_i32_2 : i32
    %10 = vector.broadcast %9 : i1 to vector<288x1xi1>
    %11 = vector.broadcast %10 : vector<288x1xi1> to vector<288x1xi1>
    %12 = arith.xori %8, %11 : vector<288x1xi1>
    %13 = arith.andi %12, %6 : vector<288x1xi1>
    %14 = vector.broadcast %2 : i32 to vector<288x1xi32>
    %15 = arith.addi %4, %14 : vector<288x1xi32>
    %16 = arith.select %13, %15, %4 : vector<288x1xi1>, vector<288x1xi32>
    %c16_i32 = arith.constant 16 : i32
    %17 = vector.broadcast %c16_i32 : i32 to vector<288x1xi32>
    %18 = arith.cmpi slt, %16, %17 : vector<288x1xi32>
    %c0 = arith.constant 0 : index
    %c0_3 = arith.constant 0 : index
    %c0_4 = arith.constant 0 : index
    %19 = vector.load %arg1[%c0, %c0_3, %c0_4] : memref<1x288x128xbf16, #tpu.memory_space<vmem>>, vector<1x288x128xbf16>
    %20 = vector.shape_cast %19 : vector<1x288x128xbf16> to vector<288x128xbf16>
    %c0_5 = arith.constant 0 : index
    %c0_6 = arith.constant 0 : index
    %21 = vector.load %arg2[%c0_5, %c0_6] : memref<128x128xbf16, #tpu.memory_space<vmem>>, vector<128x128xbf16>
    %cst = arith.constant dense<0.000000e+00> : vector<288x128xf32>
    %22 = tpu.matmul %20, %21, %cst {dimension_numbers = #tpu.dot_dimension_numbers<[1], [0], [0], [1], [0, 0, 1, 1], [], []>} : vector<288x128xbf16>, vector<128x128xbf16>, vector<288x128xf32> -> vector<288x128xf32>
    %cst_7 = arith.constant 0.000000e+00 : f32
    %23 = vector.shape_cast %18 : vector<288x1xi1> to vector<288x1xi1>
    %24 = vector.broadcast %23 : vector<288x1xi1> to vector<288x128xi1>
    %25 = vector.broadcast %cst_7 : f32 to vector<288x128xf32>
    %26 = arith.select %24, %22, %25 : vector<288x128xi1>, vector<288x128xf32>
    %cst_8 = arith.constant dense<0.000000e+00> : vector<128xf32>
    %27 = vector.multi_reduction <add>, %26, %cst_8 [0] : vector<288x128xf32> to vector<128xf32>
    %28 = vector.shape_cast %27 : vector<128xf32> to vector<1x128xf32>
    %29 = arith.mulf %26, %26 : vector<288x128xf32>
    %cst_9 = arith.constant dense<0.000000e+00> : vector<128xf32>
    %30 = vector.multi_reduction <add>, %29, %cst_9 [0] : vector<288x128xf32> to vector<128xf32>
    %31 = vector.shape_cast %30 : vector<128xf32> to vector<1x128xf32>
    %cst_10 = arith.constant 3.906250e-03 : f32
    %32 = vector.broadcast %cst_10 : f32 to vector<1x128xf32>
    %33 = arith.mulf %28, %32 : vector<1x128xf32>
    %cst_11 = arith.constant 3.906250e-03 : f32
    %34 = vector.broadcast %cst_11 : f32 to vector<1x128xf32>
    %35 = arith.mulf %31, %34 : vector<1x128xf32>
    %36 = arith.mulf %33, %33 : vector<1x128xf32>
    %37 = arith.subf %35, %36 : vector<1x128xf32>
    %cst_12 = arith.constant 0.000000e+00 : f32
    %38 = vector.broadcast %cst_12 : f32 to vector<1x128xf32>
    %39 = arith.maximumf %37, %38 : vector<1x128xf32>
    %cst_13 = arith.constant 9.99999974E-6 : f32
    %40 = vector.broadcast %cst_13 : f32 to vector<1x128xf32>
    %41 = arith.addf %39, %40 : vector<1x128xf32>
    %42 = math.rsqrt %41 : vector<1x128xf32>
    %43 = vector.broadcast %33 : vector<1x128xf32> to vector<288x128xf32>
    %44 = arith.subf %22, %43 : vector<288x128xf32>
    %45 = vector.broadcast %42 : vector<1x128xf32> to vector<288x128xf32>
    %46 = arith.mulf %44, %45 : vector<288x128xf32>
    %cst_14 = arith.constant 0.000000e+00 : f32
    %47 = vector.broadcast %cst_14 : f32 to vector<288x128xf32>
    %48 = arith.maximumf %46, %47 : vector<288x128xf32>
    %cst_15 = arith.constant 0.000000e+00 : f32
    %49 = vector.shape_cast %18 : vector<288x1xi1> to vector<288x1xi1>
    %50 = vector.broadcast %49 : vector<288x1xi1> to vector<288x128xi1>
    %51 = vector.broadcast %cst_15 : f32 to vector<288x128xf32>
    %52 = arith.select %50, %48, %51 : vector<288x128xi1>, vector<288x128xf32>
    %cst_16 = arith.constant 0.000000e+00 : bf16
    %53 = vector.broadcast %cst_16 : bf16 to vector<19x128xbf16>
    %c0_17 = arith.constant 0 : index
    %c0_18 = arith.constant 0 : index
    %54 = vector.load %arg5[%c0_17, %c0_18] : memref<328x128xbf16, #tpu.memory_space<vmem>>, vector<19x128xbf16>
    tpu.vector_store %arg5[%c0_17, %c0_18], %53 {strides = array<i32>} : memref<328x128xbf16, #tpu.memory_space<vmem>>, vector<19x128xbf16>,
    %cst_19 = arith.constant 0.000000e+00 : bf16
    %55 = vector.broadcast %cst_19 : bf16 to vector<21x128xbf16>
    %c307 = arith.constant 307 : index
    %c0_20 = arith.constant 0 : index
    %56 = vector.load %arg5[%c307, %c0_20] : memref<328x128xbf16, #tpu.memory_space<vmem>>, vector<21x128xbf16>
    tpu.vector_store %arg5[%c307, %c0_20], %55 {strides = array<i32>} : memref<328x128xbf16, #tpu.memory_space<vmem>>, vector<21x128xbf16>,
    %57 = arith.truncf %52 : vector<288x128xf32> to vector<288x128xbf16>
    %c19 = arith.constant 19 : index
    %c0_21 = arith.constant 0 : index
    %58 = vector.load %arg5[%c19, %c0_21] : memref<328x128xbf16, #tpu.memory_space<vmem>>, vector<288x128xbf16>
    tpu.vector_store %arg5[%c19, %c0_21], %57 {strides = array<i32>} : memref<328x128xbf16, #tpu.memory_space<vmem>>, vector<288x128xbf16>,
    %cst_22 = arith.constant 0.000000e+00 : f32
    %59 = vector.broadcast %cst_22 : f32 to vector<288x128xf32>
    %c0_23 = arith.constant 0 : index
    %c0_24 = arith.constant 0 : index
    %60 = vector.load %arg5[%c0_23, %c0_24] : memref<328x128xbf16, #tpu.memory_space<vmem>>, vector<288x128xbf16>
    %c1 = arith.constant 1 : index
    %c0_25 = arith.constant 0 : index
    %61 = vector.load %arg5[%c1, %c0_25] : memref<328x128xbf16, #tpu.memory_space<vmem>>, vector<288x128xbf16>
    %62 = tpu.concatenate %60, %61 in 1 : vector<288x128xbf16>, vector<288x128xbf16> -> vector<288x256xbf16>
    %c0_26 = arith.constant 0 : index
    %c0_27 = arith.constant 0 : index
    %63 = vector.load %arg3[%c0_26, %c0_27] : memref<1152x128xbf16, #tpu.memory_space<vmem>>, vector<256x128xbf16>
    %cst_28 = arith.constant dense<0.000000e+00> : vector<288x128xf32>
    %64 = tpu.matmul %62, %63, %cst_28 {dimension_numbers = #tpu.dot_dimension_numbers<[1], [0], [0], [1], [0, 0, 1, 1], [], []>} : vector<288x256xbf16>, vector<256x128xbf16>, vector<288x128xf32> -> vector<288x128xf32>
    %65 = arith.addf %59, %64 : vector<288x128xf32>
    %c2 = arith.constant 2 : index
    %c0_29 = arith.constant 0 : index
    %66 = vector.load %arg5[%c2, %c0_29] : memref<328x128xbf16, #tpu.memory_space<vmem>>, vector<288x128xbf16>
    %c18 = arith.constant 18 : index
    %c0_30 = arith.constant 0 : index
    %67 = vector.load %arg5[%c18, %c0_30] : memref<328x128xbf16, #tpu.memory_space<vmem>>, vector<288x128xbf16>
    %68 = tpu.concatenate %66, %67 in 1 : vector<288x128xbf16>, vector<288x128xbf16> -> vector<288x256xbf16>
    %c256 = arith.constant 256 : index
    %c0_31 = arith.constant 0 : index
    %69 = vector.load %arg3[%c256, %c0_31] : memref<1152x128xbf16, #tpu.memory_space<vmem>>, vector<256x128xbf16>
    %cst_32 = arith.constant dense<0.000000e+00> : vector<288x128xf32>
    %70 = tpu.matmul %68, %69, %cst_32 {dimension_numbers = #tpu.dot_dimension_numbers<[1], [0], [0], [1], [0, 0, 1, 1], [], []>} : vector<288x256xbf16>, vector<256x128xbf16>, vector<288x128xf32> -> vector<288x128xf32>
    %71 = arith.addf %65, %70 : vector<288x128xf32>
    %c19_33 = arith.constant 19 : index
    %c0_34 = arith.constant 0 : index
    %72 = vector.load %arg5[%c19_33, %c0_34] : memref<328x128xbf16, #tpu.memory_space<vmem>>, vector<288x128xbf16>
    %c20 = arith.constant 20 : index
    %c0_35 = arith.constant 0 : index
    %73 = vector.load %arg5[%c20, %c0_35] : memref<328x128xbf16, #tpu.memory_space<vmem>>, vector<288x128xbf16>
    %74 = tpu.concatenate %72, %73 in 1 : vector<288x128xbf16>, vector<288x128xbf16> -> vector<288x256xbf16>
    %c512 = arith.constant 512 : index
    %c0_36 = arith.constant 0 : index
    %75 = vector.load %arg3[%c512, %c0_36] : memref<1152x128xbf16, #tpu.memory_space<vmem>>, vector<256x128xbf16>
    %cst_37 = arith.constant dense<0.000000e+00> : vector<288x128xf32>
    %76 = tpu.matmul %74, %75, %cst_37 {dimension_numbers = #tpu.dot_dimension_numbers<[1], [0], [0], [1], [0, 0, 1, 1], [], []>} : vector<288x256xbf16>, vector<256x128xbf16>, vector<288x128xf32> -> vector<288x128xf32>
    %77 = arith.addf %71, %76 : vector<288x128xf32>
    %c36 = arith.constant 36 : index
    %c0_38 = arith.constant 0 : index
    %78 = vector.load %arg5[%c36, %c0_38] : memref<328x128xbf16, #tpu.memory_space<vmem>>, vector<288x128xbf16>
    %c37 = arith.constant 37 : index
    %c0_39 = arith.constant 0 : index
    %79 = vector.load %arg5[%c37, %c0_39] : memref<328x128xbf16, #tpu.memory_space<vmem>>, vector<288x128xbf16>
    %80 = tpu.concatenate %78, %79 in 1 : vector<288x128xbf16>, vector<288x128xbf16> -> vector<288x256xbf16>
    %c768 = arith.constant 768 : index
    %c0_40 = arith.constant 0 : index
    %81 = vector.load %arg3[%c768, %c0_40] : memref<1152x128xbf16, #tpu.memory_space<vmem>>, vector<256x128xbf16>
    %cst_41 = arith.constant dense<0.000000e+00> : vector<288x128xf32>
    %82 = tpu.matmul %80, %81, %cst_41 {dimension_numbers = #tpu.dot_dimension_numbers<[1], [0], [0], [1], [0, 0, 1, 1], [], []>} : vector<288x256xbf16>, vector<256x128xbf16>, vector<288x128xf32> -> vector<288x128xf32>
    %83 = arith.addf %77, %82 : vector<288x128xf32>
    %c38 = arith.constant 38 : index
    %c0_42 = arith.constant 0 : index
    %84 = vector.load %arg5[%c38, %c0_42] : memref<328x128xbf16, #tpu.memory_space<vmem>>, vector<288x128xbf16>
    %c1024 = arith.constant 1024 : index
    %c0_43 = arith.constant 0 : index
    %85 = vector.load %arg3[%c1024, %c0_43] : memref<1152x128xbf16, #tpu.memory_space<vmem>>, vector<128x128xbf16>
    %cst_44 = arith.constant dense<0.000000e+00> : vector<288x128xf32>
    %86 = tpu.matmul %84, %85, %cst_44 {dimension_numbers = #tpu.dot_dimension_numbers<[1], [0], [0], [1], [0, 0, 1, 1], [], []>} : vector<288x128xbf16>, vector<128x128xbf16>, vector<288x128xf32> -> vector<288x128xf32>
    %87 = arith.addf %83, %86 : vector<288x128xf32>
    %cst_45 = arith.constant 0.000000e+00 : f32
    %88 = vector.shape_cast %18 : vector<288x1xi1> to vector<288x1xi1>
    %89 = vector.broadcast %88 : vector<288x1xi1> to vector<288x128xi1>
    %90 = vector.broadcast %cst_45 : f32 to vector<288x128xf32>
    %91 = arith.select %89, %87, %90 : vector<288x128xi1>, vector<288x128xf32>
    %cst_46 = arith.constant dense<0.000000e+00> : vector<128xf32>
    %92 = vector.multi_reduction <add>, %91, %cst_46 [0] : vector<288x128xf32> to vector<128xf32>
    %93 = vector.shape_cast %92 : vector<128xf32> to vector<1x128xf32>
    %94 = arith.mulf %91, %91 : vector<288x128xf32>
    %cst_47 = arith.constant dense<0.000000e+00> : vector<128xf32>
    %95 = vector.multi_reduction <add>, %94, %cst_47 [0] : vector<288x128xf32> to vector<128xf32>
    %96 = vector.shape_cast %95 : vector<128xf32> to vector<1x128xf32>
    %cst_48 = arith.constant 3.906250e-03 : f32
    %97 = vector.broadcast %cst_48 : f32 to vector<1x128xf32>
    %98 = arith.mulf %93, %97 : vector<1x128xf32>
    %cst_49 = arith.constant 3.906250e-03 : f32
    %99 = vector.broadcast %cst_49 : f32 to vector<1x128xf32>
    %100 = arith.mulf %96, %99 : vector<1x128xf32>
    %101 = arith.mulf %98, %98 : vector<1x128xf32>
    %102 = arith.subf %100, %101 : vector<1x128xf32>
    %cst_50 = arith.constant 0.000000e+00 : f32
    %103 = vector.broadcast %cst_50 : f32 to vector<1x128xf32>
    %104 = arith.maximumf %102, %103 : vector<1x128xf32>
    %cst_51 = arith.constant 9.99999974E-6 : f32
    %105 = vector.broadcast %cst_51 : f32 to vector<1x128xf32>
    %106 = arith.addf %104, %105 : vector<1x128xf32>
    %107 = math.rsqrt %106 : vector<1x128xf32>
    %108 = vector.broadcast %98 : vector<1x128xf32> to vector<288x128xf32>
    %109 = arith.subf %87, %108 : vector<288x128xf32>
    %110 = vector.broadcast %107 : vector<1x128xf32> to vector<288x128xf32>
    %111 = arith.mulf %109, %110 : vector<288x128xf32>
    %cst_52 = arith.constant 0.000000e+00 : f32
    %112 = vector.broadcast %cst_52 : f32 to vector<288x128xf32>
    %113 = arith.maximumf %111, %112 : vector<288x128xf32>
    %cst_53 = arith.constant 0.000000e+00 : f32
    %114 = vector.shape_cast %18 : vector<288x1xi1> to vector<288x1xi1>
    %115 = vector.broadcast %114 : vector<288x1xi1> to vector<288x128xi1>
    %116 = vector.broadcast %cst_53 : f32 to vector<288x128xf32>
    %117 = arith.select %115, %113, %116 : vector<288x128xi1>, vector<288x128xf32>
    %118 = arith.truncf %117 : vector<288x128xf32> to vector<288x128xbf16>
    %c0_54 = arith.constant 0 : index
    %c0_55 = arith.constant 0 : index
    %c0_56 = arith.constant 0 : index
    %119 = vector.load %arg4[%c0_54, %c0_55, %c0_56] : memref<1x288x128xbf16, #tpu.memory_space<vmem>>, vector<1x288x128xbf16>
    %120 = vector.shape_cast %119 : vector<1x288x128xbf16> to vector<288x128xbf16>
    %121 = vector.shape_cast %118 : vector<288x128xbf16> to vector<1x288x128xbf16>
    tpu.vector_store %arg4[%c0_54, %c0_55, %c0_56], %121 {strides = array<i32>} : memref<1x288x128xbf16, #tpu.memory_space<vmem>>, vector<1x288x128xbf16>,
    return
  }
  func.func @transform_0(%arg0: i32) -> (i32, i32, i32) {
    %c0_i32 = arith.constant 0 : i32
    %c0_i32_0 = arith.constant 0 : i32
    %c0_i32_1 = arith.constant 0 : i32
    return %arg0, %c0_i32, %c0_i32_0 : i32, i32, i32
  }
  func.func @transform_1(%arg0: i32) -> (i32, i32) {
    %c0_i32 = arith.constant 0 : i32
    %c0_i32_0 = arith.constant 0 : i32
    %c0_i32_1 = arith.constant 0 : i32
    return %c0_i32, %c0_i32_0 : i32, i32
  }
  func.func @transform_2(%arg0: i32) -> (i32, i32) {
    %c0_i32 = arith.constant 0 : i32
    %c0_i32_0 = arith.constant 0 : i32
    %c0_i32_1 = arith.constant 0 : i32
    return %c0_i32, %c0_i32_0 : i32, i32
  }
  func.func @transform_3(%arg0: i32) -> (i32, i32, i32) {
    %c0_i32 = arith.constant 0 : i32
    %c0_i32_0 = arith.constant 0 : i32
    %c0_i32_1 = arith.constant 0 : i32
    return %arg0, %c0_i32, %c0_i32_0 : i32, i32, i32
  }
}

</mosaic_0001>

<llo_original>
// kernel: double_conv_forward.1
$region0: #{double_conv_forward.1}
  #allocation0 [shape = 'u32[]', space=smem, size = 0x4, offset = 0x4, fixed_abs, tag = 'smem constant byte address 0x4 - core index']
  #allocation1 [shape = 'u32[144,128]{1,0:T(1,128)}', space=vmem, size = 0x12000, scoped, tag = 'internal scratch']
  #allocation2 [shape = 'bf16[328,128]{1,0:T(8,128)(2,1)}', space=vmem, size = 0x14800, scoped, tag = 'scratch operand']
  %s0 = inlined_call_operand.vmem [shape: bf16[2,288,128], index: 0, kind: input, shape index: {}]
  %s1 = inlined_call_operand.vmem [shape: bf16[128,128], index: 1, kind: input, shape index: {}]
  %s2 = inlined_call_operand.vmem [shape: bf16[1152,128], index: 2, kind: input, shape index: {}]
  %s3 = inlined_call_operand.vmem [shape: bf16[2,288,128], index: 3, kind: output, shape index: {}]
  %s4 = sld [smem:[#allocation0]]
  $region45: #{double_conv_forward.1} parent=0
    _
  %s6 = ssub.s32 1, %s4
  %s7 = scalar_select 0, %s6, %s4
  loop: start=0, step=1, limit=4
  $region2: #{double_conv_forward.1} parent=0 // loop_pre_header
    _
  $region3: #{double_conv_forward.1} parent=0 // loop_header
    %s9 = sphi 0, %s13
    %p10 = scmp.ge.s32.totalorder %s9, 4
    %s19 = sphi 0, %s21
    %s22 = sphi 0, %s19
    %s23 = sphi 0, %s22
    %s39 = sphi 0, %s23
    %s43 = sphi 0, %s43
    %s45 = sphi 0, %s43
    %s46 = sphi 0, %s45
    %s60 = sphi 0, %s46
    %s64 = sphi 0, %s64
    %s66 = sphi 0, %s64
    %s67 = sphi 0, %s66
    %s81 = sphi 0, %s67
    %s87 = sphi 0, %s89
    %s90 = sphi 0, %s87
    %s91 = sphi 0, %s90
    %s107 = sphi 0, %s91
  $region4: #{double_conv_forward.1} parent=0 // loop_header_branch
    %12 = sbr.rel (%p10) target = $region8
  $region5: #{double_conv_forward.1} parent=0 // loop_body
    %s14 = ssub.s32 %s9, 1
    %s15 = ssub.s32 %s9, 2
    %s16 = sadd.s32 %s9, 1
    %s17 = ssub.s32 %s9, %s16
    %p18 = scmp.eq.s32.totalorder %s17, 0
    %s20 = sadd.s32 %s19, 1
    %s21 = scalar_select %p18, %s19, %s20
    %p24 = pneg %p18
    %p25 = scmp.eq.s32.totalorder %s9, 1
    %p26 = por %p24, %p25
    %p27 = scmp.ne.s32.totalorder %s19, %s22
    %p28 = scmp.eq.s32.totalorder %s9, 0
    %p29 = por %p27, %p28
    %p30 = scmp.ne.s32.totalorder %s19, %s22
    %p31 = scmp.eq.s32.totalorder %s14, 1
    %p32 = por %p30, %p31
    %p33 = scmp.ne.s32.totalorder %s22, %s23
    %p34 = scmp.eq.s32.totalorder %s14, 0
    %p35 = por %p33, %p34
    %p36 = scmp.ne.s32.totalorder %s22, %s23
    %p37 = scmp.eq.s32.totalorder %s15, 1
    %p38 = por %p36, %p37
    %p40 = scmp.ne.s32.totalorder %s23, %s39
    %p41 = scmp.eq.s32.totalorder %s15, 0
    %p42 = por %p40, %p41
    %s44 = sadd.s32 %s43, 1
    %p47 = scmp.eq.s32.totalorder %s9, 1
    %p48 = scmp.ne.s32.totalorder %s43, %s45
    %p49 = scmp.eq.s32.totalorder %s9, 0
    %p50 = por %p48, %p49
    %p51 = scmp.ne.s32.totalorder %s43, %s45
    %p52 = scmp.eq.s32.totalorder %s14, 1
    %p53 = por %p51, %p52
    %p54 = scmp.ne.s32.totalorder %s45, %s46
    %p55 = scmp.eq.s32.totalorder %s14, 0
    %p56 = por %p54, %p55
    %p57 = scmp.ne.s32.totalorder %s45, %s46
    %p58 = scmp.eq.s32.totalorder %s15, 1
    %p59 = por %p57, %p58
    %p61 = scmp.ne.s32.totalorder %s46, %s60
    %p62 = scmp.eq.s32.totalorder %s15, 0
    %p63 = por %p61, %p62
    %s65 = sadd.s32 %s64, 1
    %p68 = scmp.eq.s32.totalorder %s9, 1
    %p69 = scmp.ne.s32.totalorder %s64, %s66
    %p70 = scmp.eq.s32.totalorder %s9, 0
    %p71 = por %p69, %p70
    %p72 = scmp.ne.s32.totalorder %s64, %s66
    %p73 = scmp.eq.s32.totalorder %s14, 1
    %p74 = por %p72, %p73
    %p75 = scmp.ne.s32.totalorder %s66, %s67
    %p76 = scmp.eq.s32.totalorder %s14, 0
    %p77 = por %p75, %p76
    %p78 = scmp.ne.s32.totalorder %s66, %s67
    %p79 = scmp.eq.s32.totalorder %s15, 1
    %p80 = por %p78, %p79
    %p82 = scmp.ne.s32.totalorder %s67, %s81
    %p83 = scmp.eq.s32.totalorder %s15, 0
    %p84 = por %p82, %p83
    %s85 = ssub.s32 %s9, %s16
    %p86 = scmp.eq.s32.totalorder %s85, 0
    %s88 = sadd.s32 %s87, 1
    %s89 = scalar_select %p86, %s87, %s88
    %p92 = pneg %p86
    %p93 = scmp.eq.s32.totalorder %s9, 1
    %p94 = por %p92, %p93
    %p95 = scmp.ne.s32.totalorder %s87, %s90
    %p96 = scmp.eq.s32.totalorder %s9, 0
    %p97 = por %p95, %p96
    %p98 = scmp.ne.s32.totalorder %s87, %s90
    %p99 = scmp.eq.s32.totalorder %s14, 1
    %p100 = por %p98, %p99
    %p101 = scmp.ne.s32.totalorder %s90, %s91
    %p102 = scmp.eq.s32.totalorder %s14, 0
    %p103 = por %p101, %p102
    %p104 = scmp.ne.s32.totalorder %s90, %s91
    %p105 = scmp.eq.s32.totalorder %s15, 1
    %p106 = por %p104, %p105
    %p108 = scmp.ne.s32.totalorder %s91, %s107
    %p109 = scmp.eq.s32.totalorder %s15, 0
    %p110 = por %p108, %p109
    %p111 = scmp.le.s32.totalorder 1, %s9
    %p112 = scmp.lt.s32.totalorder %s9, 3
    %p113 = pnand %p111, %p112
    %p114 = pneg %p113
    // Predicated region
    $region9: #{double_conv_forward.1} parent=5 // pred_check
      _
    $region10: #{double_conv_forward.1} parent=5 // pred_check_branch
      %116 = sbr.rel (%p113) target = $region12
    $region11: #{double_conv_forward.1} parent=5 // pred_region
      %s117 = ssub.s32 %s9, 1
      // Predicated region
      $region13: #{double_conv_forward.1} parent=11 // pred_check
        %p118 = pneg %p56
      $region14: #{double_conv_forward.1} parent=11 // pred_check_branch
        %120 = sbr.rel (%p118) target = $region16
      $region15: #{double_conv_forward.1} parent=11 // pred_region
        _
      $region16: #{double_conv_forward.1} parent=11 // pred_fallthru
        _
      // Predicated region
      $region17: #{double_conv_forward.1} parent=11 // pred_check
        %p121 = pneg %p77
      $region18: #{double_conv_forward.1} parent=11 // pred_check_branch
        %123 = sbr.rel (%p121) target = $region20
      $region19: #{double_conv_forward.1} parent=11 // pred_region
        _
      $region20: #{double_conv_forward.1} parent=11 // pred_fallthru
        _
    $region12: #{double_conv_forward.1} parent=5 // pred_fallthru
      _
    %p124 = scmp.lt.s32.totalorder %s9, 2
    // Predicated region
    $region21: #{double_conv_forward.1} parent=5 // pred_check
      %p125 = pneg %p124
    $region22: #{double_conv_forward.1} parent=5 // pred_check_branch
      %127 = sbr.rel (%p125) target = $region24
    $region23: #{double_conv_forward.1} parent=5 // pred_region
      // Predicated region
      $region25: #{double_conv_forward.1} parent=23 // pred_check
        %p128 = pneg %p29
      $region26: #{double_conv_forward.1} parent=23 // pred_check_branch
        %130 = sbr.rel (%p128) target = $region28
      $region27: #{double_conv_forward.1} parent=23 // pred_region
        %p131 = scmp.lt.s32.totalorder %s9, 1
        %s132 = scalar_select %p131, %s9, 1
        %s133 = smul.addr %s132, 36
        %s134 = smul.addr %s133, 4
        %s135 = scalar_lea.vmem %s0, %s134
      $region28: #{double_conv_forward.1} parent=23 // pred_fallthru
        _
    $region24: #{double_conv_forward.1} parent=5 // pred_fallthru
      _
    %p136 = scmp.le.s32.totalorder 1, %s9
    %p137 = scmp.lt.s32.totalorder %s9, 3
    %p138 = pnand %p136, %p137
    %p139 = pneg %p138
    // Predicated region
    $region29: #{double_conv_forward.1} parent=5 // pred_check
      _
    $region30: #{double_conv_forward.1} parent=5 // pred_check_branch
      %141 = sbr.rel (%p138) target = $region32
    $region31: #{double_conv_forward.1} parent=5 // pred_region
      %s142 = ssub.s32 %s9, 1
      %p143 = scmp.lt.s32.totalorder %s14, 1
      %s144 = scalar_select %p143, %s14, 1
      %s145 = smul.addr %s144, 36
      %s146 = smul.addr %s145, 4
      %s147 = scalar_lea.vmem %s0, %s146
      %p148 = pneg %p35
      %p149 = pneg %p32
      %p150 = pneg %p56
      %p151 = pneg %p53
      %p152 = pneg %p77
      %p153 = pneg %p74
      %p154 = pneg %p103
      %p155 = pneg %p100
      %p156 = scmp.lt.s32.totalorder %s14, 1
      %s157 = scalar_select %p156, %s14, 1
      %s158 = smul.addr %s157, 36
      %s159 = smul.addr %s158, 4
      %s160 = scalar_lea.vmem %s3, %s159
      %p161 = scmp.lt.s32.totalorder %s14, 1
      %s162 = scalar_select %p161, %s14, 1
      %s163 = smul.addr %s162, 36
      %s164 = smul.addr %s163, 4
      %s165 = scalar_lea.vmem %s0, %s164
      %p166 = scmp.lt.s32.totalorder %s14, 1
      %s167 = scalar_select %p166, %s14, 1
      %s168 = smul.addr %s167, 36
      %s169 = smul.addr %s168, 4
      %s170 = scalar_lea.vmem %s3, %s169
      %v172 = vlaneseq
      %v173 = vshrl.u32 %v172, 7
      %v174 = vadd.s32 %v173, 8
      %v175 = vadd.s32 %v173, 16
      %v176 = vadd.s32 %v173, 24
      %v177 = vadd.s32 %v173, 32
      %v178 = vadd.s32 %v173, 40
      %v179 = vadd.s32 %v173, 48
      %v180 = vadd.s32 %v173, 56
      %v181 = vadd.s32 %v173, 64
      %v182 = vadd.s32 %v173, 72
      %v183 = vadd.s32 %v173, 80
      %v184 = vadd.s32 %v173, 88
      %v185 = vadd.s32 %v173, 96
      %v186 = vadd.s32 %v173, 104
      %v187 = vadd.s32 %v173, 112
      %v188 = vadd.s32 %v173, 120
      %v189 = vadd.s32 %v173, 128
      %v190 = vadd.s32 %v173, 136
      %v191 = vadd.s32 %v173, 144
      %v192 = vadd.s32 %v173, 152
      %v193 = vadd.s32 %v173, 160
      %v194 = vadd.s32 %v173, 168
      %v195 = vadd.s32 %v173, 176
      %v196 = vadd.s32 %v173, 184
      %v197 = vadd.s32 %v173, 192
      %v198 = vadd.s32 %v173, 200
      %v199 = vadd.s32 %v173, 208
      %v200 = vadd.s32 %v173, 216
      %v201 = vadd.s32 %v173, 224
      %v202 = vadd.s32 %v173, 232
      %v203 = vadd.s32 %v173, 240
      %v204 = vadd.s32 %v173, 248
      %v205 = vadd.s32 %v173, 256
      %v206 = vadd.s32 %v173, 264
      %v207 = vadd.s32 %v173, 272
      %v208 = vadd.s32 %v173, 280
      %vm209 = vcmp.lt.s32.totalorder %v173, 0
      %v210 = vsub.s32 0, %v173
      %v211 = vsel %vm209, %v210, %v173
      %v212 = vmul.u32.u64.compose %v211, 3817748708
      %v213 = vextract.low.u32 %v212
      %v214 = vextract.high.u32 %v212
      %v215 = vshrl.u32 %v214, 4
      %v216 = vmul.u32 %v215, 18
      %v217 = vsub.s32 %v211, %v216
      %v218 = vsub.s32 0, %v217
      %v219 = vsel %vm209, %v218, %v217
      %vm220 = vcmp.lt.s32.totalorder %v174, 0
      %v221 = vsub.s32 0, %v174
      %v222 = vsel %vm220, %v221, %v174
      %v223 = vmul.u32.u64.compose %v222, 3817748708
      %v224 = vextract.low.u32 %v223
      %v225 = vextract.high.u32 %v223
      %v226 = vshrl.u32 %v225, 4
      %v227 = vmul.u32 %v226, 18
      %v228 = vsub.s32 %v222, %v227
      %v229 = vsub.s32 0, %v228
      %v230 = vsel %vm220, %v229, %v228
      %vm231 = vcmp.lt.s32.totalorder %v175, 0
      %v232 = vsub.s32 0, %v175
      %v233 = vsel %vm231, %v232, %v175
      %v234 = vmul.u32.u64.compose %v233, 3817748708
      %v235 = vextract.low.u32 %v234
      %v236 = vextract.high.u32 %v234
      %v237 = vshrl.u32 %v236, 4
      %v238 = vmul.u32 %v237, 18
      %v239 = vsub.s32 %v233, %v238
      %v240 = vsub.s32 0, %v239
      %v241 = vsel %vm231, %v240, %v239
      %vm242 = vcmp.lt.s32.totalorder %v176, 0
      %v243 = vsub.s32 0, %v176
      %v244 = vsel %vm242, %v243, %v176
      %v245 = vmul.u32.u64.compose %v244, 3817748708
      %v246 = vextract.low.u32 %v245
      %v247 = vextract.high.u32 %v245
      %v248 = vshrl.u32 %v247, 4
      %v249 = vmul.u32 %v248, 18
      %v250 = vsub.s32 %v244, %v249
      %v251 = vsub.s32 0, %v250
      %v252 = vsel %vm242, %v251, %v250
      %vm253 = vcmp.lt.s32.totalorder %v177, 0
      %v254 = vsub.s32 0, %v177
      %v255 = vsel %vm253, %v254, %v177
      %v256 = vmul.u32.u64.compose %v255, 3817748708
      %v257 = vextract.low.u32 %v256
      %v258 = vextract.high.u32 %v256
      %v259 = vshrl.u32 %v258, 4
      %v260 = vmul.u32 %v259, 18
      %v261 = vsub.s32 %v255, %v260
      %v262 = vsub.s32 0, %v261
      %v263 = vsel %vm253, %v262, %v261
      %vm264 = vcmp.lt.s32.totalorder %v178, 0
      %v265 = vsub.s32 0, %v178
      %v266 = vsel %vm264, %v265, %v178
      %v267 = vmul.u32.u64.compose %v266, 3817748708
      %v268 = vextract.low.u32 %v267
      %v269 = vextract.high.u32 %v267
      %v270 = vshrl.u32 %v269, 4
      %v271 = vmul.u32 %v270, 18
      %v272 = vsub.s32 %v266, %v271
      %v273 = vsub.s32 0, %v272
      %v274 = vsel %vm264, %v273, %v272
      %vm275 = vcmp.lt.s32.totalorder %v179, 0
      %v276 = vsub.s32 0, %v179
      %v277 = vsel %vm275, %v276, %v179
      %v278 = vmul.u32.u64.compose %v277, 3817748708
      %v279 = vextract.low.u32 %v278
      %v280 = vextract.high.u32 %v278
      %v281 = vshrl.u32 %v280, 4
      %v282 = vmul.u32 %v281, 18
      %v283 = vsub.s32 %v277, %v282
      %v284 = vsub.s32 0, %v283
      %v285 = vsel %vm275, %v284, %v283
      %vm286 = vcmp.lt.s32.totalorder %v180, 0
      %v287 = vsub.s32 0, %v180
      %v288 = vsel %vm286, %v287, %v180
      %v289 = vmul.u32.u64.compose %v288, 3817748708
      %v290 = vextract.low.u32 %v289
      %v291 = vextract.high.u32 %v289
      %v292 = vshrl.u32 %v291, 4
      %v293 = vmul.u32 %v292, 18
      %v294 = vsub.s32 %v288, %v293
      %v295 = vsub.s32 0, %v294
      %v296 = vsel %vm286, %v295, %v294
      %vm297 = vcmp.lt.s32.totalorder %v181, 0
      %v298 = vsub.s32 0, %v181
      %v299 = vsel %vm297, %v298, %v181
      %v300 = vmul.u32.u64.compose %v299, 3817748708
      %v301 = vextract.low.u32 %v300
      %v302 = vextract.high.u32 %v300
      %v303 = vshrl.u32 %v302, 4
      %v304 = vmul.u32 %v303, 18
      %v305 = vsub.s32 %v299, %v304
      %v306 = vsub.s32 0, %v305
      %v307 = vsel %vm297, %v306, %v305
      %vm308 = vcmp.lt.s32.totalorder %v182, 0
      %v309 = vsub.s32 0, %v182
      %v310 = vsel %vm308, %v309, %v182
      %v311 = vmul.u32.u64.compose %v310, 3817748708
      %v312 = vextract.low.u32 %v311
      %v313 = vextract.high.u32 %v311
      %v314 = vshrl.u32 %v313, 4
      %v315 = vmul.u32 %v314, 18
      %v316 = vsub.s32 %v310, %v315
      %v317 = vsub.s32 0, %v316
      %v318 = vsel %vm308, %v317, %v316
      %vm319 = vcmp.lt.s32.totalorder %v183, 0
      %v320 = vsub.s32 0, %v183
      %v321 = vsel %vm319, %v320, %v183
      %v322 = vmul.u32.u64.compose %v321, 3817748708
      %v323 = vextract.low.u32 %v322
      %v324 = vextract.high.u32 %v322
      %v325 = vshrl.u32 %v324, 4
      %v326 = vmul.u32 %v325, 18
      %v327 = vsub.s32 %v321, %v326
      %v328 = vsub.s32 0, %v327
      %v329 = vsel %vm319, %v328, %v327
      %vm330 = vcmp.lt.s32.totalorder %v184, 0
      %v331 = vsub.s32 0, %v184
      %v332 = vsel %vm330, %v331, %v184
      %v333 = vmul.u32.u64.compose %v332, 3817748708
      %v334 = vextract.low.u32 %v333
      %v335 = vextract.high.u32 %v333
      %v336 = vshrl.u32 %v335, 4
      %v337 = vmul.u32 %v336, 18
      %v338 = vsub.s32 %v332, %v337
      %v339 = vsub.s32 0, %v338
      %v340 = vsel %vm330, %v339, %v338
      %vm341 = vcmp.lt.s32.totalorder %v185, 0
      %v342 = vsub.s32 0, %v185
      %v343 = vsel %vm341, %v342, %v185
      %v344 = vmul.u32.u64.compose %v343, 3817748708
      %v345 = vextract.low.u32 %v344
      %v346 = vextract.high.u32 %v344
      %v347 = vshrl.u32 %v346, 4
      %v348 = vmul.u32 %v347, 18
      %v349 = vsub.s32 %v343, %v348
      %v350 = vsub.s32 0, %v349
      %v351 = vsel %vm341, %v350, %v349
      %vm352 = vcmp.lt.s32.totalorder %v186, 0
      %v353 = vsub.s32 0, %v186
      %v354 = vsel %vm352, %v353, %v186
      %v355 = vmul.u32.u64.compose %v354, 3817748708
      %v356 = vextract.low.u32 %v355
      %v357 = vextract.high.u32 %v355
      %v358 = vshrl.u32 %v357, 4
      %v359 = vmul.u32 %v358, 18
      %v360 = vsub.s32 %v354, %v359
      %v361 = vsub.s32 0, %v360
      %v362 = vsel %vm352, %v361, %v360
      %vm363 = vcmp.lt.s32.totalorder %v187, 0
      %v364 = vsub.s32 0, %v187
      %v365 = vsel %vm363, %v364, %v187
      %v366 = vmul.u32.u64.compose %v365, 3817748708
      %v367 = vextract.low.u32 %v366
      %v368 = vextract.high.u32 %v366
      %v369 = vshrl.u32 %v368, 4
      %v370 = vmul.u32 %v369, 18
      %v371 = vsub.s32 %v365, %v370
      %v372 = vsub.s32 0, %v371
      %v373 = vsel %vm363, %v372, %v371
      %vm374 = vcmp.lt.s32.totalorder %v188, 0
      %v375 = vsub.s32 0, %v188
      %v376 = vsel %vm374, %v375, %v188
      %v377 = vmul.u32.u64.compose %v376, 3817748708
      %v378 = vextract.low.u32 %v377
      %v379 = vextract.high.u32 %v377
      %v380 = vshrl.u32 %v379, 4
      %v381 = vmul.u32 %v380, 18
      %v382 = vsub.s32 %v376, %v381
      %v383 = vsub.s32 0, %v382
      %v384 = vsel %vm374, %v383, %v382
      %vm385 = vcmp.lt.s32.totalorder %v189, 0
      %v386 = vsub.s32 0, %v189
      %v387 = vsel %vm385, %v386, %v189
      %v388 = vmul.u32.u64.compose %v387, 3817748708
      %v389 = vextract.low.u32 %v388
      %v390 = vextract.high.u32 %v388
      %v391 = vshrl.u32 %v390, 4
      %v392 = vmul.u32 %v391, 18
      %v393 = vsub.s32 %v387, %v392
      %v394 = vsub.s32 0, %v393
      %v395 = vsel %vm385, %v394, %v393
      %vm396 = vcmp.lt.s32.totalorder %v190, 0
      %v397 = vsub.s32 0, %v190
      %v398 = vsel %vm396, %v397, %v190
      %v399 = vmul.u32.u64.compose %v398, 3817748708
      %v400 = vextract.low.u32 %v399
      %v401 = vextract.high.u32 %v399
      %v402 = vshrl.u32 %v401, 4
      %v403 = vmul.u32 %v402, 18
      %v404 = vsub.s32 %v398, %v403
      %v405 = vsub.s32 0, %v404
      %v406 = vsel %vm396, %v405, %v404
      %vm407 = vcmp.lt.s32.totalorder %v191, 0
      %v408 = vsub.s32 0, %v191
      %v409 = vsel %vm407, %v408, %v191
      %v410 = vmul.u32.u64.compose %v409, 3817748708
      %v411 = vextract.low.u32 %v410
      %v412 = vextract.high.u32 %v410
      %v413 = vshrl.u32 %v412, 4
      %v414 = vmul.u32 %v413, 18
      %v415 = vsub.s32 %v409, %v414
      %v416 = vsub.s32 0, %v415
      %v417 = vsel %vm407, %v416, %v415
      %vm418 = vcmp.lt.s32.totalorder %v192, 0
      %v419 = vsub.s32 0, %v192
      %v420 = vsel %vm418, %v419, %v192
      %v421 = vmul.u32.u64.compose %v420, 3817748708
      %v422 = vextract.low.u32 %v421
      %v423 = vextract.high.u32 %v421
      %v424 = vshrl.u32 %v423, 4
      %v425 = vmul.u32 %v424, 18
      %v426 = vsub.s32 %v420, %v425
      %v427 = vsub.s32 0, %v426
      %v428 = vsel %vm418, %v427, %v426
      %vm429 = vcmp.lt.s32.totalorder %v193, 0
      %v430 = vsub.s32 0, %v193
      %v431 = vsel %vm429, %v430, %v193
      %v432 = vmul.u32.u64.compose %v431, 3817748708
      %v433 = vextract.low.u32 %v432
      %v434 = vextract.high.u32 %v432
      %v435 = vshrl.u32 %v434, 4
      %v436 = vmul.u32 %v435, 18
      %v437 = vsub.s32 %v431, %v436
      %v438 = vsub.s32 0, %v437
      %v439 = vsel %vm429, %v438, %v437
      %vm440 = vcmp.lt.s32.totalorder %v194, 0
      %v441 = vsub.s32 0, %v194
      %v442 = vsel %vm440, %v441, %v194
      %v443 = vmul.u32.u64.compose %v442, 3817748708
      %v444 = vextract.low.u32 %v443
      %v445 = vextract.high.u32 %v443
      %v446 = vshrl.u32 %v445, 4
      %v447 = vmul.u32 %v446, 18
      %v448 = vsub.s32 %v442, %v447
      %v449 = vsub.s32 0, %v448
      %v450 = vsel %vm440, %v449, %v448
      %vm451 = vcmp.lt.s32.totalorder %v195, 0
      %v452 = vsub.s32 0, %v195
      %v453 = vsel %vm451, %v452, %v195
      %v454 = vmul.u32.u64.compose %v453, 3817748708
      %v455 = vextract.low.u32 %v454
      %v456 = vextract.high.u32 %v454
      %v457 = vshrl.u32 %v456, 4
      %v458 = vmul.u32 %v457, 18
      %v459 = vsub.s32 %v453, %v458
      %v460 = vsub.s32 0, %v459
      %v461 = vsel %vm451, %v460, %v459
      %vm462 = vcmp.lt.s32.totalorder %v196, 0
      %v463 = vsub.s32 0, %v196
      %v464 = vsel %vm462, %v463, %v196
      %v465 = vmul.u32.u64.compose %v464, 3817748708
      %v466 = vextract.low.u32 %v465
      %v467 = vextract.high.u32 %v465
      %v468 = vshrl.u32 %v467, 4
      %v469 = vmul.u32 %v468, 18
      %v470 = vsub.s32 %v464, %v469
      %v471 = vsub.s32 0, %v470
      %v472 = vsel %vm462, %v471, %v470
      %vm473 = vcmp.lt.s32.totalorder %v197, 0
      %v474 = vsub.s32 0, %v197
      %v475 = vsel %vm473, %v474, %v197
      %v476 = vmul.u32.u64.compose %v475, 3817748708
      %v477 = vextract.low.u32 %v476
      %v478 = vextract.high.u32 %v476
      %v479 = vshrl.u32 %v478, 4
      %v480 = vmul.u32 %v479, 18
      %v481 = vsub.s32 %v475, %v480
      %v482 = vsub.s32 0, %v481
      %v483 = vsel %vm473, %v482, %v481
      %vm484 = vcmp.lt.s32.totalorder %v198, 0
      %v485 = vsub.s32 0, %v198
      %v486 = vsel %vm484, %v485, %v198
      %v487 = vmul.u32.u64.compose %v486, 3817748708
      %v488 = vextract.low.u32 %v487
      %v489 = vextract.high.u32 %v487
      %v490 = vshrl.u32 %v489, 4
      %v491 = vmul.u32 %v490, 18
      %v492 = vsub.s32 %v486, %v491
      %v493 = vsub.s32 0, %v492
      %v494 = vsel %vm484, %v493, %v492
      %vm495 = vcmp.lt.s32.totalorder %v199, 0
      %v496 = vsub.s32 0, %v199
      %v497 = vsel %vm495, %v496, %v199
      %v498 = vmul.u32.u64.compose %v497, 3817748708
      %v499 = vextract.low.u32 %v498
      %v500 = vextract.high.u32 %v498
      %v501 = vshrl.u32 %v500, 4
      %v502 = vmul.u32 %v501, 18
      %v503 = vsub.s32 %v497, %v502
      %v504 = vsub.s32 0, %v503
      %v505 = vsel %vm495, %v504, %v503
      %vm506 = vcmp.lt.s32.totalorder %v200, 0
      %v507 = vsub.s32 0, %v200
      %v508 = vsel %vm506, %v507, %v200
      %v509 = vmul.u32.u64.compose %v508, 3817748708
      %v510 = vextract.low.u32 %v509
      %v511 = vextract.high.u32 %v509
      %v512 = vshrl.u32 %v511, 4
      %v513 = vmul.u32 %v512, 18
      %v514 = vsub.s32 %v508, %v513
      %v515 = vsub.s32 0, %v514
      %v516 = vsel %vm506, %v515, %v514
      %vm517 = vcmp.lt.s32.totalorder %v201, 0
      %v518 = vsub.s32 0, %v201
      %v519 = vsel %vm517, %v518, %v201
      %v520 = vmul.u32.u64.compose %v519, 3817748708
      %v521 = vextract.low.u32 %v520
      %v522 = vextract.high.u32 %v520
      %v523 = vshrl.u32 %v522, 4
      %v524 = vmul.u32 %v523, 18
      %v525 = vsub.s32 %v519, %v524
      %v526 = vsub.s32 0, %v525
      %v527 = vsel %vm517, %v526, %v525
      %vm528 = vcmp.lt.s32.totalorder %v202, 0
      %v529 = vsub.s32 0, %v202
      %v530 = vsel %vm528, %v529, %v202
      %v531 = vmul.u32.u64.compose %v530, 3817748708
      %v532 = vextract.low.u32 %v531
      %v533 = vextract.high.u32 %v531
      %v534 = vshrl.u32 %v533, 4
      %v535 = vmul.u32 %v534, 18
      %v536 = vsub.s32 %v530, %v535
      %v537 = vsub.s32 0, %v536
      %v538 = vsel %vm528, %v537, %v536
      %vm539 = vcmp.lt.s32.totalorder %v203, 0
      %v540 = vsub.s32 0, %v203
      %v541 = vsel %vm539, %v540, %v203
      %v542 = vmul.u32.u64.compose %v541, 3817748708
      %v543 = vextract.low.u32 %v542
      %v544 = vextract.high.u32 %v542
      %v545 = vshrl.u32 %v544, 4
      %v546 = vmul.u32 %v545, 18
      %v547 = vsub.s32 %v541, %v546
      %v548 = vsub.s32 0, %v547
      %v549 = vsel %vm539, %v548, %v547
      %vm550 = vcmp.lt.s32.totalorder %v204, 0
      %v551 = vsub.s32 0, %v204
      %v552 = vsel %vm550, %v551, %v204
      %v553 = vmul.u32.u64.compose %v552, 3817748708
      %v554 = vextract.low.u32 %v553
      %v555 = vextract.high.u32 %v553
      %v556 = vshrl.u32 %v555, 4
      %v557 = vmul.u32 %v556, 18
      %v558 = vsub.s32 %v552, %v557
      %v559 = vsub.s32 0, %v558
      %v560 = vsel %vm550, %v559, %v558
      %vm561 = vcmp.lt.s32.totalorder %v205, 0
      %v562 = vsub.s32 0, %v205
      %v563 = vsel %vm561, %v562, %v205
      %v564 = vmul.u32.u64.compose %v563, 3817748708
      %v565 = vextract.low.u32 %v564
      %v566 = vextract.high.u32 %v564
      %v567 = vshrl.u32 %v566, 4
      %v568 = vmul.u32 %v567, 18
      %v569 = vsub.s32 %v563, %v568
      %v570 = vsub.s32 0, %v569
      %v571 = vsel %vm561, %v570, %v569
      %vm572 = vcmp.lt.s32.totalorder %v206, 0
      %v573 = vsub.s32 0, %v206
      %v574 = vsel %vm572, %v573, %v206
      %v575 = vmul.u32.u64.compose %v574, 3817748708
      %v576 = vextract.low.u32 %v575
      %v577 = vextract.high.u32 %v575
      %v578 = vshrl.u32 %v577, 4
      %v579 = vmul.u32 %v578, 18
      %v580 = vsub.s32 %v574, %v579
      %v581 = vsub.s32 0, %v580
      %v582 = vsel %vm572, %v581, %v580
      %vm583 = vcmp.lt.s32.totalorder %v207, 0
      %v584 = vsub.s32 0, %v207
      %v585 = vsel %vm583, %v584, %v207
      %v586 = vmul.u32.u64.compose %v585, 3817748708
      %v587 = vextract.low.u32 %v586
      %v588 = vextract.high.u32 %v586
      %v589 = vshrl.u32 %v588, 4
      %v590 = vmul.u32 %v589, 18
      %v591 = vsub.s32 %v585, %v590
      %v592 = vsub.s32 0, %v591
      %v593 = vsel %vm583, %v592, %v591
      %vm594 = vcmp.lt.s32.totalorder %v208, 0
      %v595 = vsub.s32 0, %v208
      %v596 = vsel %vm594, %v595, %v208
      %v597 = vmul.u32.u64.compose %v596, 3817748708
      %v598 = vextract.low.u32 %v597
      %v599 = vextract.high.u32 %v597
      %v600 = vshrl.u32 %v599, 4
      %v601 = vmul.u32 %v600, 18
      %v602 = vsub.s32 %v596, %v601
      %v603 = vsub.s32 0, %v602
      %v604 = vsel %vm594, %v603, %v602
      %vm605 = vcmp.ne.s32.totalorder %v219, 0
      %vm606 = vcmp.ne.s32.totalorder %v230, 0
      %vm607 = vcmp.ne.s32.totalorder %v241, 0
      %vm608 = vcmp.ne.s32.totalorder %v252, 0
      %vm609 = vcmp.ne.s32.totalorder %v263, 0
      %vm610 = vcmp.ne.s32.totalorder %v274, 0
      %vm611 = vcmp.ne.s32.totalorder %v285, 0
      %vm612 = vcmp.ne.s32.totalorder %v296, 0
      %vm613 = vcmp.ne.s32.totalorder %v307, 0
      %vm614 = vcmp.ne.s32.totalorder %v318, 0
      %vm615 = vcmp.ne.s32.totalorder %v329, 0
      %vm616 = vcmp.ne.s32.totalorder %v340, 0
      %vm617 = vcmp.ne.s32.totalorder %v351, 0
      %vm618 = vcmp.ne.s32.totalorder %v362, 0
      %vm619 = vcmp.ne.s32.totalorder %v373, 0
      %vm620 = vcmp.ne.s32.totalorder %v384, 0
      %vm621 = vcmp.ne.s32.totalorder %v395, 0
      %vm622 = vcmp.ne.s32.totalorder %v406, 0
      %vm623 = vcmp.ne.s32.totalorder %v417, 0
      %vm624 = vcmp.ne.s32.totalorder %v428, 0
      %vm625 = vcmp.ne.s32.totalorder %v439, 0
      %vm626 = vcmp.ne.s32.totalorder %v450, 0
      %vm627 = vcmp.ne.s32.totalorder %v461, 0
      %vm628 = vcmp.ne.s32.totalorder %v472, 0
      %vm629 = vcmp.ne.s32.totalorder %v483, 0
      %vm630 = vcmp.ne.s32.totalorder %v494, 0
      %vm631 = vcmp.ne.s32.totalorder %v505, 0
      %vm632 = vcmp.ne.s32.totalorder %v516, 0
      %vm633 = vcmp.ne.s32.totalorder %v527, 0
      %vm634 = vcmp.ne.s32.totalorder %v538, 0
      %vm635 = vcmp.ne.s32.totalorder %v549, 0
      %vm636 = vcmp.ne.s32.totalorder %v560, 0
      %vm637 = vcmp.ne.s32.totalorder %v571, 0
      %vm638 = vcmp.ne.s32.totalorder %v582, 0
      %vm639 = vcmp.ne.s32.totalorder %v593, 0
      %vm640 = vcmp.ne.s32.totalorder %v604, 0
      %vm641 = vcmp.lt.s32.totalorder %v219, 0
      %vm642 = vcmp.lt.s32.totalorder %v230, 0
      %vm643 = vcmp.lt.s32.totalorder %v241, 0
      %vm644 = vcmp.lt.s32.totalorder %v252, 0
      %vm645 = vcmp.lt.s32.totalorder %v263, 0
      %vm646 = vcmp.lt.s32.totalorder %v274, 0
      %vm647 = vcmp.lt.s32.totalorder %v285, 0
      %vm648 = vcmp.lt.s32.totalorder %v296, 0
      %vm649 = vcmp.lt.s32.totalorder %v307, 0
      %vm650 = vcmp.lt.s32.totalorder %v318, 0
      %vm651 = vcmp.lt.s32.totalorder %v329, 0
      %vm652 = vcmp.lt.s32.totalorder %v340, 0
      %vm653 = vcmp.lt.s32.totalorder %v351, 0
      %vm654 = vcmp.lt.s32.totalorder %v362, 0
      %vm655 = vcmp.lt.s32.totalorder %v373, 0
      %vm656 = vcmp.lt.s32.totalorder %v384, 0
      %vm657 = vcmp.lt.s32.totalorder %v395, 0
      %vm658 = vcmp.lt.s32.totalorder %v406, 0
      %vm659 = vcmp.lt.s32.totalorder %v417, 0
      %vm660 = vcmp.lt.s32.totalorder %v428, 0
      %vm661 = vcmp.lt.s32.totalorder %v439, 0
      %vm662 = vcmp.lt.s32.totalorder %v450, 0
      %vm663 = vcmp.lt.s32.totalorder %v461, 0
      %vm664 = vcmp.lt.s32.totalorder %v472, 0
      %vm665 = vcmp.lt.s32.totalorder %v483, 0
      %vm666 = vcmp.lt.s32.totalorder %v494, 0
      %vm667 = vcmp.lt.s32.totalorder %v505, 0
      %vm668 = vcmp.lt.s32.totalorder %v516, 0
      %vm669 = vcmp.lt.s32.totalorder %v527, 0
      %vm670 = vcmp.lt.s32.totalorder %v538, 0
      %vm671 = vcmp.lt.s32.totalorder %v549, 0
      %vm672 = vcmp.lt.s32.totalorder %v560, 0
      %vm673 = vcmp.lt.s32.totalorder %v571, 0
      %vm674 = vcmp.lt.s32.totalorder %v582, 0
      %vm675 = vcmp.lt.s32.totalorder %v593, 0
      %vm676 = vcmp.lt.s32.totalorder %v604, 0
      %vm677 = vmand %vm641, %vm605
      %vm678 = vmand %vm642, %vm606
      %vm679 = vmand %vm643, %vm607
      %vm680 = vmand %vm644, %vm608
      %vm681 = vmand %vm645, %vm609
      %vm682 = vmand %vm646, %vm610
      %vm683 = vmand %vm647, %vm611
      %vm684 = vmand %vm648, %vm612
      %vm685 = vmand %vm649, %vm613
      %vm686 = vmand %vm650, %vm614
      %vm687 = vmand %vm651, %vm615
      %vm688 = vmand %vm652, %vm616
      %vm689 = vmand %vm653, %vm617
      %vm690 = vmand %vm654, %vm618
      %vm691 = vmand %vm655, %vm619
      %vm692 = vmand %vm656, %vm620
      %vm693 = vmand %vm657, %vm621
      %vm694 = vmand %vm658, %vm622
      %vm695 = vmand %vm659, %vm623
      %vm696 = vmand %vm660, %vm624
      %vm697 = vmand %vm661, %vm625
      %vm698 = vmand %vm662, %vm626
      %vm699 = vmand %vm663, %vm627
      %vm700 = vmand %vm664, %vm628
      %vm701 = vmand %vm665, %vm629
      %vm702 = vmand %vm666, %vm630
      %vm703 = vmand %vm667, %vm631
      %vm704 = vmand %vm668, %vm632
      %vm705 = vmand %vm669, %vm633
      %vm706 = vmand %vm670, %vm634
      %vm707 = vmand %vm671, %vm635
      %vm708 = vmand %vm672, %vm636
      %vm709 = vmand %vm673, %vm637
      %vm710 = vmand %vm674, %vm638
      %vm711 = vmand %vm675, %vm639
      %vm712 = vmand %vm676, %vm640
      %v713 = vadd.s32 %v219, 18
      %v714 = vadd.s32 %v230, 18
      %v715 = vadd.s32 %v241, 18
      %v716 = vadd.s32 %v252, 18
      %v717 = vadd.s32 %v263, 18
      %v718 = vadd.s32 %v274, 18
      %v719 = vadd.s32 %v285, 18
      %v720 = vadd.s32 %v296, 18
      %v721 = vadd.s32 %v307, 18
      %v722 = vadd.s32 %v318, 18
      %v723 = vadd.s32 %v329, 18
      %v724 = vadd.s32 %v340, 18
      %v725 = vadd.s32 %v351, 18
      %v726 = vadd.s32 %v362, 18
      %v727 = vadd.s32 %v373, 18
      %v728 = vadd.s32 %v384, 18
      %v729 = vadd.s32 %v395, 18
      %v730 = vadd.s32 %v406, 18
      %v731 = vadd.s32 %v417, 18
      %v732 = vadd.s32 %v428, 18
      %v733 = vadd.s32 %v439, 18
      %v734 = vadd.s32 %v450, 18
      %v735 = vadd.s32 %v461, 18
      %v736 = vadd.s32 %v472, 18
      %v737 = vadd.s32 %v483, 18
      %v738 = vadd.s32 %v494, 18
      %v739 = vadd.s32 %v505, 18
      %v740 = vadd.s32 %v516, 18
      %v741 = vadd.s32 %v527, 18
      %v742 = vadd.s32 %v538, 18
      %v743 = vadd.s32 %v549, 18
      %v744 = vadd.s32 %v560, 18
      %v745 = vadd.s32 %v571, 18
      %v746 = vadd.s32 %v582, 18
      %v747 = vadd.s32 %v593, 18
      %v748 = vadd.s32 %v604, 18
      %v749 = vsel %vm677, %v713, %v219
      %v750 = vsel %vm678, %v714, %v230
      %v751 = vsel %vm679, %v715, %v241
      %v752 = vsel %vm680, %v716, %v252
      %v753 = vsel %vm681, %v717, %v263
      %v754 = vsel %vm682, %v718, %v274
      %v755 = vsel %vm683, %v719, %v285
      %v756 = vsel %vm684, %v720, %v296
      %v757 = vsel %vm685, %v721, %v307
      %v758 = vsel %vm686, %v722, %v318
      %v759 = vsel %vm687, %v723, %v329
      %v760 = vsel %vm688, %v724, %v340
      %v761 = vsel %vm689, %v725, %v351
      %v762 = vsel %vm690, %v726, %v362
      %v763 = vsel %vm691, %v727, %v373
      %v764 = vsel %vm692, %v728, %v384
      %v765 = vsel %vm693, %v729, %v395
      %v766 = vsel %vm694, %v730, %v406
      %v767 = vsel %vm695, %v731, %v417
      %v768 = vsel %vm696, %v732, %v428
      %v769 = vsel %vm697, %v733, %v439
      %v770 = vsel %vm698, %v734, %v450
      %v771 = vsel %vm699, %v735, %v461
      %v772 = vsel %vm700, %v736, %v472
      %v773 = vsel %vm701, %v737, %v483
      %v774 = vsel %vm702, %v738, %v494
      %v775 = vsel %vm703, %v739, %v505
      %v776 = vsel %vm704, %v740, %v516
      %v777 = vsel %vm705, %v741, %v527
      %v778 = vsel %vm706, %v742, %v538
      %v779 = vsel %vm707, %v743, %v549
      %v780 = vsel %vm708, %v744, %v560
      %v781 = vsel %vm709, %v745, %v571
      %v782 = vsel %vm710, %v746, %v582
      %v783 = vsel %vm711, %v747, %v593
      %v784 = vsel %vm712, %v748, %v604
      %vm785 = vcmp.lt.s32.totalorder %v749, 16
      %vm786 = vcmp.lt.s32.totalorder %v750, 16
      %vm787 = vcmp.lt.s32.totalorder %v751, 16
      %vm788 = vcmp.lt.s32.totalorder %v752, 16
      %vm789 = vcmp.lt.s32.totalorder %v753, 16
      %vm790 = vcmp.lt.s32.totalorder %v754, 16
      %vm791 = vcmp.lt.s32.totalorder %v755, 16
      %vm792 = vcmp.lt.s32.totalorder %v756, 16
      %vm793 = vcmp.lt.s32.totalorder %v757, 16
      %vm794 = vcmp.lt.s32.totalorder %v758, 16
      %vm795 = vcmp.lt.s32.totalorder %v759, 16
      %vm796 = vcmp.lt.s32.totalorder %v760, 16
      %vm797 = vcmp.lt.s32.totalorder %v761, 16
      %vm798 = vcmp.lt.s32.totalorder %v762, 16
      %vm799 = vcmp.lt.s32.totalorder %v763, 16
      %vm800 = vcmp.lt.s32.totalorder %v764, 16
      %vm801 = vcmp.lt.s32.totalorder %v765, 16
      %vm802 = vcmp.lt.s32.totalorder %v766, 16
      %vm803 = vcmp.lt.s32.totalorder %v767, 16
      %vm804 = vcmp.lt.s32.totalorder %v768, 16
      %vm805 = vcmp.lt.s32.totalorder %v769, 16
      %vm806 = vcmp.lt.s32.totalorder %v770, 16
      %vm807 = vcmp.lt.s32.totalorder %v771, 16
      %vm808 = vcmp.lt.s32.totalorder %v772, 16
      %vm809 = vcmp.lt.s32.totalorder %v773, 16
      %vm810 = vcmp.lt.s32.totalorder %v774, 16
      %vm811 = vcmp.lt.s32.totalorder %v775, 16
      %vm812 = vcmp.lt.s32.totalorder %v776, 16
      %vm813 = vcmp.lt.s32.totalorder %v777, 16
      %vm814 = vcmp.lt.s32.totalorder %v778, 16
      %vm815 = vcmp.lt.s32.totalorder %v779, 16
      %vm816 = vcmp.lt.s32.totalorder %v780, 16
      %vm817 = vcmp.lt.s32.totalorder %v781, 16
      %vm818 = vcmp.lt.s32.totalorder %v782, 16
      %vm819 = vcmp.lt.s32.totalorder %v783, 16
      %vm820 = vcmp.lt.s32.totalorder %v784, 16
      %v821 = vld [vmem:[%s165] sm:$0xf]
      %v822 = vld [vmem:[%s165 + $0x4] sm:$0xf]
      %v823 = vld [vmem:[%s165 + $0x8] sm:$0xf]
      %v824 = vld [vmem:[%s165 + $0xc] sm:$0xf]
      %v825 = vld [vmem:[%s165 + $0x10] sm:$0xf]
      %v826 = vld [vmem:[%s165 + $0x14] sm:$0xf]
      %v827 = vld [vmem:[%s165 + $0x18] sm:$0xf]
      %v828 = vld [vmem:[%s165 + $0x1c] sm:$0xf]
      %v829 = vld [vmem:[%s165 + $0x20] sm:$0xf]
      %v830 = vld [vmem:[%s165 + $0x24] sm:$0xf]
      %v831 = vld [vmem:[%s165 + $0x28] sm:$0xf]
      %v832 = vld [vmem:[%s165 + $0x2c] sm:$0xf]
      %v833 = vld [vmem:[%s165 + $0x30] sm:$0xf]
      %v834 = vld [vmem:[%s165 + $0x34] sm:$0xf]
      %v835 = vld [vmem:[%s165 + $0x38] sm:$0xf]
      %v836 = vld [vmem:[%s165 + $0x3c] sm:$0xf]
      %v837 = vld [vmem:[%s165 + $0x40] sm:$0xf]
      %v838 = vld [vmem:[%s165 + $0x44] sm:$0xf]
      %v839 = vld [vmem:[%s165 + $0x48] sm:$0xf]
      %v840 = vld [vmem:[%s165 + $0x4c] sm:$0xf]
      %v841 = vld [vmem:[%s165 + $0x50] sm:$0xf]
      %v842 = vld [vmem:[%s165 + $0x54] sm:$0xf]
      %v843 = vld [vmem:[%s165 + $0x58] sm:$0xf]
      %v844 = vld [vmem:[%s165 + $0x5c] sm:$0xf]
      %v845 = vld [vmem:[%s165 + $0x60] sm:$0xf]
      %v846 = vld [vmem:[%s165 + $0x64] sm:$0xf]
      %v847 = vld [vmem:[%s165 + $0x68] sm:$0xf]
      %v848 = vld [vmem:[%s165 + $0x6c] sm:$0xf]
      %v849 = vld [vmem:[%s165 + $0x70] sm:$0xf]
      %v850 = vld [vmem:[%s165 + $0x74] sm:$0xf]
      %v851 = vld [vmem:[%s165 + $0x78] sm:$0xf]
      %v852 = vld [vmem:[%s165 + $0x7c] sm:$0xf]
      %v853 = vld [vmem:[%s165 + $0x80] sm:$0xf]
      %v854 = vld [vmem:[%s165 + $0x84] sm:$0xf]
      %v855 = vld [vmem:[%s165 + $0x88] sm:$0xf]
      %v856 = vld [vmem:[%s165 + $0x8c] sm:$0xf]
      %v857 = vld [vmem:[%s1] sm:$0xf]
      %v858 = vld [vmem:[%s1 + $0x4] sm:$0xf]
      %v859 = vld [vmem:[%s1 + $0x8] sm:$0xf]
      %v860 = vld [vmem:[%s1 + $0xc] sm:$0xf]
      %v861 = vld [vmem:[%s1 + $0x10] sm:$0xf]
      %v862 = vld [vmem:[%s1 + $0x14] sm:$0xf]
      %v863 = vld [vmem:[%s1 + $0x18] sm:$0xf]
      %v864 = vld [vmem:[%s1 + $0x1c] sm:$0xf]
      %v865 = vld [vmem:[%s1 + $0x20] sm:$0xf]
      %v866 = vld [vmem:[%s1 + $0x24] sm:$0xf]
      %v867 = vld [vmem:[%s1 + $0x28] sm:$0xf]
      %v868 = vld [vmem:[%s1 + $0x2c] sm:$0xf]
      %v869 = vld [vmem:[%s1 + $0x30] sm:$0xf]
      %v870 = vld [vmem:[%s1 + $0x34] sm:$0xf]
      %v871 = vld [vmem:[%s1 + $0x38] sm:$0xf]
      %v872 = vld [vmem:[%s1 + $0x3c] sm:$0xf]
      %v909 = vunpack.c.l.b16 %v821
      %v910 = vunpack.c.l.b16 %v822
      %v911 = vunpack.c.l.b16 %v823
      %v912 = vunpack.c.l.b16 %v824
      %v913 = vunpack.c.l.b16 %v825
      %v914 = vunpack.c.l.b16 %v826
      %v915 = vunpack.c.l.b16 %v827
      %v916 = vunpack.c.l.b16 %v828
      %v917 = vunpack.c.l.b16 %v829
      %v918 = vunpack.c.l.b16 %v830
      %v919 = vunpack.c.l.b16 %v831
      %v920 = vunpack.c.l.b16 %v832
      %v921 = vunpack.c.l.b16 %v833
      %v922 = vunpack.c.l.b16 %v834
      %v923 = vunpack.c.l.b16 %v835
      %v924 = vunpack.c.l.b16 %v836
      %v925 = vunpack.c.l.b16 %v837
      %v926 = vunpack.c.l.b16 %v838
      %v927 = vunpack.c.l.b16 %v839
      %v928 = vunpack.c.l.b16 %v840
      %v929 = vunpack.c.l.b16 %v841
      %v930 = vunpack.c.l.b16 %v842
      %v931 = vunpack.c.l.b16 %v843
      %v932 = vunpack.c.l.b16 %v844
      %v933 = vunpack.c.l.b16 %v845
      %v934 = vunpack.c.l.b16 %v846
      %v935 = vunpack.c.l.b16 %v847
      %v936 = vunpack.c.l.b16 %v848
      %v937 = vunpack.c.l.b16 %v849
      %v938 = vunpack.c.l.b16 %v850
      %v939 = vunpack.c.l.b16 %v851
      %v940 = vunpack.c.l.b16 %v852
      %v941 = vunpack.c.l.b16 %v853
      %v942 = vunpack.c.l.b16 %v854
      %v943 = vunpack.c.l.b16 %v855
      %v944 = vunpack.c.l.b16 %v856
      %v945 = vpack.c.b16 %v910, %v909
      %v946 = vpack.c.b16 %v912, %v911
      %v947 = vpack.c.b16 %v914, %v913
      %v948 = vpack.c.b16 %v916, %v915
      %v949 = vpack.c.b16 %v918, %v917
      %v950 = vpack.c.b16 %v920, %v919
      %v951 = vpack.c.b16 %v922, %v921
      %v952 = vpack.c.b16 %v924, %v923
      %v953 = vpack.c.b16 %v926, %v925
      %v954 = vpack.c.b16 %v928, %v927
      %v955 = vpack.c.b16 %v930, %v929
      %v956 = vpack.c.b16 %v932, %v931
      %v957 = vpack.c.b16 %v934, %v933
      %v958 = vpack.c.b16 %v936, %v935
      %v959 = vpack.c.b16 %v938, %v937
      %v960 = vpack.c.b16 %v940, %v939
      %v961 = vpack.c.b16 %v942, %v941
      %v962 = vpack.c.b16 %v944, %v943
      %v997 = vunpack.c.l.b16 %v857
      %v998 = vunpack.c.l.b16 %v858
      %v999 = vunpack.c.l.b16 %v859
      %v1000 = vunpack.c.l.b16 %v860
      %v1001 = vunpack.c.l.b16 %v861
      %v1002 = vunpack.c.l.b16 %v862
      %v1003 = vunpack.c.l.b16 %v863
      %v1004 = vunpack.c.l.b16 %v864
      %v1005 = vunpack.c.l.b16 %v865
      %v1006 = vunpack.c.l.b16 %v866
      %v1007 = vunpack.c.l.b16 %v867
      %v1008 = vunpack.c.l.b16 %v868
      %v1009 = vunpack.c.l.b16 %v869
      %v1010 = vunpack.c.l.b16 %v870
      %v1011 = vunpack.c.l.b16 %v871
      %v1012 = vunpack.c.l.b16 %v872
      %v1013 = vpack.c.b16 %v998, %v997
      %v1014 = vpack.c.b16 %v1000, %v999
      %v1015 = vpack.c.b16 %v1002, %v1001
      %v1016 = vpack.c.b16 %v1004, %v1003
      %v1017 = vpack.c.b16 %v1006, %v1005
      %v1018 = vpack.c.b16 %v1008, %v1007
      %v1019 = vpack.c.b16 %v1010, %v1009
      %v1020 = vpack.c.b16 %v1012, %v1011
      %1029 = vmatprep.subr.bf16.mxu0 0
      %1030 = vmatpush1.bf16.msra.mxu0 %v1013
      %1031 = vmatprep.subr.bf16.mxu0 0
      %1032 = vmatpush1.bf16.msra.mxu0 %v1014
      %1033 = vmatprep.subr.bf16.mxu0 0
      %1034 = vmatpush1.bf16.msra.mxu0 %v1015
      %1035 = vmatprep.subr.bf16.mxu0 0
      %1036 = vmatpush1.bf16.msra.mxu0 %v1016
      %1037 = vmatprep.subr.bf16.mxu0 0
      %1038 = vmatpush1.bf16.msra.mxu0 %v1017
      %1039 = vmatprep.subr.bf16.mxu0 0
      %1040 = vmatpush1.bf16.msra.mxu0 %v1018
      %1041 = vmatprep.subr.bf16.mxu0 0
      %1042 = vmatpush1.bf16.msra.mxu0 %v1019
      %1043 = vmatprep.subr.bf16.mxu0 0
      %1044 = vmatpush1.bf16.msra.mxu0 %v1020
      %1045 = vmatprep.subr.bf16.mxu0 0
      %1046 = vmatpush1.bf16.msra.mxu0 0
      %1047 = vmatprep.subr.bf16.mxu0 0
      %1048 = vmatpush1.bf16.msra.mxu0 0
      %1049 = vmatprep.subr.bf16.mxu0 0
      %1050 = vmatpush1.bf16.msra.mxu0 0
      %1051 = vmatprep.subr.bf16.mxu0 0
      %1052 = vmatpush1.bf16.msra.mxu0 0
      %1053 = vmatprep.subr.bf16.mxu0 0
      %1054 = vmatpush1.bf16.msra.mxu0 0
      %1055 = vmatprep.subr.bf16.mxu0 0
      %1056 = vmatpush1.bf16.msra.mxu0 0
      %1057 = vmatprep.subr.bf16.mxu0 0
      %1058 = vmatpush1.bf16.msra.mxu0 0
      %1059 = vmatprep.subr.bf16.mxu0 0
      %1060 = vmatpush1.bf16.msra.mxu0 0
      %1061 = vmatprep.mubr.bf16.mxu0 0
      %1062 = vmatmul.mubr.bf16.gmra.mrb[0].mxu0 %v945
      %v1063 = vpop.f32.mrb[0].mxu0
      %v1064 = vadd.f32 0.0, %v1063
      %v1065 = vpop.f32.mrb[0].mxu0
      %v1066 = vpop.f32.mrb[0].mxu0
      %v1067 = vadd.f32 0.0, %v1066
      %v1068 = vpop.f32.mrb[0].mxu0
      %1069 = vmatprep.mubr.bf16.mxu0 0
      %1070 = vmatmul.mubr.bf16.gmra.mrb[0].mxu0 %v946
      %v1071 = vpop.f32.mrb[0].mxu0
      %v1072 = vadd.f32 0.0, %v1071
      %v1073 = vpop.f32.mrb[0].mxu0
      %v1074 = vpop.f32.mrb[0].mxu0
      %v1075 = vadd.f32 0.0, %v1074
      %v1076 = vpop.f32.mrb[0].mxu0
      %1077 = vmatprep.mubr.bf16.mxu0 0
      %1078 = vmatmul.mubr.bf16.gmra.mrb[0].mxu0 %v947
      %v1079 = vpop.f32.mrb[0].mxu0
      %v1080 = vadd.f32 0.0, %v1079
      %v1081 = vpop.f32.mrb[0].mxu0
      %v1082 = vpop.f32.mrb[0].mxu0
      %v1083 = vadd.f32 0.0, %v1082
      %v1084 = vpop.f32.mrb[0].mxu0
      %1085 = vmatprep.mubr.bf16.mxu0 0
      %1086 = vmatmul.mubr.bf16.gmra.mrb[0].mxu0 %v948
      %v1087 = vpop.f32.mrb[0].mxu0
      %v1088 = vadd.f32 0.0, %v1087
      %v1089 = vpop.f32.mrb[0].mxu0
      %v1090 = vpop.f32.mrb[0].mxu0
      %v1091 = vadd.f32 0.0, %v1090
      %v1092 = vpop.f32.mrb[0].mxu0
      %1093 = vmatprep.mubr.bf16.mxu0 0
      %1094 = vmatmul.mubr.bf16.gmra.mrb[0].mxu0 %v949
      %v1095 = vpop.f32.mrb[0].mxu0
      %v1096 = vadd.f32 0.0, %v1095
      %v1097 = vpop.f32.mrb[0].mxu0
      %v1098 = vpop.f32.mrb[0].mxu0
      %v1099 = vadd.f32 0.0, %v1098
      %v1100 = vpop.f32.mrb[0].mxu0
      %1101 = vmatprep.mubr.bf16.mxu0 0
      %1102 = vmatmul.mubr.bf16.gmra.mrb[0].mxu0 %v950
      %v1103 = vpop.f32.mrb[0].mxu0
      %v1104 = vadd.f32 0.0, %v1103
      %v1105 = vpop.f32.mrb[0].mxu0
      %v1106 = vpop.f32.mrb[0].mxu0
      %v1107 = vadd.f32 0.0, %v1106
      %v1108 = vpop.f32.mrb[0].mxu0
      %1109 = vmatprep.mubr.bf16.mxu0 0
      %1110 = vmatmul.mubr.bf16.gmra.mrb[0].mxu0 %v951
      %v1111 = vpop.f32.mrb[0].mxu0
      %v1112 = vadd.f32 0.0, %v1111
      %v1113 = vpop.f32.mrb[0].mxu0
      %v1114 = vpop.f32.mrb[0].mxu0
      %v1115 = vadd.f32 0.0, %v1114
      %v1116 = vpop.f32.mrb[0].mxu0
      %1117 = vmatprep.mubr.bf16.mxu0 0
      %1118 = vmatmul.mubr.bf16.gmra.mrb[0].mxu0 %v952
      %v1119 = vpop.f32.mrb[0].mxu0
      %v1120 = vadd.f32 0.0, %v1119
      %v1121 = vpop.f32.mrb[0].mxu0
      %v1122 = vpop.f32.mrb[0].mxu0
      %v1123 = vadd.f32 0.0, %v1122
      %v1124 = vpop.f32.mrb[0].mxu0
      %1125 = vmatprep.mubr.bf16.mxu0 0
      %1126 = vmatmul.mubr.bf16.gmra.mrb[0].mxu0 %v953
      %v1127 = vpop.f32.mrb[0].mxu0
      %v1128 = vadd.f32 0.0, %v1127
      %v1129 = vpop.f32.mrb[0].mxu0
      %v1130 = vpop.f32.mrb[0].mxu0
      %v1131 = vadd.f32 0.0, %v1130
      %v1132 = vpop.f32.mrb[0].mxu0
      %1133 = vmatprep.mubr.bf16.mxu0 0
      %1134 = vmatmul.mubr.bf16.gmra.mrb[0].mxu0 %v954
      %v1135 = vpop.f32.mrb[0].mxu0
      %v1136 = vadd.f32 0.0, %v1135
      %v1137 = vpop.f32.mrb[0].mxu0
      %v1138 = vpop.f32.mrb[0].mxu0
      %v1139 = vadd.f32 0.0, %v1138
      %v1140 = vpop.f32.mrb[0].mxu0
      %1141 = vmatprep.mubr.bf16.mxu0 0
      %1142 = vmatmul.mubr.bf16.gmra.mrb[0].mxu0 %v955
      %v1143 = vpop.f32.mrb[0].mxu0
      %v1144 = vadd.f32 0.0, %v1143
      %v1145 = vpop.f32.mrb[0].mxu0
      %v1146 = vpop.f32.mrb[0].mxu0
      %v1147 = vadd.f32 0.0, %v1146
      %v1148 = vpop.f32.mrb[0].mxu0
      %1149 = vmatprep.mubr.bf16.mxu0 0
      %1150 = vmatmul.mubr.bf16.gmra.mrb[0].mxu0 %v956
      %v1151 = vpop.f32.mrb[0].mxu0
      %v1152 = vadd.f32 0.0, %v1151
      %v1153 = vpop.f32.mrb[0].mxu0
      %v1154 = vpop.f32.mrb[0].mxu0
      %v1155 = vadd.f32 0.0, %v1154
      %v1156 = vpop.f32.mrb[0].mxu0
      %1157 = vmatprep.mubr.bf16.mxu0 0
      %1158 = vmatmul.mubr.bf16.gmra.mrb[0].mxu0 %v957
      %v1159 = vpop.f32.mrb[0].mxu0
      %v1160 = vadd.f32 0.0, %v1159
      %v1161 = vpop.f32.mrb[0].mxu0
      %v1162 = vpop.f32.mrb[0].mxu0
      %v1163 = vadd.f32 0.0, %v1162
      %v1164 = vpop.f32.mrb[0].mxu0
      %1165 = vmatprep.mubr.bf16.mxu0 0
      %1166 = vmatmul.mubr.bf16.gmra.mrb[0].mxu0 %v958
      %v1167 = vpop.f32.mrb[0].mxu0
      %v1168 = vadd.f32 0.0, %v1167
      %v1169 = vpop.f32.mrb[0].mxu0
      %v1170 = vpop.f32.mrb[0].mxu0
      %v1171 = vadd.f32 0.0, %v1170
      %v1172 = vpop.f32.mrb[0].mxu0
      %1173 = vmatprep.mubr.bf16.mxu0 0
      %1174 = vmatmul.mubr.bf16.gmra.mrb[0].mxu0 %v959
      %v1175 = vpop.f32.mrb[0].mxu0
      %v1176 = vadd.f32 0.0, %v1175
      %v1177 = vpop.f32.mrb[0].mxu0
      %v1178 = vpop.f32.mrb[0].mxu0
      %v1179 = vadd.f32 0.0, %v1178
      %v1180 = vpop.f32.mrb[0].mxu0
      %1181 = vmatprep.mubr.bf16.mxu0 0
      %1182 = vmatmul.mubr.bf16.gmra.mrb[0].mxu0 %v960
      %v1183 = vpop.f32.mrb[0].mxu0
      %v1184 = vadd.f32 0.0, %v1183
      %v1185 = vpop.f32.mrb[0].mxu0
      %v1186 = vpop.f32.mrb[0].mxu0
      %v1187 = vadd.f32 0.0, %v1186
      %v1188 = vpop.f32.mrb[0].mxu0
      %1189 = vmatprep.mubr.bf16.mxu0 0
      %1190 = vmatmul.mubr.bf16.gmra.mrb[0].mxu0 %v961
      %v1191 = vpop.f32.mrb[0].mxu0
      %v1192 = vadd.f32 0.0, %v1191
      %v1193 = vpop.f32.mrb[0].mxu0
      %v1194 = vpop.f32.mrb[0].mxu0
      %v1195 = vadd.f32 0.0, %v1194
      %v1196 = vpop.f32.mrb[0].mxu0
      %1197 = vmatprep.mubr.bf16.mxu0 0
      %1198 = vmatmul.mubr.bf16.gmra.mrb[0].mxu0 %v962
      %v1199 = vpop.f32.mrb[0].mxu0
      %v1200 = vadd.f32 0.0, %v1199
      %v1201 = vpop.f32.mrb[0].mxu0
      %v1202 = vpop.f32.mrb[0].mxu0
      %v1203 = vadd.f32 0.0, %v1202
      %v1204 = vpop.f32.mrb[0].mxu0
      %1205 = vdwg.mxu0
      %v1206 = vsel %vm785, 1, 0
      %v1207 = vsel %vm786, 1, 0
      %v1208 = vsel %vm787, 1, 0
      %v1209 = vsel %vm788, 1, 0
      %v1210 = vsel %vm789, 1, 0
      %v1211 = vsel %vm790, 1, 0
      %v1212 = vsel %vm791, 1, 0
      %v1213 = vsel %vm792, 1, 0
      %v1214 = vsel %vm793, 1, 0
      %v1215 = vsel %vm794, 1, 0
      %v1216 = vsel %vm795, 1, 0
      %v1217 = vsel %vm796, 1, 0
      %v1218 = vsel %vm797, 1, 0
      %v1219 = vsel %vm798, 1, 0
      %v1220 = vsel %vm799, 1, 0
      %v1221 = vsel %vm800, 1, 0
      %v1222 = vsel %vm801, 1, 0
      %v1223 = vsel %vm802, 1, 0
      %v1224 = vsel %vm803, 1, 0
      %v1225 = vsel %vm804, 1, 0
      %v1226 = vsel %vm805, 1, 0
      %v1227 = vsel %vm806, 1, 0
      %v1228 = vsel %vm807, 1, 0
      %v1229 = vsel %vm808, 1, 0
      %v1230 = vsel %vm809, 1, 0
      %v1231 = vsel %vm810, 1, 0
      %v1232 = vsel %vm811, 1, 0
      %v1233 = vsel %vm812, 1, 0
      %v1234 = vsel %vm813, 1, 0
      %v1235 = vsel %vm814, 1, 0
      %v1236 = vsel %vm815, 1, 0
      %v1237 = vsel %vm816, 1, 0
      %v1238 = vsel %vm817, 1, 0
      %v1239 = vsel %vm818, 1, 0
      %v1240 = vsel %vm819, 1, 0
      %v1241 = vsel %vm820, 1, 0
      %vm1242 = vcmp.eq.s32.totalorder %v1206, 1
      %vm1243 = vcmp.eq.s32.totalorder %v1207, 1
      %vm1244 = vcmp.eq.s32.totalorder %v1208, 1
      %vm1245 = vcmp.eq.s32.totalorder %v1209, 1
      %vm1246 = vcmp.eq.s32.totalorder %v1210, 1
      %vm1247 = vcmp.eq.s32.totalorder %v1211, 1
      %vm1248 = vcmp.eq.s32.totalorder %v1212, 1
      %vm1249 = vcmp.eq.s32.totalorder %v1213, 1
      %vm1250 = vcmp.eq.s32.totalorder %v1214, 1
      %vm1251 = vcmp.eq.s32.totalorder %v1215, 1
      %vm1252 = vcmp.eq.s32.totalorder %v1216, 1
      %vm1253 = vcmp.eq.s32.totalorder %v1217, 1
      %vm1254 = vcmp.eq.s32.totalorder %v1218, 1
      %vm1255 = vcmp.eq.s32.totalorder %v1219, 1
      %vm1256 = vcmp.eq.s32.totalorder %v1220, 1
      %vm1257 = vcmp.eq.s32.totalorder %v1221, 1
      %vm1258 = vcmp.eq.s32.totalorder %v1222, 1
      %vm1259 = vcmp.eq.s32.totalorder %v1223, 1
      %vm1260 = vcmp.eq.s32.totalorder %v1224, 1
      %vm1261 = vcmp.eq.s32.totalorder %v1225, 1
      %vm1262 = vcmp.eq.s32.totalorder %v1226, 1
      %vm1263 = vcmp.eq.s32.totalorder %v1227, 1
      %vm1264 = vcmp.eq.s32.totalorder %v1228, 1
      %vm1265 = vcmp.eq.s32.totalorder %v1229, 1
      %vm1266 = vcmp.eq.s32.totalorder %v1230, 1
      %vm1267 = vcmp.eq.s32.totalorder %v1231, 1
      %vm1268 = vcmp.eq.s32.totalorder %v1232, 1
      %vm1269 = vcmp.eq.s32.totalorder %v1233, 1
      %vm1270 = vcmp.eq.s32.totalorder %v1234, 1
      %vm1271 = vcmp.eq.s32.totalorder %v1235, 1
      %vm1272 = vcmp.eq.s32.totalorder %v1236, 1
      %vm1273 = vcmp.eq.s32.totalorder %v1237, 1
      %vm1274 = vcmp.eq.s32.totalorder %v1238, 1
      %vm1275 = vcmp.eq.s32.totalorder %v1239, 1
      %vm1276 = vcmp.eq.s32.totalorder %v1240, 1
      %vm1277 = vcmp.eq.s32.totalorder %v1241, 1
      %v1278 = vsel %vm1242, %v1064, 0.0
      %v1279 = vsel %vm1243, %v1067, 0.0
      %v1280 = vsel %vm1244, %v1072, 0.0
      %v1281 = vsel %vm1245, %v1075, 0.0
      %v1282 = vsel %vm1246, %v1080, 0.0
      %v1283 = vsel %vm1247, %v1083, 0.0
      %v1284 = vsel %vm1248, %v1088, 0.0
      %v1285 = vsel %vm1249, %v1091, 0.0
      %v1286 = vsel %vm1250, %v1096, 0.0
      %v1287 = vsel %vm1251, %v1099, 0.0
      %v1288 = vsel %vm1252, %v1104, 0.0
      %v1289 = vsel %vm1253, %v1107, 0.0
      %v1290 = vsel %vm1254, %v1112, 0.0
      %v1291 = vsel %vm1255, %v1115, 0.0
      %v1292 = vsel %vm1256, %v1120, 0.0
      %v1293 = vsel %vm1257, %v1123, 0.0
      %v1294 = vsel %vm1258, %v1128, 0.0
      %v1295 = vsel %vm1259, %v1131, 0.0
      %v1296 = vsel %vm1260, %v1136, 0.0
      %v1297 = vsel %vm1261, %v1139, 0.0
      %v1298 = vsel %vm1262, %v1144, 0.0
      %v1299 = vsel %vm1263, %v1147, 0.0
      %v1300 = vsel %vm1264, %v1152, 0.0
      %v1301 = vsel %vm1265, %v1155, 0.0
      %v1302 = vsel %vm1266, %v1160, 0.0
      %v1303 = vsel %vm1267, %v1163, 0.0
      %v1304 = vsel %vm1268, %v1168, 0.0
      %v1305 = vsel %vm1269, %v1171, 0.0
      %v1306 = vsel %vm1270, %v1176, 0.0
      %v1307 = vsel %vm1271, %v1179, 0.0
      %v1308 = vsel %vm1272, %v1184, 0.0
      %v1309 = vsel %vm1273, %v1187, 0.0
      %v1310 = vsel %vm1274, %v1192, 0.0
      %v1311 = vsel %vm1275, %v1195, 0.0
      %v1312 = vsel %vm1276, %v1200, 0.0
      %v1313 = vsel %vm1277, %v1203, 0.0
      %v1314 = vadd.f32 %v1278, %v1279
      %v1315 = vadd.f32 %v1314, %v1280
      %v1316 = vadd.f32 %v1315, %v1281
      %v1317 = vadd.f32 %v1316, %v1282
      %v1318 = vadd.f32 %v1317, %v1283
      %v1319 = vadd.f32 %v1318, %v1284
      %v1320 = vadd.f32 %v1319, %v1285
      %v1321 = vadd.f32 %v1320, %v1286
      %v1322 = vadd.f32 %v1321, %v1287
      %v1323 = vadd.f32 %v1322, %v1288
      %v1324 = vadd.f32 %v1323, %v1289
      %v1325 = vadd.f32 %v1324, %v1290
      %v1326 = vadd.f32 %v1325, %v1291
      %v1327 = vadd.f32 %v1326, %v1292
      %v1328 = vadd.f32 %v1327, %v1293
      %v1329 = vadd.f32 %v1328, %v1294
      %v1330 = vadd.f32 %v1329, %v1295
      %v1331 = vadd.f32 %v1330, %v1296
      %v1332 = vadd.f32 %v1331, %v1297
      %v1333 = vadd.f32 %v1332, %v1298
      %v1334 = vadd.f32 %v1333, %v1299
      %v1335 = vadd.f32 %v1334, %v1300
      %v1336 = vadd.f32 %v1335, %v1301
      %v1337 = vadd.f32 %v1336, %v1302
      %v1338 = vadd.f32 %v1337, %v1303
      %v1339 = vadd.f32 %v1338, %v1304
      %v1340 = vadd.f32 %v1339, %v1305
      %v1341 = vadd.f32 %v1340, %v1306
      %v1342 = vadd.f32 %v1341, %v1307
      %v1343 = vadd.f32 %v1342, %v1308
      %v1344 = vadd.f32 %v1343, %v1309
      %v1345 = vadd.f32 %v1344, %v1310
      %v1346 = vadd.f32 %v1345, %v1311
      %v1347 = vadd.f32 %v1346, %v1312
      %v1348 = vadd.f32 %v1347, %v1313
      %v1349 = vrot.slane %v1348, 4
      %v1350 = vadd.f32 %v1348, %v1349
      %v1351 = vrot.slane %v1350, 2
      %v1352 = vadd.f32 %v1350, %v1351
      %v1353 = vrot.slane %v1352, 1
      %v1354 = vadd.f32 %v1352, %v1353
      %v1355 = vmul.f32 %v1278, %v1278
      %v1356 = vmul.f32 %v1279, %v1279
      %v1357 = vmul.f32 %v1280, %v1280
      %v1358 = vmul.f32 %v1281, %v1281
      %v1359 = vmul.f32 %v1282, %v1282
      %v1360 = vmul.f32 %v1283, %v1283
      %v1361 = vmul.f32 %v1284, %v1284
      %v1362 = vmul.f32 %v1285, %v1285
      %v1363 = vmul.f32 %v1286, %v1286
      %v1364 = vmul.f32 %v1287, %v1287
      %v1365 = vmul.f32 %v1288, %v1288
      %v1366 = vmul.f32 %v1289, %v1289
      %v1367 = vmul.f32 %v1290, %v1290
      %v1368 = vmul.f32 %v1291, %v1291
      %v1369 = vmul.f32 %v1292, %v1292
      %v1370 = vmul.f32 %v1293, %v1293
      %v1371 = vmul.f32 %v1294, %v1294
      %v1372 = vmul.f32 %v1295, %v1295
      %v1373 = vmul.f32 %v1296, %v1296
      %v1374 = vmul.f32 %v1297, %v1297
      %v1375 = vmul.f32 %v1298, %v1298
      %v1376 = vmul.f32 %v1299, %v1299
      %v1377 = vmul.f32 %v1300, %v1300
      %v1378 = vmul.f32 %v1301, %v1301
      %v1379 = vmul.f32 %v1302, %v1302
      %v1380 = vmul.f32 %v1303, %v1303
      %v1381 = vmul.f32 %v1304, %v1304
      %v1382 = vmul.f32 %v1305, %v1305
      %v1383 = vmul.f32 %v1306, %v1306
      %v1384 = vmul.f32 %v1307, %v1307
      %v1385 = vmul.f32 %v1308, %v1308
      %v1386 = vmul.f32 %v1309, %v1309
      %v1387 = vmul.f32 %v1310, %v1310
      %v1388 = vmul.f32 %v1311, %v1311
      %v1389 = vmul.f32 %v1312, %v1312
      %v1390 = vmul.f32 %v1313, %v1313
      %v1391 = vadd.f32 %v1355, %v1356
      %v1392 = vadd.f32 %v1391, %v1357
      %v1393 = vadd.f32 %v1392, %v1358
      %v1394 = vadd.f32 %v1393, %v1359
      %v1395 = vadd.f32 %v1394, %v1360
      %v1396 = vadd.f32 %v1395, %v1361
      %v1397 = vadd.f32 %v1396, %v1362
      %v1398 = vadd.f32 %v1397, %v1363
      %v1399 = vadd.f32 %v1398, %v1364
      %v1400 = vadd.f32 %v1399, %v1365
      %v1401 = vadd.f32 %v1400, %v1366
      %v1402 = vadd.f32 %v1401, %v1367
      %v1403 = vadd.f32 %v1402, %v1368
      %v1404 = vadd.f32 %v1403, %v1369
      %v1405 = vadd.f32 %v1404, %v1370
      %v1406 = vadd.f32 %v1405, %v1371
      %v1407 = vadd.f32 %v1406, %v1372
      %v1408 = vadd.f32 %v1407, %v1373
      %v1409 = vadd.f32 %v1408, %v1374
      %v1410 = vadd.f32 %v1409, %v1375
      %v1411 = vadd.f32 %v1410, %v1376
      %v1412 = vadd.f32 %v1411, %v1377
      %v1413 = vadd.f32 %v1412, %v1378
      %v1414 = vadd.f32 %v1413, %v1379
      %v1415 = vadd.f32 %v1414, %v1380
      %v1416 = vadd.f32 %v1415, %v1381
      %v1417 = vadd.f32 %v1416, %v1382
      %v1418 = vadd.f32 %v1417, %v1383
      %v1419 = vadd.f32 %v1418, %v1384
      %v1420 = vadd.f32 %v1419, %v1385
      %v1421 = vadd.f32 %v1420, %v1386
      %v1422 = vadd.f32 %v1421, %v1387
      %v1423 = vadd.f32 %v1422, %v1388
      %v1424 = vadd.f32 %v1423, %v1389
      %v1425 = vadd.f32 %v1424, %v1390
      %v1426 = vrot.slane %v1425, 4
      %v1427 = vadd.f32 %v1425, %v1426
      %v1428 = vrot.slane %v1427, 2
      %v1429 = vadd.f32 %v1427, %v1428
      %v1430 = vrot.slane %v1429, 1
      %v1431 = vadd.f32 %v1429, %v1430
      %v1432 = vmul.f32 %v1354, 0.00390625
      %v1433 = vmul.f32 %v1431, 0.00390625
      %v1434 = vmul.f32 %v1432, %v1432
      %v1435 = vsub.f32 %v1433, %v1434
      %v1436 = vmax.f32 %v1435, 0.0
      %v1437 = vadd.f32 %v1436, 1e-05
      %v1438 = vrsqrt.pop %v1437
      %v1439 = vsub.f32 %v1064, %v1432
      %v1440 = vsub.f32 %v1067, %v1432
      %v1441 = vsub.f32 %v1072, %v1432
      %v1442 = vsub.f32 %v1075, %v1432
      %v1443 = vsub.f32 %v1080, %v1432
      %v1444 = vsub.f32 %v1083, %v1432
      %v1445 = vsub.f32 %v1088, %v1432
      %v1446 = vsub.f32 %v1091, %v1432
      %v1447 = vsub.f32 %v1096, %v1432
      %v1448 = vsub.f32 %v1099, %v1432
      %v1449 = vsub.f32 %v1104, %v1432
      %v1450 = vsub.f32 %v1107, %v1432
      %v1451 = vsub.f32 %v1112, %v1432
      %v1452 = vsub.f32 %v1115, %v1432
      %v1453 = vsub.f32 %v1120, %v1432
      %v1454 = vsub.f32 %v1123, %v1432
      %v1455 = vsub.f32 %v1128, %v1432
      %v1456 = vsub.f32 %v1131, %v1432
      %v1457 = vsub.f32 %v1136, %v1432
      %v1458 = vsub.f32 %v1139, %v1432
      %v1459 = vsub.f32 %v1144, %v1432
      %v1460 = vsub.f32 %v1147, %v1432
      %v1461 = vsub.f32 %v1152, %v1432
      %v1462 = vsub.f32 %v1155, %v1432
      %v1463 = vsub.f32 %v1160, %v1432
      %v1464 = vsub.f32 %v1163, %v1432
      %v1465 = vsub.f32 %v1168, %v1432
      %v1466 = vsub.f32 %v1171, %v1432
      %v1467 = vsub.f32 %v1176, %v1432
      %v1468 = vsub.f32 %v1179, %v1432
      %v1469 = vsub.f32 %v1184, %v1432
      %v1470 = vsub.f32 %v1187, %v1432
      %v1471 = vsub.f32 %v1192, %v1432
      %v1472 = vsub.f32 %v1195, %v1432
      %v1473 = vsub.f32 %v1200, %v1432
      %v1474 = vsub.f32 %v1203, %v1432
      %v1475 = vmul.f32 %v1439, %v1438
      %v1476 = vmul.f32 %v1440, %v1438
      %v1477 = vmul.f32 %v1441, %v1438
      %v1478 = vmul.f32 %v1442, %v1438
      %v1479 = vmul.f32 %v1443, %v1438
      %v1480 = vmul.f32 %v1444, %v1438
      %v1481 = vmul.f32 %v1445, %v1438
      %v1482 = vmul.f32 %v1446, %v1438
      %v1483 = vmul.f32 %v1447, %v1438
      %v1484 = vmul.f32 %v1448, %v1438
      %v1485 = vmul.f32 %v1449, %v1438
      %v1486 = vmul.f32 %v1450, %v1438
      %v1487 = vmul.f32 %v1451, %v1438
      %v1488 = vmul.f32 %v1452, %v1438
      %v1489 = vmul.f32 %v1453, %v1438
      %v1490 = vmul.f32 %v1454, %v1438
      %v1491 = vmul.f32 %v1455, %v1438
      %v1492 = vmul.f32 %v1456, %v1438
      %v1493 = vmul.f32 %v1457, %v1438
      %v1494 = vmul.f32 %v1458, %v1438
      %v1495 = vmul.f32 %v1459, %v1438
      %v1496 = vmul.f32 %v1460, %v1438
      %v1497 = vmul.f32 %v1461, %v1438
      %v1498 = vmul.f32 %v1462, %v1438
      %v1499 = vmul.f32 %v1463, %v1438
      %v1500 = vmul.f32 %v1464, %v1438
      %v1501 = vmul.f32 %v1465, %v1438
      %v1502 = vmul.f32 %v1466, %v1438
      %v1503 = vmul.f32 %v1467, %v1438
      %v1504 = vmul.f32 %v1468, %v1438
      %v1505 = vmul.f32 %v1469, %v1438
      %v1506 = vmul.f32 %v1470, %v1438
      %v1507 = vmul.f32 %v1471, %v1438
      %v1508 = vmul.f32 %v1472, %v1438
      %v1509 = vmul.f32 %v1473, %v1438
      %v1510 = vmul.f32 %v1474, %v1438
      %v1511 = vmax.f32 %v1475, 0.0
      %v1512 = vmax.f32 %v1476, 0.0
      %v1513 = vmax.f32 %v1477, 0.0
      %v1514 = vmax.f32 %v1478, 0.0
      %v1515 = vmax.f32 %v1479, 0.0
      %v1516 = vmax.f32 %v1480, 0.0
      %v1517 = vmax.f32 %v1481, 0.0
      %v1518 = vmax.f32 %v1482, 0.0
      %v1519 = vmax.f32 %v1483, 0.0
      %v1520 = vmax.f32 %v1484, 0.0
      %v1521 = vmax.f32 %v1485, 0.0
      %v1522 = vmax.f32 %v1486, 0.0
      %v1523 = vmax.f32 %v1487, 0.0
      %v1524 = vmax.f32 %v1488, 0.0
      %v1525 = vmax.f32 %v1489, 0.0
      %v1526 = vmax.f32 %v1490, 0.0
      %v1527 = vmax.f32 %v1491, 0.0
      %v1528 = vmax.f32 %v1492, 0.0
      %v1529 = vmax.f32 %v1493, 0.0
      %v1530 = vmax.f32 %v1494, 0.0
      %v1531 = vmax.f32 %v1495, 0.0
      %v1532 = vmax.f32 %v1496, 0.0
      %v1533 = vmax.f32 %v1497, 0.0
      %v1534 = vmax.f32 %v1498, 0.0
      %v1535 = vmax.f32 %v1499, 0.0
      %v1536 = vmax.f32 %v1500, 0.0
      %v1537 = vmax.f32 %v1501, 0.0
      %v1538 = vmax.f32 %v1502, 0.0
      %v1539 = vmax.f32 %v1503, 0.0
      %v1540 = vmax.f32 %v1504, 0.0
      %v1541 = vmax.f32 %v1505, 0.0
      %v1542 = vmax.f32 %v1506, 0.0
      %v1543 = vmax.f32 %v1507, 0.0
      %v1544 = vmax.f32 %v1508, 0.0
      %v1545 = vmax.f32 %v1509, 0.0
      %v1546 = vmax.f32 %v1510, 0.0
      %v1547 = vsel %vm1242, %v1511, 0.0
      %v1548 = vsel %vm1243, %v1512, 0.0
      %v1549 = vsel %vm1244, %v1513, 0.0
      %v1550 = vsel %vm1245, %v1514, 0.0
      %v1551 = vsel %vm1246, %v1515, 0.0
      %v1552 = vsel %vm1247, %v1516, 0.0
      %v1553 = vsel %vm1248, %v1517, 0.0
      %v1554 = vsel %vm1249, %v1518, 0.0
      %v1555 = vsel %vm1250, %v1519, 0.0
      %v1556 = vsel %vm1251, %v1520, 0.0
      %v1557 = vsel %vm1252, %v1521, 0.0
      %v1558 = vsel %vm1253, %v1522, 0.0
      %v1559 = vsel %vm1254, %v1523, 0.0
      %v1560 = vsel %vm1255, %v1524, 0.0
      %v1561 = vsel %vm1256, %v1525, 0.0
      %v1562 = vsel %vm1257, %v1526, 0.0
      %v1563 = vsel %vm1258, %v1527, 0.0
      %v1564 = vsel %vm1259, %v1528, 0.0
      %v1565 = vsel %vm1260, %v1529, 0.0
      %v1566 = vsel %vm1261, %v1530, 0.0
      %v1567 = vsel %vm1262, %v1531, 0.0
      %v1568 = vsel %vm1263, %v1532, 0.0
      %v1569 = vsel %vm1264, %v1533, 0.0
      %v1570 = vsel %vm1265, %v1534, 0.0
      %v1571 = vsel %vm1266, %v1535, 0.0
      %v1572 = vsel %vm1267, %v1536, 0.0
      %v1573 = vsel %vm1268, %v1537, 0.0
      %v1574 = vsel %vm1269, %v1538, 0.0
      %v1575 = vsel %vm1270, %v1539, 0.0
      %v1576 = vsel %vm1271, %v1540, 0.0
      %v1577 = vsel %vm1272, %v1541, 0.0
      %v1578 = vsel %vm1273, %v1542, 0.0
      %v1579 = vsel %vm1274, %v1543, 0.0
      %v1580 = vsel %vm1275, %v1544, 0.0
      %v1581 = vsel %vm1276, %v1545, 0.0
      %v1582 = vsel %vm1277, %v1546, 0.0
      %1583 = vst [vmem:[#allocation2] sm:$0xf] 0
      %1584 = vst [vmem:[#allocation2 + $0x4] sm:$0xf] 0
      %vm1585 = vcmask 1041408
      %vm1586 = vsmask.f32 1280
      %vm1587 = vmand %vm1585, %vm1586
      %v1588 = vld [vmem:[#allocation2 + $0x8] sm:$0x3]
      %v1589 = vsel %vm1587, 0, %v1588
      %1590 = vst [vmem:[#allocation2 + $0x8] sm:$0x3] %v1589
      %vm1591 = vcmask 1043457
      %vm1592 = vsmask.f32 7942
      %vm1593 = vmand %vm1591, %vm1592
      %v1594 = vld [vmem:[#allocation2 + $0x98] sm:$0xe]
      %v1595 = vsel %vm1593, 0, %v1594
      %1596 = vst [vmem:[#allocation2 + $0x98] sm:$0xe] %v1595
      %1597 = vst [vmem:[#allocation2 + $0x9c] sm:$0xf] 0
      %1598 = vst [vmem:[#allocation2 + $0xa0] sm:$0xf] 0
      %v1599 = vpack.c.bf16 %v1548, %v1547
      %v1600 = vpack.c.bf16 %v1550, %v1549
      %v1601 = vpack.c.bf16 %v1552, %v1551
      %v1602 = vpack.c.bf16 %v1554, %v1553
      %v1603 = vpack.c.bf16 %v1556, %v1555
      %v1604 = vpack.c.bf16 %v1558, %v1557
      %v1605 = vpack.c.bf16 %v1560, %v1559
      %v1606 = vpack.c.bf16 %v1562, %v1561
      %v1607 = vpack.c.bf16 %v1564, %v1563
      %v1608 = vpack.c.bf16 %v1566, %v1565
      %v1609 = vpack.c.bf16 %v1568, %v1567
      %v1610 = vpack.c.bf16 %v1570, %v1569
      %v1611 = vpack.c.bf16 %v1572, %v1571
      %v1612 = vpack.c.bf16 %v1574, %v1573
      %v1613 = vpack.c.bf16 %v1576, %v1575
      %v1614 = vpack.c.bf16 %v1578, %v1577
      %v1615 = vpack.c.bf16 %v1580, %v1579
      %v1616 = vpack.c.bf16 %v1582, %v1581
      %v1635 = vunpack.c.l.b16 %v1599
      %v1636 = vunpack.c.h.b16 %v1599
      %v1637 = vunpack.c.l.b16 %v1600
      %v1638 = vunpack.c.h.b16 %v1600
      %v1639 = vunpack.c.l.b16 %v1601
      %v1640 = vunpack.c.h.b16 %v1601
      %v1641 = vunpack.c.l.b16 %v1602
      %v1642 = vunpack.c.h.b16 %v1602
      %v1643 = vunpack.c.l.b16 %v1603
      %v1644 = vunpack.c.h.b16 %v1603
      %v1645 = vunpack.c.l.b16 %v1604
      %v1646 = vunpack.c.h.b16 %v1604
      %v1647 = vunpack.c.l.b16 %v1605
      %v1648 = vunpack.c.h.b16 %v1605
      %v1649 = vunpack.c.l.b16 %v1606
      %v1650 = vunpack.c.h.b16 %v1606
      %v1651 = vunpack.c.l.b16 %v1607
      %v1652 = vunpack.c.h.b16 %v1607
      %v1653 = vunpack.c.l.b16 %v1608
      %v1654 = vunpack.c.h.b16 %v1608
      %v1655 = vunpack.c.l.b16 %v1609
      %v1656 = vunpack.c.h.b16 %v1609
      %v1657 = vunpack.c.l.b16 %v1610
      %v1658 = vunpack.c.h.b16 %v1610
      %v1659 = vunpack.c.l.b16 %v1611
      %v1660 = vunpack.c.h.b16 %v1611
      %v1661 = vunpack.c.l.b16 %v1612
      %v1662 = vunpack.c.h.b16 %v1612
      %v1663 = vunpack.c.l.b16 %v1613
      %v1664 = vunpack.c.h.b16 %v1613
      %v1665 = vunpack.c.l.b16 %v1614
      %v1666 = vunpack.c.h.b16 %v1614
      %v1667 = vunpack.c.l.b16 %v1615
      %v1668 = vunpack.c.h.b16 %v1615
      %v1669 = vunpack.c.l.b16 %v1616
      %v1670 = vunpack.c.h.b16 %v1616
      %v1671 = vpack.c.b16 %v1635, %v1635
      %v1672 = vpack.c.b16 %v1636, %v1636
      %v1673 = vpack.c.b16 %v1637, %v1637
      %v1674 = vpack.c.b16 %v1638, %v1638
      %v1675 = vpack.c.b16 %v1639, %v1639
      %v1676 = vpack.c.b16 %v1640, %v1640
      %v1677 = vpack.c.b16 %v1641, %v1641
      %v1678 = vpack.c.b16 %v1642, %v1642
      %v1679 = vpack.c.b16 %v1643, %v1643
      %v1680 = vpack.c.b16 %v1644, %v1644
      %v1681 = vpack.c.b16 %v1645, %v1645
      %v1682 = vpack.c.b16 %v1646, %v1646
      %v1683 = vpack.c.b16 %v1647, %v1647
      %v1684 = vpack.c.b16 %v1648, %v1648
      %v1685 = vpack.c.b16 %v1649, %v1649
      %v1686 = vpack.c.b16 %v1650, %v1650
      %v1687 = vpack.c.b16 %v1651, %v1651
      %v1688 = vpack.c.b16 %v1652, %v1652
      %v1689 = vpack.c.b16 %v1653, %v1653
      %v1690 = vpack.c.b16 %v1654, %v1654
      %v1691 = vpack.c.b16 %v1655, %v1655
      %v1692 = vpack.c.b16 %v1656, %v1656
      %v1693 = vpack.c.b16 %v1657, %v1657
      %v1694 = vpack.c.b16 %v1658, %v1658
      %v1695 = vpack.c.b16 %v1659, %v1659
      %v1696 = vpack.c.b16 %v1660, %v1660
      %v1697 = vpack.c.b16 %v1661, %v1661
      %v1698 = vpack.c.b16 %v1662, %v1662
      %v1699 = vpack.c.b16 %v1663, %v1663
      %v1700 = vpack.c.b16 %v1664, %v1664
      %v1701 = vpack.c.b16 %v1665, %v1665
      %v1702 = vpack.c.b16 %v1666, %v1666
      %v1703 = vpack.c.b16 %v1667, %v1667
      %v1704 = vpack.c.b16 %v1668, %v1668
      %v1705 = vpack.c.b16 %v1669, %v1669
      %v1706 = vpack.c.b16 %v1670, %v1670
      %vm1707 = vsmask.f32 5392
      %vm1708 = vmor %vm1586, %vm1707
      %v1710 = vshrl.u32 %v1671, 16
      %v1712 = vrot.slane %v1710, 6
      %v1713 = vshll.u32 %v1671, 16
      %v1715 = vrot.slane %v1713, 7
      %v1716 = vor.u32 %v1712, %v1715
      %v1717 = vrot.slane %v1716, 4
      %v1719 = vshrl.u32 %v1672, 16
      %v1721 = vrot.slane %v1719, 6
      %v1722 = vshll.u32 %v1672, 16
      %v1724 = vrot.slane %v1722, 7
      %v1725 = vor.u32 %v1721, %v1724
      %v1726 = vsel %vm1708, %v1717, %v1725
      %v1727 = vrot.slane %v1725, 4
      %v1729 = vshrl.u32 %v1673, 16
      %v1731 = vrot.slane %v1729, 6
      %v1732 = vshll.u32 %v1673, 16
      %v1734 = vrot.slane %v1732, 7
      %v1735 = vor.u32 %v1731, %v1734
      %v1736 = vsel %vm1708, %v1727, %v1735
      %v1737 = vrot.slane %v1735, 4
      %v1739 = vshrl.u32 %v1674, 16
      %v1741 = vrot.slane %v1739, 6
      %v1742 = vshll.u32 %v1674, 16
      %v1744 = vrot.slane %v1742, 7
      %v1745 = vor.u32 %v1741, %v1744
      %v1746 = vsel %vm1708, %v1737, %v1745
      %v1747 = vrot.slane %v1745, 4
      %v1749 = vshrl.u32 %v1675, 16
      %v1751 = vrot.slane %v1749, 6
      %v1752 = vshll.u32 %v1675, 16
      %v1754 = vrot.slane %v1752, 7
      %v1755 = vor.u32 %v1751, %v1754
      %v1756 = vsel %vm1708, %v1747, %v1755
      %v1757 = vrot.slane %v1755, 4
      %v1759 = vshrl.u32 %v1676, 16
      %v1761 = vrot.slane %v1759, 6
      %v1762 = vshll.u32 %v1676, 16
      %v1764 = vrot.slane %v1762, 7
      %v1765 = vor.u32 %v1761, %v1764
      %v1766 = vsel %vm1708, %v1757, %v1765
      %v1767 = vrot.slane %v1765, 4
      %v1769 = vshrl.u32 %v1677, 16
      %v1771 = vrot.slane %v1769, 6
      %v1772 = vshll.u32 %v1677, 16
      %v1774 = vrot.slane %v1772, 7
      %v1775 = vor.u32 %v1771, %v1774
      %v1776 = vsel %vm1708, %v1767, %v1775
      %v1777 = vrot.slane %v1775, 4
      %v1779 = vshrl.u32 %v1678, 16
      %v1781 = vrot.slane %v1779, 6
      %v1782 = vshll.u32 %v1678, 16
      %v1784 = vrot.slane %v1782, 7
      %v1785 = vor.u32 %v1781, %v1784
      %v1786 = vsel %vm1708, %v1777, %v1785
      %v1787 = vrot.slane %v1785, 4
      %v1789 = vshrl.u32 %v1679, 16
      %v1791 = vrot.slane %v1789, 6
      %v1792 = vshll.u32 %v1679, 16
      %v1794 = vrot.slane %v1792, 7
      %v1795 = vor.u32 %v1791, %v1794
      %v1796 = vsel %vm1708, %v1787, %v1795
      %v1797 = vrot.slane %v1795, 4
      %v1799 = vshrl.u32 %v1680, 16
      %v1801 = vrot.slane %v1799, 6
      %v1802 = vshll.u32 %v1680, 16
      %v1804 = vrot.slane %v1802, 7
      %v1805 = vor.u32 %v1801, %v1804
      %v1806 = vsel %vm1708, %v1797, %v1805
      %v1807 = vrot.slane %v1805, 4
      %v1809 = vshrl.u32 %v1681, 16
      %v1811 = vrot.slane %v1809, 6
      %v1812 = vshll.u32 %v1681, 16
      %v1814 = vrot.slane %v1812, 7
      %v1815 = vor.u32 %v1811, %v1814
      %v1816 = vsel %vm1708, %v1807, %v1815
      %v1817 = vrot.slane %v1815, 4
      %v1819 = vshrl.u32 %v1682, 16
      %v1821 = vrot.slane %v1819, 6
      %v1822 = vshll.u32 %v1682, 16
      %v1824 = vrot.slane %v1822, 7
      %v1825 = vor.u32 %v1821, %v1824
      %v1826 = vsel %vm1708, %v1817, %v1825
      %v1827 = vrot.slane %v1825, 4
      %v1829 = vshrl.u32 %v1683, 16
      %v1831 = vrot.slane %v1829, 6
      %v1832 = vshll.u32 %v1683, 16
      %v1834 = vrot.slane %v1832, 7
      %v1835 = vor.u32 %v1831, %v1834
      %v1836 = vsel %vm1708, %v1827, %v1835
      %v1837 = vrot.slane %v1835, 4
      %v1839 = vshrl.u32 %v1684, 16
      %v1841 = vrot.slane %v1839, 6
      %v1842 = vshll.u32 %v1684, 16
      %v1844 = vrot.slane %v1842, 7
      %v1845 = vor.u32 %v1841, %v1844
      %v1846 = vsel %vm1708, %v1837, %v1845
      %v1847 = vrot.slane %v1845, 4
      %v1849 = vshrl.u32 %v1685, 16
      %v1851 = vrot.slane %v1849, 6
      %v1852 = vshll.u32 %v1685, 16
      %v1854 = vrot.slane %v1852, 7
      %v1855 = vor.u32 %v1851, %v1854
      %v1856 = vsel %vm1708, %v1847, %v1855
      %v1857 = vrot.slane %v1855, 4
      %v1859 = vshrl.u32 %v1686, 16
      %v1861 = vrot.slane %v1859, 6
      %v1862 = vshll.u32 %v1686, 16
      %v1864 = vrot.slane %v1862, 7
      %v1865 = vor.u32 %v1861, %v1864
      %v1866 = vsel %vm1708, %v1857, %v1865
      %v1867 = vrot.slane %v1865, 4
      %v1869 = vshrl.u32 %v1687, 16
      %v1871 = vrot.slane %v1869, 6
      %v1872 = vshll.u32 %v1687, 16
      %v1874 = vrot.slane %v1872, 7
      %v1875 = vor.u32 %v1871, %v1874
      %v1876 = vsel %vm1708, %v1867, %v1875
      %v1877 = vrot.slane %v1875, 4
      %v1879 = vshrl.u32 %v1688, 16
      %v1881 = vrot.slane %v1879, 6
      %v1882 = vshll.u32 %v1688, 16
      %v1884 = vrot.slane %v1882, 7
      %v1885 = vor.u32 %v1881, %v1884
      %v1886 = vsel %vm1708, %v1877, %v1885
      %v1887 = vrot.slane %v1885, 4
      %v1889 = vshrl.u32 %v1689, 16
      %v1891 = vrot.slane %v1889, 6
      %v1892 = vshll.u32 %v1689, 16
      %v1894 = vrot.slane %v1892, 7
      %v1895 = vor.u32 %v1891, %v1894
      %v1896 = vsel %vm1708, %v1887, %v1895
      %v1897 = vrot.slane %v1895, 4
      %v1899 = vshrl.u32 %v1690, 16
      %v1901 = vrot.slane %v1899, 6
      %v1902 = vshll.u32 %v1690, 16
      %v1904 = vrot.slane %v1902, 7
      %v1905 = vor.u32 %v1901, %v1904
      %v1906 = vsel %vm1708, %v1897, %v1905
      %v1907 = vrot.slane %v1905, 4
      %v1909 = vshrl.u32 %v1691, 16
      %v1911 = vrot.slane %v1909, 6
      %v1912 = vshll.u32 %v1691, 16
      %v1914 = vrot.slane %v1912, 7
      %v1915 = vor.u32 %v1911, %v1914
      %v1916 = vsel %vm1708, %v1907, %v1915
      %v1917 = vrot.slane %v1915, 4
      %v1919 = vshrl.u32 %v1692, 16
      %v1921 = vrot.slane %v1919, 6
      %v1922 = vshll.u32 %v1692, 16
      %v1924 = vrot.slane %v1922, 7
      %v1925 = vor.u32 %v1921, %v1924
      %v1926 = vsel %vm1708, %v1917, %v1925
      %v1927 = vrot.slane %v1925, 4
      %v1929 = vshrl.u32 %v1693, 16
      %v1931 = vrot.slane %v1929, 6
      %v1932 = vshll.u32 %v1693, 16
      %v1934 = vrot.slane %v1932, 7
      %v1935 = vor.u32 %v1931, %v1934
      %v1936 = vsel %vm1708, %v1927, %v1935
      %v1937 = vrot.slane %v1935, 4
      %v1939 = vshrl.u32 %v1694, 16
      %v1941 = vrot.slane %v1939, 6
      %v1942 = vshll.u32 %v1694, 16
      %v1944 = vrot.slane %v1942, 7
      %v1945 = vor.u32 %v1941, %v1944
      %v1946 = vsel %vm1708, %v1937, %v1945
      %v1947 = vrot.slane %v1945, 4
      %v1949 = vshrl.u32 %v1695, 16
      %v1951 = vrot.slane %v1949, 6
      %v1952 = vshll.u32 %v1695, 16
      %v1954 = vrot.slane %v1952, 7
      %v1955 = vor.u32 %v1951, %v1954
      %v1956 = vsel %vm1708, %v1947, %v1955
      %v1957 = vrot.slane %v1955, 4
      %v1959 = vshrl.u32 %v1696, 16
      %v1961 = vrot.slane %v1959, 6
      %v1962 = vshll.u32 %v1696, 16
      %v1964 = vrot.slane %v1962, 7
      %v1965 = vor.u32 %v1961, %v1964
      %v1966 = vsel %vm1708, %v1957, %v1965
      %v1967 = vrot.slane %v1965, 4
      %v1969 = vshrl.u32 %v1697, 16
      %v1971 = vrot.slane %v1969, 6
      %v1972 = vshll.u32 %v1697, 16
      %v1974 = vrot.slane %v1972, 7
      %v1975 = vor.u32 %v1971, %v1974
      %v1976 = vsel %vm1708, %v1967, %v1975
      %v1977 = vrot.slane %v1975, 4
      %v1979 = vshrl.u32 %v1698, 16
      %v1981 = vrot.slane %v1979, 6
      %v1982 = vshll.u32 %v1698, 16
      %v1984 = vrot.slane %v1982, 7
      %v1985 = vor.u32 %v1981, %v1984
      %v1986 = vsel %vm1708, %v1977, %v1985
      %v1987 = vrot.slane %v1985, 4
      %v1989 = vshrl.u32 %v1699, 16
      %v1991 = vrot.slane %v1989, 6
      %v1992 = vshll.u32 %v1699, 16
      %v1994 = vrot.slane %v1992, 7
      %v1995 = vor.u32 %v1991, %v1994
      %v1996 = vsel %vm1708, %v1987, %v1995
      %v1997 = vrot.slane %v1995, 4
      %v1999 = vshrl.u32 %v1700, 16
      %v2001 = vrot.slane %v1999, 6
      %v2002 = vshll.u32 %v1700, 16
      %v2004 = vrot.slane %v2002, 7
      %v2005 = vor.u32 %v2001, %v2004
      %v2006 = vsel %vm1708, %v1997, %v2005
      %v2007 = vrot.slane %v2005, 4
      %v2009 = vshrl.u32 %v1701, 16
      %v2011 = vrot.slane %v2009, 6
      %v2012 = vshll.u32 %v1701, 16
      %v2014 = vrot.slane %v2012, 7
      %v2015 = vor.u32 %v2011, %v2014
      %v2016 = vsel %vm1708, %v2007, %v2015
      %v2017 = vrot.slane %v2015, 4
      %v2019 = vshrl.u32 %v1702, 16
      %v2021 = vrot.slane %v2019, 6
      %v2022 = vshll.u32 %v1702, 16
      %v2024 = vrot.slane %v2022, 7
      %v2025 = vor.u32 %v2021, %v2024
      %v2026 = vsel %vm1708, %v2017, %v2025
      %v2027 = vrot.slane %v2025, 4
      %v2029 = vshrl.u32 %v1703, 16
      %v2031 = vrot.slane %v2029, 6
      %v2032 = vshll.u32 %v1703, 16
      %v2034 = vrot.slane %v2032, 7
      %v2035 = vor.u32 %v2031, %v2034
      %v2036 = vsel %vm1708, %v2027, %v2035
      %v2037 = vrot.slane %v2035, 4
      %v2039 = vshrl.u32 %v1704, 16
      %v2041 = vrot.slane %v2039, 6
      %v2042 = vshll.u32 %v1704, 16
      %v2044 = vrot.slane %v2042, 7
      %v2045 = vor.u32 %v2041, %v2044
      %v2046 = vsel %vm1708, %v2037, %v2045
      %v2047 = vrot.slane %v2045, 4
      %v2049 = vshrl.u32 %v1705, 16
      %v2051 = vrot.slane %v2049, 6
      %v2052 = vshll.u32 %v1705, 16
      %v2054 = vrot.slane %v2052, 7
      %v2055 = vor.u32 %v2051, %v2054
      %v2056 = vsel %vm1708, %v2047, %v2055
      %v2057 = vrot.slane %v2055, 4
      %v2059 = vshrl.u32 %v1706, 16
      %v2061 = vrot.slane %v2059, 6
      %v2062 = vshll.u32 %v1706, 16
      %v2064 = vrot.slane %v2062, 7
      %v2065 = vor.u32 %v2061, %v2064
      %v2066 = vsel %vm1708, %v2057, %v2065
      %v2067 = vrot.slane %v2065, 4
      %v2105 = vld [vmem:[#allocation2 + $0x8] sm:$0xe]
      %v2106 = vsel %vm1593, %v1716, %v2105
      %2107 = vst [vmem:[#allocation2 + $0x8] sm:$0xe] %v2106
      %2108 = vst [vmem:[#allocation2 + $0xc] sm:$0xf] %v1726
      %2109 = vst [vmem:[#allocation2 + $0x10] sm:$0xf] %v1736
      %2110 = vst [vmem:[#allocation2 + $0x14] sm:$0xf] %v1746
      %2111 = vst [vmem:[#allocation2 + $0x18] sm:$0xf] %v1756
      %2112 = vst [vmem:[#allocation2 + $0x1c] sm:$0xf] %v1766
      %2113 = vst [vmem:[#allocation2 + $0x20] sm:$0xf] %v1776
      %2114 = vst [vmem:[#allocation2 + $0x24] sm:$0xf] %v1786
      %2115 = vst [vmem:[#allocation2 + $0x28] sm:$0xf] %v1796
      %2116 = vst [vmem:[#allocation2 + $0x2c] sm:$0xf] %v1806
      %2117 = vst [vmem:[#allocation2 + $0x30] sm:$0xf] %v1816
      %2118 = vst [vmem:[#allocation2 + $0x34] sm:$0xf] %v1826
      %2119 = vst [vmem:[#allocation2 + $0x38] sm:$0xf] %v1836
      %2120 = vst [vmem:[#allocation2 + $0x3c] sm:$0xf] %v1846
      %2121 = vst [vmem:[#allocation2 + $0x40] sm:$0xf] %v1856
      %2122 = vst [vmem:[#allocation2 + $0x44] sm:$0xf] %v1866
      %2123 = vst [vmem:[#allocation2 + $0x48] sm:$0xf] %v1876
      %2124 = vst [vmem:[#allocation2 + $0x4c] sm:$0xf] %v1886
      %2125 = vst [vmem:[#allocation2 + $0x50] sm:$0xf] %v1896
      %2126 = vst [vmem:[#allocation2 + $0x54] sm:$0xf] %v1906
      %2127 = vst [vmem:[#allocation2 + $0x58] sm:$0xf] %v1916
      %2128 = vst [vmem:[#allocation2 + $0x5c] sm:$0xf] %v1926
      %2129 = vst [vmem:[#allocation2 + $0x60] sm:$0xf] %v1936
      %2130 = vst [vmem:[#allocation2 + $0x64] sm:$0xf] %v1946
      %2131 = vst [vmem:[#allocation2 + $0x68] sm:$0xf] %v1956
      %2132 = vst [vmem:[#allocation2 + $0x6c] sm:$0xf] %v1966
      %2133 = vst [vmem:[#allocation2 + $0x70] sm:$0xf] %v1976
      %2134 = vst [vmem:[#allocation2 + $0x74] sm:$0xf] %v1986
      %2135 = vst [vmem:[#allocation2 + $0x78] sm:$0xf] %v1996
      %2136 = vst [vmem:[#allocation2 + $0x7c] sm:$0xf] %v2006
      %2137 = vst [vmem:[#allocation2 + $0x80] sm:$0xf] %v2016
      %2138 = vst [vmem:[#allocation2 + $0x84] sm:$0xf] %v2026
      %2139 = vst [vmem:[#allocation2 + $0x88] sm:$0xf] %v2036
      %2140 = vst [vmem:[#allocation2 + $0x8c] sm:$0xf] %v2046
      %2141 = vst [vmem:[#allocation2 + $0x90] sm:$0xf] %v2056
      %2142 = vst [vmem:[#allocation2 + $0x94] sm:$0xf] %v2066
      %v2143 = vld [vmem:[#allocation2 + $0x98] sm:$0x3]
      %v2144 = vsel %vm1587, %v2067, %v2143
      %2145 = vst [vmem:[#allocation2 + $0x98] sm:$0x3] %v2144
      %v2146 = vld [vmem:[#allocation2] sm:$0xf]
      %v2147 = vld [vmem:[#allocation2 + $0x4] sm:$0xf]
      %v2148 = vld [vmem:[#allocation2 + $0x8] sm:$0xf]
      %v2149 = vld [vmem:[#allocation2 + $0xc] sm:$0xf]
      %v2150 = vld [vmem:[#allocation2 + $0x10] sm:$0xf]
      %v2151 = vld [vmem:[#allocation2 + $0x14] sm:$0xf]
      %v2152 = vld [vmem:[#allocation2 + $0x18] sm:$0xf]
      %v2153 = vld [vmem:[#allocation2 + $0x1c] sm:$0xf]
      %v2154 = vld [vmem:[#allocation2 + $0x20] sm:$0xf]
      %v2155 = vld [vmem:[#allocation2 + $0x24] sm:$0xf]
      %v2156 = vld [vmem:[#allocation2 + $0x28] sm:$0xf]
      %v2157 = vld [vmem:[#allocation2 + $0x2c] sm:$0xf]
      %v2158 = vld [vmem:[#allocation2 + $0x30] sm:$0xf]
      %v2159 = vld [vmem:[#allocation2 + $0x34] sm:$0xf]
      %v2160 = vld [vmem:[#allocation2 + $0x38] sm:$0xf]
      %v2161 = vld [vmem:[#allocation2 + $0x3c] sm:$0xf]
      %v2162 = vld [vmem:[#allocation2 + $0x40] sm:$0xf]
      %v2163 = vld [vmem:[#allocation2 + $0x44] sm:$0xf]
      %v2164 = vld [vmem:[#allocation2 + $0x48] sm:$0xf]
      %v2165 = vld [vmem:[#allocation2 + $0x4c] sm:$0xf]
      %v2166 = vld [vmem:[#allocation2 + $0x50] sm:$0xf]
      %v2167 = vld [vmem:[#allocation2 + $0x54] sm:$0xf]
      %v2168 = vld [vmem:[#allocation2 + $0x58] sm:$0xf]
      %v2169 = vld [vmem:[#allocation2 + $0x5c] sm:$0xf]
      %v2170 = vld [vmem:[#allocation2 + $0x60] sm:$0xf]
      %v2171 = vld [vmem:[#allocation2 + $0x64] sm:$0xf]
      %v2172 = vld [vmem:[#allocation2 + $0x68] sm:$0xf]
      %v2173 = vld [vmem:[#allocation2 + $0x6c] sm:$0xf]
      %v2174 = vld [vmem:[#allocation2 + $0x70] sm:$0xf]
      %v2175 = vld [vmem:[#allocation2 + $0x74] sm:$0xf]
      %v2176 = vld [vmem:[#allocation2 + $0x78] sm:$0xf]
      %v2177 = vld [vmem:[#allocation2 + $0x7c] sm:$0xf]
      %v2178 = vld [vmem:[#allocation2 + $0x80] sm:$0xf]
      %v2179 = vld [vmem:[#allocation2 + $0x84] sm:$0xf]
      %v2180 = vld [vmem:[#allocation2 + $0x88] sm:$0xf]
      %v2181 = vld [vmem:[#allocation2 + $0x8c] sm:$0xf]
      %v2182 = vld [vmem:[#allocation2 + $0x90] sm:$0x1]
      %v2219 = vunpack.c.l.b16 %v2146
      %v2220 = vunpack.c.l.b16 %v2147
      %v2221 = vunpack.c.l.b16 %v2148
      %v2222 = vunpack.c.l.b16 %v2149
      %v2223 = vunpack.c.l.b16 %v2150
      %v2224 = vunpack.c.l.b16 %v2151
      %v2225 = vunpack.c.l.b16 %v2152
      %v2226 = vunpack.c.l.b16 %v2153
      %v2227 = vunpack.c.l.b16 %v2154
      %v2228 = vunpack.c.l.b16 %v2155
      %v2229 = vunpack.c.l.b16 %v2156
      %v2230 = vunpack.c.l.b16 %v2157
      %v2231 = vunpack.c.l.b16 %v2158
      %v2232 = vunpack.c.l.b16 %v2159
      %v2233 = vunpack.c.l.b16 %v2160
      %v2234 = vunpack.c.l.b16 %v2161
      %v2235 = vunpack.c.l.b16 %v2162
      %v2236 = vunpack.c.l.b16 %v2163
      %v2237 = vunpack.c.l.b16 %v2164
      %v2238 = vunpack.c.l.b16 %v2165
      %v2239 = vunpack.c.l.b16 %v2166
      %v2240 = vunpack.c.l.b16 %v2167
      %v2241 = vunpack.c.l.b16 %v2168
      %v2242 = vunpack.c.l.b16 %v2169
      %v2243 = vunpack.c.l.b16 %v2170
      %v2244 = vunpack.c.l.b16 %v2171
      %v2245 = vunpack.c.l.b16 %v2172
      %v2246 = vunpack.c.l.b16 %v2173
      %v2247 = vunpack.c.l.b16 %v2174
      %v2248 = vunpack.c.l.b16 %v2175
      %v2249 = vunpack.c.l.b16 %v2176
      %v2250 = vunpack.c.l.b16 %v2177
      %v2251 = vunpack.c.l.b16 %v2178
      %v2252 = vunpack.c.l.b16 %v2179
      %v2253 = vunpack.c.l.b16 %v2180
      %v2254 = vunpack.c.l.b16 %v2181
      %v2255 = vpack.c.b16 %v2220, %v2219
      %v2256 = vpack.c.b16 %v2222, %v2221
      %v2257 = vpack.c.b16 %v2224, %v2223
      %v2258 = vpack.c.b16 %v2226, %v2225
      %v2259 = vpack.c.b16 %v2228, %v2227
      %v2260 = vpack.c.b16 %v2230, %v2229
      %v2261 = vpack.c.b16 %v2232, %v2231
      %v2262 = vpack.c.b16 %v2234, %v2233
      %v2263 = vpack.c.b16 %v2236, %v2235
      %v2264 = vpack.c.b16 %v2238, %v2237
      %v2265 = vpack.c.b16 %v2240, %v2239
      %v2266 = vpack.c.b16 %v2242, %v2241
      %v2267 = vpack.c.b16 %v2244, %v2243
      %v2268 = vpack.c.b16 %v2246, %v2245
      %v2269 = vpack.c.b16 %v2248, %v2247
      %v2270 = vpack.c.b16 %v2250, %v2249
      %v2271 = vpack.c.b16 %v2252, %v2251
      %v2272 = vpack.c.b16 %v2254, %v2253
      %v2292 = vunpack.c.l.b16 %v2182
      %v2293 = vpack.c.b16 %v2292, %v2292
      %vm2294 = vsmask.f32 7424
      %v2296 = vshrl.u32 %v2255, 16
      %v2298 = vshll.u32 %v2255, 16
      %v2300 = vrot.slane %v2298, 1
      %v2301 = vor.u32 %v2296, %v2300
      %v2303 = vshll.u32 %v2256, 16
      %v2305 = vrot.slane %v2303, 1
      %v2306 = vsel %vm2294, %v2301, %v2305
      %v2307 = vshrl.u32 %v2256, 16
      %v2309 = vor.u32 %v2307, %v2305
      %v2311 = vshll.u32 %v2257, 16
      %v2313 = vrot.slane %v2311, 1
      %v2314 = vsel %vm2294, %v2309, %v2313
      %v2315 = vshrl.u32 %v2257, 16
      %v2317 = vor.u32 %v2315, %v2313
      %v2319 = vshll.u32 %v2258, 16
      %v2321 = vrot.slane %v2319, 1
      %v2322 = vsel %vm2294, %v2317, %v2321
      %v2323 = vshrl.u32 %v2258, 16
      %v2325 = vor.u32 %v2323, %v2321
      %v2327 = vshll.u32 %v2259, 16
      %v2329 = vrot.slane %v2327, 1
      %v2330 = vsel %vm2294, %v2325, %v2329
      %v2331 = vshrl.u32 %v2259, 16
      %v2333 = vor.u32 %v2331, %v2329
      %v2335 = vshll.u32 %v2260, 16
      %v2337 = vrot.slane %v2335, 1
      %v2338 = vsel %vm2294, %v2333, %v2337
      %v2339 = vshrl.u32 %v2260, 16
      %v2341 = vor.u32 %v2339, %v2337
      %v2343 = vshll.u32 %v2261, 16
      %v2345 = vrot.slane %v2343, 1
      %v2346 = vsel %vm2294, %v2341, %v2345
      %v2347 = vshrl.u32 %v2261, 16
      %v2349 = vor.u32 %v2347, %v2345
      %v2351 = vshll.u32 %v2262, 16
      %v2353 = vrot.slane %v2351, 1
      %v2354 = vsel %vm2294, %v2349, %v2353
      %v2355 = vshrl.u32 %v2262, 16
      %v2357 = vor.u32 %v2355, %v2353
      %v2359 = vshll.u32 %v2263, 16
      %v2361 = vrot.slane %v2359, 1
      %v2362 = vsel %vm2294, %v2357, %v2361
      %v2363 = vshrl.u32 %v2263, 16
      %v2365 = vor.u32 %v2363, %v2361
      %v2367 = vshll.u32 %v2264, 16
      %v2369 = vrot.slane %v2367, 1
      %v2370 = vsel %vm2294, %v2365, %v2369
      %v2371 = vshrl.u32 %v2264, 16
      %v2373 = vor.u32 %v2371, %v2369
      %v2375 = vshll.u32 %v2265, 16
      %v2377 = vrot.slane %v2375, 1
      %v2378 = vsel %vm2294, %v2373, %v2377
      %v2379 = vshrl.u32 %v2265, 16
      %v2381 = vor.u32 %v2379, %v2377
      %v2383 = vshll.u32 %v2266, 16
      %v2385 = vrot.slane %v2383, 1
      %v2386 = vsel %vm2294, %v2381, %v2385
      %v2387 = vshrl.u32 %v2266, 16
      %v2389 = vor.u32 %v2387, %v2385
      %v2391 = vshll.u32 %v2267, 16
      %v2393 = vrot.slane %v2391, 1
      %v2394 = vsel %vm2294, %v2389, %v2393
      %v2395 = vshrl.u32 %v2267, 16
      %v2397 = vor.u32 %v2395, %v2393
      %v2399 = vshll.u32 %v2268, 16
      %v2401 = vrot.slane %v2399, 1
      %v2402 = vsel %vm2294, %v2397, %v2401
      %v2403 = vshrl.u32 %v2268, 16
      %v2405 = vor.u32 %v2403, %v2401
      %v2407 = vshll.u32 %v2269, 16
      %v2409 = vrot.slane %v2407, 1
      %v2410 = vsel %vm2294, %v2405, %v2409
      %v2411 = vshrl.u32 %v2269, 16
      %v2413 = vor.u32 %v2411, %v2409
      %v2415 = vshll.u32 %v2270, 16
      %v2417 = vrot.slane %v2415, 1
      %v2418 = vsel %vm2294, %v2413, %v2417
      %v2419 = vshrl.u32 %v2270, 16
      %v2421 = vor.u32 %v2419, %v2417
      %v2423 = vshll.u32 %v2271, 16
      %v2425 = vrot.slane %v2423, 1
      %v2426 = vsel %vm2294, %v2421, %v2425
      %v2427 = vshrl.u32 %v2271, 16
      %v2429 = vor.u32 %v2427, %v2425
      %v2431 = vshll.u32 %v2272, 16
      %v2433 = vrot.slane %v2431, 1
      %v2434 = vsel %vm2294, %v2429, %v2433
      %v2435 = vshrl.u32 %v2272, 16
      %v2437 = vor.u32 %v2435, %v2433
      %v2439 = vshll.u32 %v2293, 16
      %v2441 = vrot.slane %v2439, 1
      %v2442 = vsel %vm2294, %v2437, %v2441
      %v2461 = vld [vmem:[%s2] sm:$0xf]
      %v2462 = vld [vmem:[%s2 + $0x4] sm:$0xf]
      %v2463 = vld [vmem:[%s2 + $0x8] sm:$0xf]
      %v2464 = vld [vmem:[%s2 + $0xc] sm:$0xf]
      %v2465 = vld [vmem:[%s2 + $0x10] sm:$0xf]
      %v2466 = vld [vmem:[%s2 + $0x14] sm:$0xf]
      %v2467 = vld [vmem:[%s2 + $0x18] sm:$0xf]
      %v2468 = vld [vmem:[%s2 + $0x1c] sm:$0xf]
      %v2469 = vld [vmem:[%s2 + $0x20] sm:$0xf]
      %v2470 = vld [vmem:[%s2 + $0x24] sm:$0xf]
      %v2471 = vld [vmem:[%s2 + $0x28] sm:$0xf]
      %v2472 = vld [vmem:[%s2 + $0x2c] sm:$0xf]
      %v2473 = vld [vmem:[%s2 + $0x30] sm:$0xf]
      %v2474 = vld [vmem:[%s2 + $0x34] sm:$0xf]
      %v2475 = vld [vmem:[%s2 + $0x38] sm:$0xf]
      %v2476 = vld [vmem:[%s2 + $0x3c] sm:$0xf]
      %v2477 = vld [vmem:[%s2 + $0x40] sm:$0xf]
      %v2478 = vld [vmem:[%s2 + $0x44] sm:$0xf]
      %v2479 = vld [vmem:[%s2 + $0x48] sm:$0xf]
      %v2480 = vld [vmem:[%s2 + $0x4c] sm:$0xf]
      %v2481 = vld [vmem:[%s2 + $0x50] sm:$0xf]
      %v2482 = vld [vmem:[%s2 + $0x54] sm:$0xf]
      %v2483 = vld [vmem:[%s2 + $0x58] sm:$0xf]
      %v2484 = vld [vmem:[%s2 + $0x5c] sm:$0xf]
      %v2485 = vld [vmem:[%s2 + $0x60] sm:$0xf]
      %v2486 = vld [vmem:[%s2 + $0x64] sm:$0xf]
      %v2487 = vld [vmem:[%s2 + $0x68] sm:$0xf]
      %v2488 = vld [vmem:[%s2 + $0x6c] sm:$0xf]
      %v2489 = vld [vmem:[%s2 + $0x70] sm:$0xf]
      %v2490 = vld [vmem:[%s2 + $0x74] sm:$0xf]
      %v2491 = vld [vmem:[%s2 + $0x78] sm:$0xf]
      %v2492 = vld [vmem:[%s2 + $0x7c] sm:$0xf]
      %v2493 = vld [vmem:[#allocation2] sm:$0xe]
      %v2494 = vld [vmem:[#allocation2 + $0x8] sm:$0xe]
      %v2495 = vld [vmem:[#allocation2 + $0x90] sm:$0xf]
      %v2496 = vld [vmem:[#allocation2 + $0x94] sm:$0xf]
      %v2497 = vld [vmem:[#allocation2 + $0x98] sm:$0x1]
      %v2499 = vunpack.c.l.b16 %v2493
      %v2500 = vpack.c.b16 %v2220, %v2499
      %v2505 = vunpack.c.l.b16 %v2494
      %v2506 = vunpack.c.l.b16 %v2495
      %v2507 = vunpack.c.l.b16 %v2496
      %v2508 = vunpack.c.l.b16 %v2497
      %v2509 = vpack.c.b16 %v2222, %v2505
      %v2510 = vpack.c.b16 %v2507, %v2506
      %v2511 = vpack.c.b16 %v2508, %v2508
      %v2512 = vld [vmem:[%s2 + $0x80] sm:$0xf]
      %v2513 = vld [vmem:[%s2 + $0x84] sm:$0xf]
      %v2514 = vld [vmem:[%s2 + $0x88] sm:$0xf]
      %v2515 = vld [vmem:[%s2 + $0x8c] sm:$0xf]
      %v2516 = vld [vmem:[%s2 + $0x90] sm:$0xf]
      %v2517 = vld [vmem:[%s2 + $0x94] sm:$0xf]
      %v2518 = vld [vmem:[%s2 + $0x98] sm:$0xf]
      %v2519 = vld [vmem:[%s2 + $0x9c] sm:$0xf]
      %v2520 = vld [vmem:[%s2 + $0xa0] sm:$0xf]
      %v2521 = vld [vmem:[%s2 + $0xa4] sm:$0xf]
      %v2522 = vld [vmem:[%s2 + $0xa8] sm:$0xf]
      %v2523 = vld [vmem:[%s2 + $0xac] sm:$0xf]
      %v2524 = vld [vmem:[%s2 + $0xb0] sm:$0xf]
      %v2525 = vld [vmem:[%s2 + $0xb4] sm:$0xf]
      %v2526 = vld [vmem:[%s2 + $0xb8] sm:$0xf]
      %v2527 = vld [vmem:[%s2 + $0xbc] sm:$0xf]
      %v2528 = vld [vmem:[%s2 + $0xc0] sm:$0xf]
      %v2529 = vld [vmem:[%s2 + $0xc4] sm:$0xf]
      %v2530 = vld [vmem:[%s2 + $0xc8] sm:$0xf]
      %v2531 = vld [vmem:[%s2 + $0xcc] sm:$0xf]
      %v2532 = vld [vmem:[%s2 + $0xd0] sm:$0xf]
      %v2533 = vld [vmem:[%s2 + $0xd4] sm:$0xf]
      %v2534 = vld [vmem:[%s2 + $0xd8] sm:$0xf]
      %v2535 = vld [vmem:[%s2 + $0xdc] sm:$0xf]
      %v2536 = vld [vmem:[%s2 + $0xe0] sm:$0xf]
      %v2537 = vld [vmem:[%s2 + $0xe4] sm:$0xf]
      %v2538 = vld [vmem:[%s2 + $0xe8] sm:$0xf]
      %v2539 = vld [vmem:[%s2 + $0xec] sm:$0xf]
      %v2540 = vld [vmem:[%s2 + $0xf0] sm:$0xf]
      %v2541 = vld [vmem:[%s2 + $0xf4] sm:$0xf]
      %v2542 = vld [vmem:[%s2 + $0xf8] sm:$0xf]
      %v2543 = vld [vmem:[%s2 + $0xfc] sm:$0xf]
      %vm2544 = vcmask 1046528
      %v2545 = vrot.slane %v2500, 1
      %v2546 = vrot.slane %v2256, 1
      %v2547 = vsel %vm2544, %v2545, %v2546
      %v2548 = vrot.slane %v2509, 1
      %v2549 = vrot.slane %v2257, 1
      %v2550 = vsel %vm2544, %v2548, %v2549
      %v2551 = vsel %vm2544, %v2546, %v2549
      %v2552 = vrot.slane %v2258, 1
      %v2553 = vsel %vm2544, %v2549, %v2552
      %v2554 = vrot.slane %v2259, 1
      %v2555 = vsel %vm2544, %v2552, %v2554
      %v2556 = vrot.slane %v2260, 1
      %v2557 = vsel %vm2544, %v2554, %v2556
      %v2558 = vrot.slane %v2261, 1
      %v2559 = vsel %vm2544, %v2556, %v2558
      %v2560 = vrot.slane %v2262, 1
      %v2561 = vsel %vm2544, %v2558, %v2560
      %v2562 = vrot.slane %v2263, 1
      %v2563 = vsel %vm2544, %v2560, %v2562
      %v2564 = vrot.slane %v2264, 1
      %v2565 = vsel %vm2544, %v2562, %v2564
      %v2566 = vrot.slane %v2265, 1
      %v2567 = vsel %vm2544, %v2564, %v2566
      %v2568 = vrot.slane %v2266, 1
      %v2569 = vsel %vm2544, %v2566, %v2568
      %v2570 = vrot.slane %v2267, 1
      %v2571 = vsel %vm2544, %v2568, %v2570
      %v2572 = vrot.slane %v2268, 1
      %v2573 = vsel %vm2544, %v2570, %v2572
      %v2574 = vrot.slane %v2269, 1
      %v2575 = vsel %vm2544, %v2572, %v2574
      %v2576 = vrot.slane %v2270, 1
      %v2577 = vsel %vm2544, %v2574, %v2576
      %v2578 = vrot.slane %v2271, 1
      %v2579 = vsel %vm2544, %v2576, %v2578
      %v2580 = vrot.slane %v2272, 1
      %v2581 = vsel %vm2544, %v2578, %v2580
      %v2582 = vrot.slane %v2510, 1
      %v2583 = vsel %vm2544, %v2580, %v2582
      %v2584 = vrot.slane %v2293, 1
      %v2585 = vsel %vm2544, %v2580, %v2584
      %v2586 = vrot.slane %v2511, 1
      %v2587 = vsel %vm2544, %v2582, %v2586
      %v2641 = vunpack.c.l.b16 %v2512
      %v2642 = vunpack.c.l.b16 %v2513
      %v2643 = vunpack.c.l.b16 %v2514
      %v2644 = vunpack.c.l.b16 %v2515
      %v2645 = vunpack.c.l.b16 %v2516
      %v2646 = vunpack.c.l.b16 %v2517
      %v2647 = vunpack.c.l.b16 %v2518
      %v2648 = vunpack.c.l.b16 %v2519
      %v2649 = vunpack.c.l.b16 %v2520
      %v2650 = vunpack.c.l.b16 %v2521
      %v2651 = vunpack.c.l.b16 %v2522
      %v2652 = vunpack.c.l.b16 %v2523
      %v2653 = vunpack.c.l.b16 %v2524
      %v2654 = vunpack.c.l.b16 %v2525
      %v2655 = vunpack.c.l.b16 %v2526
      %v2656 = vunpack.c.l.b16 %v2527
      %v2657 = vunpack.c.l.b16 %v2528
      %v2658 = vunpack.c.l.b16 %v2529
      %v2659 = vunpack.c.l.b16 %v2530
      %v2660 = vunpack.c.l.b16 %v2531
      %v2661 = vunpack.c.l.b16 %v2532
      %v2662 = vunpack.c.l.b16 %v2533
      %v2663 = vunpack.c.l.b16 %v2534
      %v2664 = vunpack.c.l.b16 %v2535
      %v2665 = vunpack.c.l.b16 %v2536
      %v2666 = vunpack.c.l.b16 %v2537
      %v2667 = vunpack.c.l.b16 %v2538
      %v2668 = vunpack.c.l.b16 %v2539
      %v2669 = vunpack.c.l.b16 %v2540
      %v2670 = vunpack.c.l.b16 %v2541
      %v2671 = vunpack.c.l.b16 %v2542
      %v2672 = vunpack.c.l.b16 %v2543
      %v2673 = vpack.c.b16 %v2642, %v2641
      %v2674 = vpack.c.b16 %v2644, %v2643
      %v2675 = vpack.c.b16 %v2646, %v2645
      %v2676 = vpack.c.b16 %v2648, %v2647
      %v2677 = vpack.c.b16 %v2650, %v2649
      %v2678 = vpack.c.b16 %v2652, %v2651
      %v2679 = vpack.c.b16 %v2654, %v2653
      %v2680 = vpack.c.b16 %v2656, %v2655
      %v2681 = vpack.c.b16 %v2658, %v2657
      %v2682 = vpack.c.b16 %v2660, %v2659
      %v2683 = vpack.c.b16 %v2662, %v2661
      %v2684 = vpack.c.b16 %v2664, %v2663
      %v2685 = vpack.c.b16 %v2666, %v2665
      %v2686 = vpack.c.b16 %v2668, %v2667
      %v2687 = vpack.c.b16 %v2670, %v2669
      %v2688 = vpack.c.b16 %v2672, %v2671
      %2705 = vmatprep.subr.bf16.mxu0 0
      %2706 = vmatpush1.bf16.msra.mxu0 %v2673
      %2707 = vmatprep.subr.bf16.mxu0 0
      %2708 = vmatpush1.bf16.msra.mxu0 %v2674
      %2709 = vmatprep.subr.bf16.mxu0 0
      %2710 = vmatpush1.bf16.msra.mxu0 %v2675
      %2711 = vmatprep.subr.bf16.mxu0 0
      %2712 = vmatpush1.bf16.msra.mxu0 %v2676
      %2713 = vmatprep.subr.bf16.mxu0 0
      %2714 = vmatpush1.bf16.msra.mxu0 %v2677
      %2715 = vmatprep.subr.bf16.mxu0 0
      %2716 = vmatpush1.bf16.msra.mxu0 %v2678
      %2717 = vmatprep.subr.bf16.mxu0 0
      %2718 = vmatpush1.bf16.msra.mxu0 %v2679
      %2719 = vmatprep.subr.bf16.mxu0 0
      %2720 = vmatpush1.bf16.msra.mxu0 %v2680
      %2721 = vmatprep.subr.bf16.mxu0 0
      %2722 = vmatpush1.bf16.msra.mxu0 %v2681
      %2723 = vmatprep.subr.bf16.mxu0 0
      %2724 = vmatpush1.bf16.msra.mxu0 %v2682
      %2725 = vmatprep.subr.bf16.mxu0 0
      %2726 = vmatpush1.bf16.msra.mxu0 %v2683
      %2727 = vmatprep.subr.bf16.mxu0 0
      %2728 = vmatpush1.bf16.msra.mxu0 %v2684
      %2729 = vmatprep.subr.bf16.mxu0 0
      %2730 = vmatpush1.bf16.msra.mxu0 %v2685
      %2731 = vmatprep.subr.bf16.mxu0 0
      %2732 = vmatpush1.bf16.msra.mxu0 %v2686
      %2733 = vmatprep.subr.bf16.mxu0 0
      %2734 = vmatpush1.bf16.msra.mxu0 %v2687
      %2735 = vmatprep.subr.bf16.mxu0 0
      %2736 = vmatpush1.bf16.msra.mxu0 %v2688
      %2737 = vmatprep.mubr.bf16.mxu0 %v2550
      %2738 = vmatmul.mubr.bf16.gmra.mrb[0].mxu0 %v2547
      %v2739 = vpop.f32.mrb[0].mxu0
      %v2740 = vadd.f32 0.0, %v2739
      %v2741 = vpop.f32.mrb[0].mxu0
      %v2742 = vpop.f32.mrb[0].mxu0
      %v2743 = vadd.f32 0.0, %v2742
      %v2744 = vpop.f32.mrb[0].mxu0
      %2745 = vmatprep.mubr.bf16.mxu0 %v2553
      %2746 = vmatmul.mubr.bf16.gmra.mrb[0].mxu0 %v2551
      %v2747 = vpop.f32.mrb[0].mxu0
      %v2748 = vadd.f32 0.0, %v2747
      %v2749 = vpop.f32.mrb[0].mxu0
      %v2750 = vpop.f32.mrb[0].mxu0
      %v2751 = vadd.f32 0.0, %v2750
      %v2752 = vpop.f32.mrb[0].mxu0
      %2753 = vmatprep.mubr.bf16.mxu0 %v2555
      %2754 = vmatmul.mubr.bf16.gmra.mrb[0].mxu0 %v2553
      %v2755 = vpop.f32.mrb[0].mxu0
      %v2756 = vadd.f32 0.0, %v2755
      %v2757 = vpop.f32.mrb[0].mxu0
      %v2758 = vpop.f32.mrb[0].mxu0
      %v2759 = vadd.f32 0.0, %v2758
      %v2760 = vpop.f32.mrb[0].mxu0
      %2761 = vmatprep.mubr.bf16.mxu0 %v2557
      %2762 = vmatmul.mubr.bf16.gmra.mrb[0].mxu0 %v2555
      %v2763 = vpop.f32.mrb[0].mxu0
      %v2764 = vadd.f32 0.0, %v2763
      %v2765 = vpop.f32.mrb[0].mxu0
      %v2766 = vpop.f32.mrb[0].mxu0
      %v2767 = vadd.f32 0.0, %v2766
      %v2768 = vpop.f32.mrb[0].mxu0
      %2769 = vmatprep.mubr.bf16.mxu0 %v2559
      %2770 = vmatmul.mubr.bf16.gmra.mrb[0].mxu0 %v2557
      %v2771 = vpop.f32.mrb[0].mxu0
      %v2772 = vadd.f32 0.0, %v2771
      %v2773 = vpop.f32.mrb[0].mxu0
      %v2774 = vpop.f32.mrb[0].mxu0
      %v2775 = vadd.f32 0.0, %v2774
      %v2776 = vpop.f32.mrb[0].mxu0
      %2777 = vmatprep.mubr.bf16.mxu0 %v2561
      %2778 = vmatmul.mubr.bf16.gmra.mrb[0].mxu0 %v2559
      %v2779 = vpop.f32.mrb[0].mxu0
      %v2780 = vadd.f32 0.0, %v2779
      %v2781 = vpop.f32.mrb[0].mxu0
      %v2782 = vpop.f32.mrb[0].mxu0
      %v2783 = vadd.f32 0.0, %v2782
      %v2784 = vpop.f32.mrb[0].mxu0
      %2785 = vmatprep.mubr.bf16.mxu0 %v2563
      %2786 = vmatmul.mubr.bf16.gmra.mrb[0].mxu0 %v2561
      %v2787 = vpop.f32.mrb[0].mxu0
      %v2788 = vadd.f32 0.0, %v2787
      %v2789 = vpop.f32.mrb[0].mxu0
      %v2790 = vpop.f32.mrb[0].mxu0
      %v2791 = vadd.f32 0.0, %v2790
      %v2792 = vpop.f32.mrb[0].mxu0
      %2793 = vmatprep.mubr.bf16.mxu0 %v2565
      %2794 = vmatmul.mubr.bf16.gmra.mrb[0].mxu0 %v2563
      %v2795 = vpop.f32.mrb[0].mxu0
      %v2796 = vadd.f32 0.0, %v2795
      %v2797 = vpop.f32.mrb[0].mxu0
      %v2798 = vpop.f32.mrb[0].mxu0
      %v2799 = vadd.f32 0.0, %v2798
      %v2800 = vpop.f32.mrb[0].mxu0
      %2801 = vmatprep.mubr.bf16.mxu0 %v2567
      %2802 = vmatmul.mubr.bf16.gmra.mrb[0].mxu0 %v2565
      %v2803 = vpop.f32.mrb[0].mxu0
      %v2804 = vadd.f32 0.0, %v2803
      %v2805 = vpop.f32.mrb[0].mxu0
      %v2806 = vpop.f32.mrb[0].mxu0
      %v2807 = vadd.f32 0.0, %v2806
      %v2808 = vpop.f32.mrb[0].mxu0
      %2809 = vmatprep.mubr.bf16.mxu0 %v2569
      %2810 = vmatmul.mubr.bf16.gmra.mrb[0].mxu0 %v2567
      %v2811 = vpop.f32.mrb[0].mxu0
      %v2812 = vadd.f32 0.0, %v2811
      %v2813 = vpop.f32.mrb[0].mxu0
      %v2814 = vpop.f32.mrb[0].mxu0
      %v2815 = vadd.f32 0.0, %v2814
      %v2816 = vpop.f32.mrb[0].mxu0
      %2817 = vmatprep.mubr.bf16.mxu0 %v2571
      %2818 = vmatmul.mubr.bf16.gmra.mrb[0].mxu0 %v2569
      %v2819 = vpop.f32.mrb[0].mxu0
      %v2820 = vadd.f32 0.0, %v2819
      %v2821 = vpop.f32.mrb[0].mxu0
      %v2822 = vpop.f32.mrb[0].mxu0
      %v2823 = vadd.f32 0.0, %v2822
      %v2824 = vpop.f32.mrb[0].mxu0
      %2825 = vmatprep.mubr.bf16.mxu0 %v2573
      %2826 = vmatmul.mubr.bf16.gmra.mrb[0].mxu0 %v2571
      %v2827 = vpop.f32.mrb[0].mxu0
      %v2828 = vadd.f32 0.0, %v2827
      %v2829 = vpop.f32.mrb[0].mxu0
      %v2830 = vpop.f32.mrb[0].mxu0
      %v2831 = vadd.f32 0.0, %v2830
      %v2832 = vpop.f32.mrb[0].mxu0
      %2833 = vmatprep.mubr.bf16.mxu0 %v2575
      %2834 = vmatmul.mubr.bf16.gmra.mrb[0].mxu0 %v2573
      %v2835 = vpop.f32.mrb[0].mxu0
      %v2836 = vadd.f32 0.0, %v2835
      %v2837 = vpop.f32.mrb[0].mxu0
      %v2838 = vpop.f32.mrb[0].mxu0
      %v2839 = vadd.f32 0.0, %v2838
      %v2840 = vpop.f32.mrb[0].mxu0
      %2841 = vmatprep.mubr.bf16.mxu0 %v2577
      %2842 = vmatmul.mubr.bf16.gmra.mrb[0].mxu0 %v2575
      %v2843 = vpop.f32.mrb[0].mxu0
      %v2844 = vadd.f32 0.0, %v2843
      %v2845 = vpop.f32.mrb[0].mxu0
      %v2846 = vpop.f32.mrb[0].mxu0
      %v2847 = vadd.f32 0.0, %v2846
      %v2848 = vpop.f32.mrb[0].mxu0
      %2849 = vmatprep.mubr.bf16.mxu0 %v2579
      %2850 = vmatmul.mubr.bf16.gmra.mrb[0].mxu0 %v2577
      %v2851 = vpop.f32.mrb[0].mxu0
      %v2852 = vadd.f32 0.0, %v2851
      %v2853 = vpop.f32.mrb[0].mxu0
      %v2854 = vpop.f32.mrb[0].mxu0
      %v2855 = vadd.f32 0.0, %v2854
      %v2856 = vpop.f32.mrb[0].mxu0
      %2857 = vmatprep.mubr.bf16.mxu0 %v2581
      %2858 = vmatmul.mubr.bf16.gmra.mrb[0].mxu0 %v2579
      %v2859 = vpop.f32.mrb[0].mxu0
      %v2860 = vadd.f32 0.0, %v2859
      %v2861 = vpop.f32.mrb[0].mxu0
      %v2862 = vpop.f32.mrb[0].mxu0
      %v2863 = vadd.f32 0.0, %v2862
      %v2864 = vpop.f32.mrb[0].mxu0
      %2865 = vmatprep.mubr.bf16.mxu0 %v2583
      %2866 = vmatmul.mubr.bf16.gmra.mrb[0].mxu0 %v2581
      %v2867 = vpop.f32.mrb[0].mxu0
      %v2868 = vadd.f32 0.0, %v2867
      %v2869 = vpop.f32.mrb[0].mxu0
      %v2870 = vpop.f32.mrb[0].mxu0
      %v2871 = vadd.f32 0.0, %v2870
      %v2872 = vpop.f32.mrb[0].mxu0
      %2873 = vmatprep.mubr.bf16.mxu0 %v2587
      %2874 = vmatmul.mubr.bf16.gmra.mrb[0].mxu0 %v2585
      %v2875 = vpop.f32.mrb[0].mxu0
      %v2876 = vadd.f32 0.0, %v2875
      %v2877 = vpop.f32.mrb[0].mxu0
      %v2878 = vpop.f32.mrb[0].mxu0
      %v2879 = vadd.f32 0.0, %v2878
      %v2880 = vpop.f32.mrb[0].mxu0
      %2881 = vdwg.mxu0
      %v2914 = vunpack.c.l.b16 %v2461
      %v2915 = vunpack.c.l.b16 %v2462
      %v2916 = vunpack.c.l.b16 %v2463
      %v2917 = vunpack.c.l.b16 %v2464
      %v2918 = vunpack.c.l.b16 %v2465
      %v2919 = vunpack.c.l.b16 %v2466
      %v2920 = vunpack.c.l.b16 %v2467
      %v2921 = vunpack.c.l.b16 %v2468
      %v2922 = vunpack.c.l.b16 %v2469
      %v2923 = vunpack.c.l.b16 %v2470
      %v2924 = vunpack.c.l.b16 %v2471
      %v2925 = vunpack.c.l.b16 %v2472
      %v2926 = vunpack.c.l.b16 %v2473
      %v2927 = vunpack.c.l.b16 %v2474
      %v2928 = vunpack.c.l.b16 %v2475
      %v2929 = vunpack.c.l.b16 %v2476
      %v2930 = vunpack.c.l.b16 %v2477
      %v2931 = vunpack.c.l.b16 %v2478
      %v2932 = vunpack.c.l.b16 %v2479
      %v2933 = vunpack.c.l.b16 %v2480
      %v2934 = vunpack.c.l.b16 %v2481
      %v2935 = vunpack.c.l.b16 %v2482
      %v2936 = vunpack.c.l.b16 %v2483
      %v2937 = vunpack.c.l.b16 %v2484
      %v2938 = vunpack.c.l.b16 %v2485
      %v2939 = vunpack.c.l.b16 %v2486
      %v2940 = vunpack.c.l.b16 %v2487
      %v2941 = vunpack.c.l.b16 %v2488
      %v2942 = vunpack.c.l.b16 %v2489
      %v2943 = vunpack.c.l.b16 %v2490
      %v2944 = vunpack.c.l.b16 %v2491
      %v2945 = vunpack.c.l.b16 %v2492
      %v2946 = vpack.c.b16 %v2915, %v2914
      %v2947 = vpack.c.b16 %v2917, %v2916
      %v2948 = vpack.c.b16 %v2919, %v2918
      %v2949 = vpack.c.b16 %v2921, %v2920
      %v2950 = vpack.c.b16 %v2923, %v2922
      %v2951 = vpack.c.b16 %v2925, %v2924
      %v2952 = vpack.c.b16 %v2927, %v2926
      %v2953 = vpack.c.b16 %v2929, %v2928
      %v2954 = vpack.c.b16 %v2931, %v2930
      %v2955 = vpack.c.b16 %v2933, %v2932
      %v2956 = vpack.c.b16 %v2935, %v2934
      %v2957 = vpack.c.b16 %v2937, %v2936
      %v2958 = vpack.c.b16 %v2939, %v2938
      %v2959 = vpack.c.b16 %v2941, %v2940
      %v2960 = vpack.c.b16 %v2943, %v2942
      %v2961 = vpack.c.b16 %v2945, %v2944
      %2978 = vmatprep.subr.bf16.mxu0 0
      %2979 = vmatpush1.bf16.msra.mxu0 %v2946
      %2980 = vmatprep.subr.bf16.mxu0 0
      %2981 = vmatpush1.bf16.msra.mxu0 %v2947
      %2982 = vmatprep.subr.bf16.mxu0 0
      %2983 = vmatpush1.bf16.msra.mxu0 %v2948
      %2984 = vmatprep.subr.bf16.mxu0 0
      %2985 = vmatpush1.bf16.msra.mxu0 %v2949
      %2986 = vmatprep.subr.bf16.mxu0 0
      %2987 = vmatpush1.bf16.msra.mxu0 %v2950
      %2988 = vmatprep.subr.bf16.mxu0 0
      %2989 = vmatpush1.bf16.msra.mxu0 %v2951
      %2990 = vmatprep.subr.bf16.mxu0 0
      %2991 = vmatpush1.bf16.msra.mxu0 %v2952
      %2992 = vmatprep.subr.bf16.mxu0 0
      %2993 = vmatpush1.bf16.msra.mxu0 %v2953
      %2994 = vmatprep.subr.bf16.mxu0 0
      %2995 = vmatpush1.bf16.msra.mxu0 %v2954
      %2996 = vmatprep.subr.bf16.mxu0 0
      %2997 = vmatpush1.bf16.msra.mxu0 %v2955
      %2998 = vmatprep.subr.bf16.mxu0 0
      %2999 = vmatpush1.bf16.msra.mxu0 %v2956
      %3000 = vmatprep.subr.bf16.mxu0 0
      %3001 = vmatpush1.bf16.msra.mxu0 %v2957
      %3002 = vmatprep.subr.bf16.mxu0 0
      %3003 = vmatpush1.bf16.msra.mxu0 %v2958
      %3004 = vmatprep.subr.bf16.mxu0 0
      %3005 = vmatpush1.bf16.msra.mxu0 %v2959
      %3006 = vmatprep.subr.bf16.mxu0 0
      %3007 = vmatpush1.bf16.msra.mxu0 %v2960
      %3008 = vmatprep.subr.bf16.mxu0 0
      %3009 = vmatpush1.bf16.msra.mxu0 %v2961
      %3010 = vmatprep.mubr.bf16.mxu0 %v2306
      %3011 = vmatmul.mubr.bf16.gmra.mrb[0].mxu0 %v2255
      %v3012 = vpop.f32.mrb[0].mxu0
      %v3013 = vadd.f32 %v2740, %v3012
      %v3014 = vpop.f32.mrb[0].mxu0
      %v3015 = vpop.f32.mrb[0].mxu0
      %v3016 = vadd.f32 %v2743, %v3015
      %v3017 = vpop.f32.mrb[0].mxu0
      %3018 = vmatprep.mubr.bf16.mxu0 %v2314
      %3019 = vmatmul.mubr.bf16.gmra.mrb[0].mxu0 %v2256
      %v3020 = vpop.f32.mrb[0].mxu0
      %v3021 = vadd.f32 %v2748, %v3020
      %v3022 = vpop.f32.mrb[0].mxu0
      %v3023 = vpop.f32.mrb[0].mxu0
      %v3024 = vadd.f32 %v2751, %v3023
      %v3025 = vpop.f32.mrb[0].mxu0
      %3026 = vmatprep.mubr.bf16.mxu0 %v2322
      %3027 = vmatmul.mubr.bf16.gmra.mrb[0].mxu0 %v2257
      %v3028 = vpop.f32.mrb[0].mxu0
      %v3029 = vadd.f32 %v2756, %v3028
      %v3030 = vpop.f32.mrb[0].mxu0
      %v3031 = vpop.f32.mrb[0].mxu0
      %v3032 = vadd.f32 %v2759, %v3031
      %v3033 = vpop.f32.mrb[0].mxu0
      %3034 = vmatprep.mubr.bf16.mxu0 %v2330
      %3035 = vmatmul.mubr.bf16.gmra.mrb[0].mxu0 %v2258
      %v3036 = vpop.f32.mrb[0].mxu0
      %v3037 = vadd.f32 %v2764, %v3036
      %v3038 = vpop.f32.mrb[0].mxu0
      %v3039 = vpop.f32.mrb[0].mxu0
      %v3040 = vadd.f32 %v2767, %v3039
      %v3041 = vpop.f32.mrb[0].mxu0
      %3042 = vmatprep.mubr.bf16.mxu0 %v2338
      %3043 = vmatmul.mubr.bf16.gmra.mrb[0].mxu0 %v2259
      %v3044 = vpop.f32.mrb[0].mxu0
      %v3045 = vadd.f32 %v2772, %v3044
      %v3046 = vpop.f32.mrb[0].mxu0
      %v3047 = vpop.f32.mrb[0].mxu0
      %v3048 = vadd.f32 %v2775, %v3047
      %v3049 = vpop.f32.mrb[0].mxu0
      %3050 = vmatprep.mubr.bf16.mxu0 %v2346
      %3051 = vmatmul.mubr.bf16.gmra.mrb[0].mxu0 %v2260
      %v3052 = vpop.f32.mrb[0].mxu0
      %v3053 = vadd.f32 %v2780, %v3052
      %v3054 = vpop.f32.mrb[0].mxu0
      %v3055 = vpop.f32.mrb[0].mxu0
      %v3056 = vadd.f32 %v2783, %v3055
      %v3057 = vpop.f32.mrb[0].mxu0
      %3058 = vmatprep.mubr.bf16.mxu0 %v2354
      %3059 = vmatmul.mubr.bf16.gmra.mrb[0].mxu0 %v2261
      %v3060 = vpop.f32.mrb[0].mxu0
      %v3061 = vadd.f32 %v2788, %v3060
      %v3062 = vpop.f32.mrb[0].mxu0
      %v3063 = vpop.f32.mrb[0].mxu0
      %v3064 = vadd.f32 %v2791, %v3063
      %v3065 = vpop.f32.mrb[0].mxu0
      %3066 = vmatprep.mubr.bf16.mxu0 %v2362
      %3067 = vmatmul.mubr.bf16.gmra.mrb[0].mxu0 %v2262
      %v3068 = vpop.f32.mrb[0].mxu0
      %v3069 = vadd.f32 %v2796, %v3068
      %v3070 = vpop.f32.mrb[0].mxu0
      %v3071 = vpop.f32.mrb[0].mxu0
      %v3072 = vadd.f32 %v2799, %v3071
      %v3073 = vpop.f32.mrb[0].mxu0
      %3074 = vmatprep.mubr.bf16.mxu0 %v2370
      %3075 = vmatmul.mubr.bf16.gmra.mrb[0].mxu0 %v2263
      %v3076 = vpop.f32.mrb[0].mxu0
      %v3077 = vadd.f32 %v2804, %v3076
      %v3078 = vpop.f32.mrb[0].mxu0
      %v3079 = vpop.f32.mrb[0].mxu0
      %v3080 = vadd.f32 %v2807, %v3079
      %v3081 = vpop.f32.mrb[0].mxu0
      %3082 = vmatprep.mubr.bf16.mxu0 %v2378
      %3083 = vmatmul.mubr.bf16.gmra.mrb[0].mxu0 %v2264
      %v3084 = vpop.f32.mrb[0].mxu0
      %v3085 = vadd.f32 %v2812, %v3084
      %v3086 = vpop.f32.mrb[0].mxu0
      %v3087 = vpop.f32.mrb[0].mxu0
      %v3088 = vadd.f32 %v2815, %v3087
      %v3089 = vpop.f32.mrb[0].mxu0
      %3090 = vmatprep.mubr.bf16.mxu0 %v2386
      %3091 = vmatmul.mubr.bf16.gmra.mrb[0].mxu0 %v2265
      %v3092 = vpop.f32.mrb[0].mxu0
      %v3093 = vadd.f32 %v2820, %v3092
      %v3094 = vpop.f32.mrb[0].mxu0
      %v3095 = vpop.f32.mrb[0].mxu0
      %v3096 = vadd.f32 %v2823, %v3095
      %v3097 = vpop.f32.mrb[0].mxu0
      %3098 = vmatprep.mubr.bf16.mxu0 %v2394
      %3099 = vmatmul.mubr.bf16.gmra.mrb[0].mxu0 %v2266
      %v3100 = vpop.f32.mrb[0].mxu0
      %v3101 = vadd.f32 %v2828, %v3100
      %v3102 = vpop.f32.mrb[0].mxu0
      %v3103 = vpop.f32.mrb[0].mxu0
      %v3104 = vadd.f32 %v2831, %v3103
      %v3105 = vpop.f32.mrb[0].mxu0
      %3106 = vmatprep.mubr.bf16.mxu0 %v2402
      %3107 = vmatmul.mubr.bf16.gmra.mrb[0].mxu0 %v2267
      %v3108 = vpop.f32.mrb[0].mxu0
      %v3109 = vadd.f32 %v2836, %v3108
      %v3110 = vpop.f32.mrb[0].mxu0
      %v3111 = vpop.f32.mrb[0].mxu0
      %v3112 = vadd.f32 %v2839, %v3111
      %v3113 = vpop.f32.mrb[0].mxu0
      %3114 = vmatprep.mubr.bf16.mxu0 %v2410
      %3115 = vmatmul.mubr.bf16.gmra.mrb[0].mxu0 %v2268
      %v3116 = vpop.f32.mrb[0].mxu0
      %v3117 = vadd.f32 %v2844, %v3116
      %v3118 = vpop.f32.mrb[0].mxu0
      %v3119 = vpop.f32.mrb[0].mxu0
      %v3120 = vadd.f32 %v2847, %v3119
      %v3121 = vpop.f32.mrb[0].mxu0
      %3122 = vmatprep.mubr.bf16.mxu0 %v2418
      %3123 = vmatmul.mubr.bf16.gmra.mrb[0].mxu0 %v2269
      %v3124 = vpop.f32.mrb[0].mxu0
      %v3125 = vadd.f32 %v2852, %v3124
      %v3126 = vpop.f32.mrb[0].mxu0
      %v3127 = vpop.f32.mrb[0].mxu0
      %v3128 = vadd.f32 %v2855, %v3127
      %v3129 = vpop.f32.mrb[0].mxu0
      %3130 = vmatprep.mubr.bf16.mxu0 %v2426
      %3131 = vmatmul.mubr.bf16.gmra.mrb[0].mxu0 %v2270
      %v3132 = vpop.f32.mrb[0].mxu0
      %v3133 = vadd.f32 %v2860, %v3132
      %v3134 = vpop.f32.mrb[0].mxu0
      %v3135 = vpop.f32.mrb[0].mxu0
      %v3136 = vadd.f32 %v2863, %v3135
      %v3137 = vpop.f32.mrb[0].mxu0
      %3138 = vmatprep.mubr.bf16.mxu0 %v2434
      %3139 = vmatmul.mubr.bf16.gmra.mrb[0].mxu0 %v2271
      %v3140 = vpop.f32.mrb[0].mxu0
      %v3141 = vadd.f32 %v2868, %v3140
      %v3142 = vpop.f32.mrb[0].mxu0
      %v3143 = vpop.f32.mrb[0].mxu0
      %v3144 = vadd.f32 %v2871, %v3143
      %v3145 = vpop.f32.mrb[0].mxu0
      %3146 = vmatprep.mubr.bf16.mxu0 %v2442
      %3147 = vmatmul.mubr.bf16.gmra.mrb[0].mxu0 %v2272
      %v3148 = vpop.f32.mrb[0].mxu0
      %v3149 = vadd.f32 %v2876, %v3148
      %v3150 = vpop.f32.mrb[0].mxu0
      %v3151 = vpop.f32.mrb[0].mxu0
      %v3152 = vadd.f32 %v2879, %v3151
      %v3153 = vpop.f32.mrb[0].mxu0
      %3154 = vdwg.mxu0
      %v3155 = vld [vmem:[#allocation2 + $0x98] sm:$0x3]
      %v3156 = vld [vmem:[#allocation2 + $0x8] sm:$0xc]
      %v3158 = vunpack.c.l.b16 %v3155
      %v3159 = vpack.c.b16 %v3158, %v3158
      %v3161 = vunpack.c.l.b16 %v3156
      %v3162 = vpack.c.b16 %v2222, %v3161
      %v3164 = vshrl.u32 %v3162, 16
      %v3166 = vshll.u32 %v3162, 16
      %v3168 = vrot.slane %v3166, 1
      %v3169 = vor.u32 %v3164, %v3168
      %v3170 = vsel %vm2294, %v3169, %v2313
      %v3172 = vshll.u32 %v2510, 16
      %v3174 = vrot.slane %v3172, 1
      %v3175 = vsel %vm2294, %v2437, %v3174
      %v3176 = vshrl.u32 %v2510, 16
      %v3178 = vor.u32 %v3176, %v3174
      %v3180 = vshll.u32 %v3159, 16
      %v3182 = vrot.slane %v3180, 1
      %v3183 = vsel %vm2294, %v3178, %v3182
      %v3184 = vshrl.u32 %v3159, 16
      %v3186 = vor.u32 %v3184, %v3182
      %v3187 = vld [vmem:[%s2 + $0x100] sm:$0xf]
      %v3188 = vld [vmem:[%s2 + $0x104] sm:$0xf]
      %v3189 = vld [vmem:[%s2 + $0x108] sm:$0xf]
      %v3190 = vld [vmem:[%s2 + $0x10c] sm:$0xf]
      %v3191 = vld [vmem:[%s2 + $0x110] sm:$0xf]
      %v3192 = vld [vmem:[%s2 + $0x114] sm:$0xf]
      %v3193 = vld [vmem:[%s2 + $0x118] sm:$0xf]
      %v3194 = vld [vmem:[%s2 + $0x11c] sm:$0xf]
      %v3195 = vld [vmem:[%s2 + $0x120] sm:$0xf]
      %v3196 = vld [vmem:[%s2 + $0x124] sm:$0xf]
      %v3197 = vld [vmem:[%s2 + $0x128] sm:$0xf]
      %v3198 = vld [vmem:[%s2 + $0x12c] sm:$0xf]
      %v3199 = vld [vmem:[%s2 + $0x130] sm:$0xf]
      %v3200 = vld [vmem:[%s2 + $0x134] sm:$0xf]
      %v3201 = vld [vmem:[%s2 + $0x138] sm:$0xf]
      %v3202 = vld [vmem:[%s2 + $0x13c] sm:$0xf]
      %v3203 = vld [vmem:[%s2 + $0x140] sm:$0xf]
      %v3204 = vld [vmem:[%s2 + $0x144] sm:$0xf]
      %v3205 = vld [vmem:[%s2 + $0x148] sm:$0xf]
      %v3206 = vld [vmem:[%s2 + $0x14c] sm:$0xf]
      %v3207 = vld [vmem:[%s2 + $0x150] sm:$0xf]
      %v3208 = vld [vmem:[%s2 + $0x154] sm:$0xf]
      %v3209 = vld [vmem:[%s2 + $0x158] sm:$0xf]
      %v3210 = vld [vmem:[%s2 + $0x15c] sm:$0xf]
      %v3211 = vld [vmem:[%s2 + $0x160] sm:$0xf]
      %v3212 = vld [vmem:[%s2 + $0x164] sm:$0xf]
      %v3213 = vld [vmem:[%s2 + $0x168] sm:$0xf]
      %v3214 = vld [vmem:[%s2 + $0x16c] sm:$0xf]
      %v3215 = vld [vmem:[%s2 + $0x170] sm:$0xf]
      %v3216 = vld [vmem:[%s2 + $0x174] sm:$0xf]
      %v3217 = vld [vmem:[%s2 + $0x178] sm:$0xf]
      %v3218 = vld [vmem:[%s2 + $0x17c] sm:$0xf]
      %vm3219 = vsmask.f32 6400
      %v3221 = vshrl.u32 %v2509, 16
      %v3223 = vrot.slane %v3221, 1
      %v3224 = vshll.u32 %v2509, 16
      %v3226 = vrot.slane %v3224, 2
      %v3227 = vor.u32 %v3223, %v3226
      %v3228 = vrot.slane %v2315, 1
      %v3229 = vrot.slane %v2311, 2
      %v3230 = vor.u32 %v3228, %v3229
      %v3231 = vsel %vm3219, %v3227, %v3230
      %v3233 = vshrl.u32 %v3170, 16
      %v3235 = vrot.slane %v3233, 1
      %v3236 = vshll.u32 %v3170, 16
      %v3238 = vrot.slane %v3236, 2
      %v3239 = vor.u32 %v3235, %v3238
      %v3241 = vshrl.u32 %v2322, 16
      %v3243 = vrot.slane %v3241, 1
      %v3244 = vshll.u32 %v2322, 16
      %v3246 = vrot.slane %v3244, 2
      %v3247 = vor.u32 %v3243, %v3246
      %v3248 = vsel %vm3219, %v3239, %v3247
      %v3249 = vrot.slane %v2323, 1
      %v3250 = vrot.slane %v2319, 2
      %v3251 = vor.u32 %v3249, %v3250
      %v3252 = vsel %vm3219, %v3230, %v3251
      %v3254 = vshrl.u32 %v2330, 16
      %v3256 = vrot.slane %v3254, 1
      %v3257 = vshll.u32 %v2330, 16
      %v3259 = vrot.slane %v3257, 2
      %v3260 = vor.u32 %v3256, %v3259
      %v3261 = vsel %vm3219, %v3247, %v3260
      %v3262 = vrot.slane %v2331, 1
      %v3263 = vrot.slane %v2327, 2
      %v3264 = vor.u32 %v3262, %v3263
      %v3265 = vsel %vm3219, %v3251, %v3264
      %v3267 = vshrl.u32 %v2338, 16
      %v3269 = vrot.slane %v3267, 1
      %v3270 = vshll.u32 %v2338, 16
      %v3272 = vrot.slane %v3270, 2
      %v3273 = vor.u32 %v3269, %v3272
      %v3274 = vsel %vm3219, %v3260, %v3273
      %v3275 = vrot.slane %v2339, 1
      %v3276 = vrot.slane %v2335, 2
      %v3277 = vor.u32 %v3275, %v3276
      %v3278 = vsel %vm3219, %v3264, %v3277
      %v3280 = vshrl.u32 %v2346, 16
      %v3282 = vrot.slane %v3280, 1
      %v3283 = vshll.u32 %v2346, 16
      %v3285 = vrot.slane %v3283, 2
      %v3286 = vor.u32 %v3282, %v3285
      %v3287 = vsel %vm3219, %v3273, %v3286
      %v3288 = vrot.slane %v2347, 1
      %v3289 = vrot.slane %v2343, 2
      %v3290 = vor.u32 %v3288, %v3289
      %v3291 = vsel %vm3219, %v3277, %v3290
      %v3293 = vshrl.u32 %v2354, 16
      %v3295 = vrot.slane %v3293, 1
      %v3296 = vshll.u32 %v2354, 16
      %v3298 = vrot.slane %v3296, 2
      %v3299 = vor.u32 %v3295, %v3298
      %v3300 = vsel %vm3219, %v3286, %v3299
      %v3301 = vrot.slane %v2355, 1
      %v3302 = vrot.slane %v2351, 2
      %v3303 = vor.u32 %v3301, %v3302
      %v3304 = vsel %vm3219, %v3290, %v3303
      %v3306 = vshrl.u32 %v2362, 16
      %v3308 = vrot.slane %v3306, 1
      %v3309 = vshll.u32 %v2362, 16
      %v3311 = vrot.slane %v3309, 2
      %v3312 = vor.u32 %v3308, %v3311
      %v3313 = vsel %vm3219, %v3299, %v3312
      %v3314 = vrot.slane %v2363, 1
      %v3315 = vrot.slane %v2359, 2
      %v3316 = vor.u32 %v3314, %v3315
      %v3317 = vsel %vm3219, %v3303, %v3316
      %v3319 = vshrl.u32 %v2370, 16
      %v3321 = vrot.slane %v3319, 1
      %v3322 = vshll.u32 %v2370, 16
      %v3324 = vrot.slane %v3322, 2
      %v3325 = vor.u32 %v3321, %v3324
      %v3326 = vsel %vm3219, %v3312, %v3325
      %v3327 = vrot.slane %v2371, 1
      %v3328 = vrot.slane %v2367, 2
      %v3329 = vor.u32 %v3327, %v3328
      %v3330 = vsel %vm3219, %v3316, %v3329
      %v3332 = vshrl.u32 %v2378, 16
      %v3334 = vrot.slane %v3332, 1
      %v3335 = vshll.u32 %v2378, 16
      %v3337 = vrot.slane %v3335, 2
      %v3338 = vor.u32 %v3334, %v3337
      %v3339 = vsel %vm3219, %v3325, %v3338
      %v3340 = vrot.slane %v2379, 1
      %v3341 = vrot.slane %v2375, 2
      %v3342 = vor.u32 %v3340, %v3341
      %v3343 = vsel %vm3219, %v3329, %v3342
      %v3345 = vshrl.u32 %v2386, 16
      %v3347 = vrot.slane %v3345, 1
      %v3348 = vshll.u32 %v2386, 16
      %v3350 = vrot.slane %v3348, 2
      %v3351 = vor.u32 %v3347, %v3350
      %v3352 = vsel %vm3219, %v3338, %v3351
      %v3353 = vrot.slane %v2387, 1
      %v3354 = vrot.slane %v2383, 2
      %v3355 = vor.u32 %v3353, %v3354
      %v3356 = vsel %vm3219, %v3342, %v3355
      %v3358 = vshrl.u32 %v2394, 16
      %v3360 = vrot.slane %v3358, 1
      %v3361 = vshll.u32 %v2394, 16
      %v3363 = vrot.slane %v3361, 2
      %v3364 = vor.u32 %v3360, %v3363
      %v3365 = vsel %vm3219, %v3351, %v3364
      %v3366 = vrot.slane %v2395, 1
      %v3367 = vrot.slane %v2391, 2
      %v3368 = vor.u32 %v3366, %v3367
      %v3369 = vsel %vm3219, %v3355, %v3368
      %v3371 = vshrl.u32 %v2402, 16
      %v3373 = vrot.slane %v3371, 1
      %v3374 = vshll.u32 %v2402, 16
      %v3376 = vrot.slane %v3374, 2
      %v3377 = vor.u32 %v3373, %v3376
      %v3378 = vsel %vm3219, %v3364, %v3377
      %v3379 = vrot.slane %v2403, 1
      %v3380 = vrot.slane %v2399, 2
      %v3381 = vor.u32 %v3379, %v3380
      %v3382 = vsel %vm3219, %v3368, %v3381
      %v3384 = vshrl.u32 %v2410, 16
      %v3386 = vrot.slane %v3384, 1
      %v3387 = vshll.u32 %v2410, 16
      %v3389 = vrot.slane %v3387, 2
      %v3390 = vor.u32 %v3386, %v3389
      %v3391 = vsel %vm3219, %v3377, %v3390
      %v3392 = vrot.slane %v2411, 1
      %v3393 = vrot.slane %v2407, 2
      %v3394 = vor.u32 %v3392, %v3393
      %v3395 = vsel %vm3219, %v3381, %v3394
      %v3397 = vshrl.u32 %v2418, 16
      %v3399 = vrot.slane %v3397, 1
      %v3400 = vshll.u32 %v2418, 16
      %v3402 = vrot.slane %v3400, 2
      %v3403 = vor.u32 %v3399, %v3402
      %v3404 = vsel %vm3219, %v3390, %v3403
      %v3405 = vrot.slane %v2419, 1
      %v3406 = vrot.slane %v2415, 2
      %v3407 = vor.u32 %v3405, %v3406
      %v3408 = vsel %vm3219, %v3394, %v3407
      %v3410 = vshrl.u32 %v2426, 16
      %v3412 = vrot.slane %v3410, 1
      %v3413 = vshll.u32 %v2426, 16
      %v3415 = vrot.slane %v3413, 2
      %v3416 = vor.u32 %v3412, %v3415
      %v3417 = vsel %vm3219, %v3403, %v3416
      %v3418 = vrot.slane %v2427, 1
      %v3419 = vrot.slane %v2423, 2
      %v3420 = vor.u32 %v3418, %v3419
      %v3421 = vsel %vm3219, %v3407, %v3420
      %v3423 = vshrl.u32 %v2434, 16
      %v3425 = vrot.slane %v3423, 1
      %v3426 = vshll.u32 %v2434, 16
      %v3428 = vrot.slane %v3426, 2
      %v3429 = vor.u32 %v3425, %v3428
      %v3430 = vsel %vm3219, %v3416, %v3429
      %v3431 = vrot.slane %v2435, 1
      %v3432 = vrot.slane %v2431, 2
      %v3433 = vor.u32 %v3431, %v3432
      %v3434 = vsel %vm3219, %v3420, %v3433
      %v3436 = vshrl.u32 %v3175, 16
      %v3438 = vrot.slane %v3436, 1
      %v3439 = vshll.u32 %v3175, 16
      %v3441 = vrot.slane %v3439, 2
      %v3442 = vor.u32 %v3438, %v3441
      %v3443 = vsel %vm3219, %v3429, %v3442
      %v3444 = vrot.slane %v3176, 1
      %v3445 = vrot.slane %v3172, 2
      %v3446 = vor.u32 %v3444, %v3445
      %v3447 = vsel %vm3219, %v3433, %v3446
      %v3449 = vshrl.u32 %v3183, 16
      %v3451 = vrot.slane %v3449, 1
      %v3452 = vshll.u32 %v3183, 16
      %v3454 = vrot.slane %v3452, 2
      %v3455 = vor.u32 %v3451, %v3454
      %v3456 = vsel %vm3219, %v3442, %v3455
      %v3457 = vrot.slane %v3184, 1
      %v3458 = vrot.slane %v3180, 2
      %v3459 = vor.u32 %v3457, %v3458
      %v3460 = vsel %vm3219, %v3446, %v3459
      %v3462 = vshrl.u32 %v3186, 16
      %v3464 = vrot.slane %v3462, 1
      %v3465 = vshll.u32 %v3186, 16
      %v3467 = vrot.slane %v3465, 2
      %v3468 = vor.u32 %v3464, %v3467
      %v3469 = vsel %vm3219, %v3455, %v3468
      %v3538 = vunpack.c.l.b16 %v3187
      %v3539 = vunpack.c.l.b16 %v3188
      %v3540 = vunpack.c.l.b16 %v3189
      %v3541 = vunpack.c.l.b16 %v3190
      %v3542 = vunpack.c.l.b16 %v3191
      %v3543 = vunpack.c.l.b16 %v3192
      %v3544 = vunpack.c.l.b16 %v3193
      %v3545 = vunpack.c.l.b16 %v3194
      %v3546 = vunpack.c.l.b16 %v3195
      %v3547 = vunpack.c.l.b16 %v3196
      %v3548 = vunpack.c.l.b16 %v3197
      %v3549 = vunpack.c.l.b16 %v3198
      %v3550 = vunpack.c.l.b16 %v3199
      %v3551 = vunpack.c.l.b16 %v3200
      %v3552 = vunpack.c.l.b16 %v3201
      %v3553 = vunpack.c.l.b16 %v3202
      %v3554 = vunpack.c.l.b16 %v3203
      %v3555 = vunpack.c.l.b16 %v3204
      %v3556 = vunpack.c.l.b16 %v3205
      %v3557 = vunpack.c.l.b16 %v3206
      %v3558 = vunpack.c.l.b16 %v3207
      %v3559 = vunpack.c.l.b16 %v3208
      %v3560 = vunpack.c.l.b16 %v3209
      %v3561 = vunpack.c.l.b16 %v3210
      %v3562 = vunpack.c.l.b16 %v3211
      %v3563 = vunpack.c.l.b16 %v3212
      %v3564 = vunpack.c.l.b16 %v3213
      %v3565 = vunpack.c.l.b16 %v3214
      %v3566 = vunpack.c.l.b16 %v3215
      %v3567 = vunpack.c.l.b16 %v3216
      %v3568 = vunpack.c.l.b16 %v3217
      %v3569 = vunpack.c.l.b16 %v3218
      %v3570 = vpack.c.b16 %v3539, %v3538
      %v3571 = vpack.c.b16 %v3541, %v3540
      %v3572 = vpack.c.b16 %v3543, %v3542
      %v3573 = vpack.c.b16 %v3545, %v3544
      %v3574 = vpack.c.b16 %v3547, %v3546
      %v3575 = vpack.c.b16 %v3549, %v3548
      %v3576 = vpack.c.b16 %v3551, %v3550
      %v3577 = vpack.c.b16 %v3553, %v3552
      %v3578 = vpack.c.b16 %v3555, %v3554
      %v3579 = vpack.c.b16 %v3557, %v3556
      %v3580 = vpack.c.b16 %v3559, %v3558
      %v3581 = vpack.c.b16 %v3561, %v3560
      %v3582 = vpack.c.b16 %v3563, %v3562
      %v3583 = vpack.c.b16 %v3565, %v3564
      %v3584 = vpack.c.b16 %v3567, %v3566
      %v3585 = vpack.c.b16 %v3569, %v3568
      %3602 = vmatprep.subr.bf16.mxu0 0
      %3603 = vmatpush1.bf16.msra.mxu0 %v3570
      %3604 = vmatprep.subr.bf16.mxu0 0
      %3605 = vmatpush1.bf16.msra.mxu0 %v3571
      %3606 = vmatprep.subr.bf16.mxu0 0
      %3607 = vmatpush1.bf16.msra.mxu0 %v3572
      %3608 = vmatprep.subr.bf16.mxu0 0
      %3609 = vmatpush1.bf16.msra.mxu0 %v3573
      %3610 = vmatprep.subr.bf16.mxu0 0
      %3611 = vmatpush1.bf16.msra.mxu0 %v3574
      %3612 = vmatprep.subr.bf16.mxu0 0
      %3613 = vmatpush1.bf16.msra.mxu0 %v3575
      %3614 = vmatprep.subr.bf16.mxu0 0
      %3615 = vmatpush1.bf16.msra.mxu0 %v3576
      %3616 = vmatprep.subr.bf16.mxu0 0
      %3617 = vmatpush1.bf16.msra.mxu0 %v3577
      %3618 = vmatprep.subr.bf16.mxu0 0
      %3619 = vmatpush1.bf16.msra.mxu0 %v3578
      %3620 = vmatprep.subr.bf16.mxu0 0
      %3621 = vmatpush1.bf16.msra.mxu0 %v3579
      %3622 = vmatprep.subr.bf16.mxu0 0
      %3623 = vmatpush1.bf16.msra.mxu0 %v3580
      %3624 = vmatprep.subr.bf16.mxu0 0
      %3625 = vmatpush1.bf16.msra.mxu0 %v3581
      %3626 = vmatprep.subr.bf16.mxu0 0
      %3627 = vmatpush1.bf16.msra.mxu0 %v3582
      %3628 = vmatprep.subr.bf16.mxu0 0
      %3629 = vmatpush1.bf16.msra.mxu0 %v3583
      %3630 = vmatprep.subr.bf16.mxu0 0
      %3631 = vmatpush1.bf16.msra.mxu0 %v3584
      %3632 = vmatprep.subr.bf16.mxu0 0
      %3633 = vmatpush1.bf16.msra.mxu0 %v3585
      %3634 = vmatprep.mubr.bf16.mxu0 %v3248
      %3635 = vmatmul.mubr.bf16.gmra.mrb[0].mxu0 %v3231
      %v3636 = vpop.f32.mrb[0].mxu0
      %v3637 = vadd.f32 0.0, %v3636
      %v3638 = vpop.f32.mrb[0].mxu0
      %v3639 = vpop.f32.mrb[0].mxu0
      %v3640 = vadd.f32 0.0, %v3639
      %v3641 = vpop.f32.mrb[0].mxu0
      %3642 = vmatprep.mubr.bf16.mxu0 %v3261
      %3643 = vmatmul.mubr.bf16.gmra.mrb[0].mxu0 %v3252
      %v3644 = vpop.f32.mrb[0].mxu0
      %v3645 = vadd.f32 0.0, %v3644
      %v3646 = vpop.f32.mrb[0].mxu0
      %v3647 = vpop.f32.mrb[0].mxu0
      %v3648 = vadd.f32 0.0, %v3647
      %v3649 = vpop.f32.mrb[0].mxu0
      %3650 = vmatprep.mubr.bf16.mxu0 %v3274
      %3651 = vmatmul.mubr.bf16.gmra.mrb[0].mxu0 %v3265
      %v3652 = vpop.f32.mrb[0].mxu0
      %v3653 = vadd.f32 0.0, %v3652
      %v3654 = vpop.f32.mrb[0].mxu0
      %v3655 = vpop.f32.mrb[0].mxu0
      %v3656 = vadd.f32 0.0, %v3655
      %v3657 = vpop.f32.mrb[0].mxu0
      %3658 = vmatprep.mubr.bf16.mxu0 %v3287
      %3659 = vmatmul.mubr.bf16.gmra.mrb[0].mxu0 %v3278
      %v3660 = vpop.f32.mrb[0].mxu0
      %v3661 = vadd.f32 0.0, %v3660
      %v3662 = vpop.f32.mrb[0].mxu0
      %v3663 = vpop.f32.mrb[0].mxu0
      %v3664 = vadd.f32 0.0, %v3663
      %v3665 = vpop.f32.mrb[0].mxu0
      %3666 = vmatprep.mubr.bf16.mxu0 %v3300
      %3667 = vmatmul.mubr.bf16.gmra.mrb[0].mxu0 %v3291
      %v3668 = vpop.f32.mrb[0].mxu0
      %v3669 = vadd.f32 0.0, %v3668
      %v3670 = vpop.f32.mrb[0].mxu0
      %v3671 = vpop.f32.mrb[0].mxu0
      %v3672 = vadd.f32 0.0, %v3671
      %v3673 = vpop.f32.mrb[0].mxu0
      %3674 = vmatprep.mubr.bf16.mxu0 %v3313
      %3675 = vmatmul.mubr.bf16.gmra.mrb[0].mxu0 %v3304
      %v3676 = vpop.f32.mrb[0].mxu0
      %v3677 = vadd.f32 0.0, %v3676
      %v3678 = vpop.f32.mrb[0].mxu0
      %v3679 = vpop.f32.mrb[0].mxu0
      %v3680 = vadd.f32 0.0, %v3679
      %v3681 = vpop.f32.mrb[0].mxu0
      %3682 = vmatprep.mubr.bf16.mxu0 %v3326
      %3683 = vmatmul.mubr.bf16.gmra.mrb[0].mxu0 %v3317
      %v3684 = vpop.f32.mrb[0].mxu0
      %v3685 = vadd.f32 0.0, %v3684
      %v3686 = vpop.f32.mrb[0].mxu0
      %v3687 = vpop.f32.mrb[0].mxu0
      %v3688 = vadd.f32 0.0, %v3687
      %v3689 = vpop.f32.mrb[0].mxu0
      %3690 = vmatprep.mubr.bf16.mxu0 %v3339
      %3691 = vmatmul.mubr.bf16.gmra.mrb[0].mxu0 %v3330
      %v3692 = vpop.f32.mrb[0].mxu0
      %v3693 = vadd.f32 0.0, %v3692
      %v3694 = vpop.f32.mrb[0].mxu0
      %v3695 = vpop.f32.mrb[0].mxu0
      %v3696 = vadd.f32 0.0, %v3695
      %v3697 = vpop.f32.mrb[0].mxu0
      %3698 = vmatprep.mubr.bf16.mxu0 %v3352
      %3699 = vmatmul.mubr.bf16.gmra.mrb[0].mxu0 %v3343
      %v3700 = vpop.f32.mrb[0].mxu0
      %v3701 = vadd.f32 0.0, %v3700
      %v3702 = vpop.f32.mrb[0].mxu0
      %v3703 = vpop.f32.mrb[0].mxu0
      %v3704 = vadd.f32 0.0, %v3703
      %v3705 = vpop.f32.mrb[0].mxu0
      %3706 = vmatprep.mubr.bf16.mxu0 %v3365
      %3707 = vmatmul.mubr.bf16.gmra.mrb[0].mxu0 %v3356
      %v3708 = vpop.f32.mrb[0].mxu0
      %v3709 = vadd.f32 0.0, %v3708
      %v3710 = vpop.f32.mrb[0].mxu0
      %v3711 = vpop.f32.mrb[0].mxu0
      %v3712 = vadd.f32 0.0, %v3711
      %v3713 = vpop.f32.mrb[0].mxu0
      %3714 = vmatprep.mubr.bf16.mxu0 %v3378
      %3715 = vmatmul.mubr.bf16.gmra.mrb[0].mxu0 %v3369
      %v3716 = vpop.f32.mrb[0].mxu0
      %v3717 = vadd.f32 0.0, %v3716
      %v3718 = vpop.f32.mrb[0].mxu0
      %v3719 = vpop.f32.mrb[0].mxu0
      %v3720 = vadd.f32 0.0, %v3719
      %v3721 = vpop.f32.mrb[0].mxu0
      %3722 = vmatprep.mubr.bf16.mxu0 %v3391
      %3723 = vmatmul.mubr.bf16.gmra.mrb[0].mxu0 %v3382
      %v3724 = vpop.f32.mrb[0].mxu0
      %v3725 = vadd.f32 0.0, %v3724
      %v3726 = vpop.f32.mrb[0].mxu0
      %v3727 = vpop.f32.mrb[0].mxu0
      %v3728 = vadd.f32 0.0, %v3727
      %v3729 = vpop.f32.mrb[0].mxu0
      %3730 = vmatprep.mubr.bf16.mxu0 %v3404
      %3731 = vmatmul.mubr.bf16.gmra.mrb[0].mxu0 %v3395
      %v3732 = vpop.f32.mrb[0].mxu0
      %v3733 = vadd.f32 0.0, %v3732
      %v3734 = vpop.f32.mrb[0].mxu0
      %v3735 = vpop.f32.mrb[0].mxu0
      %v3736 = vadd.f32 0.0, %v3735
      %v3737 = vpop.f32.mrb[0].mxu0
      %3738 = vmatprep.mubr.bf16.mxu0 %v3417
      %3739 = vmatmul.mubr.bf16.gmra.mrb[0].mxu0 %v3408
      %v3740 = vpop.f32.mrb[0].mxu0
      %v3741 = vadd.f32 0.0, %v3740
      %v3742 = vpop.f32.mrb[0].mxu0
      %v3743 = vpop.f32.mrb[0].mxu0
      %v3744 = vadd.f32 0.0, %v3743
      %v3745 = vpop.f32.mrb[0].mxu0
      %3746 = vmatprep.mubr.bf16.mxu0 %v3430
      %3747 = vmatmul.mubr.bf16.gmra.mrb[0].mxu0 %v3421
      %v3748 = vpop.f32.mrb[0].mxu0
      %v3749 = vadd.f32 0.0, %v3748
      %v3750 = vpop.f32.mrb[0].mxu0
      %v3751 = vpop.f32.mrb[0].mxu0
      %v3752 = vadd.f32 0.0, %v3751
      %v3753 = vpop.f32.mrb[0].mxu0
      %3754 = vmatprep.mubr.bf16.mxu0 %v3443
      %3755 = vmatmul.mubr.bf16.gmra.mrb[0].mxu0 %v3434
      %v3756 = vpop.f32.mrb[0].mxu0
      %v3757 = vadd.f32 0.0, %v3756
      %v3758 = vpop.f32.mrb[0].mxu0
      %v3759 = vpop.f32.mrb[0].mxu0
      %v3760 = vadd.f32 0.0, %v3759
      %v3761 = vpop.f32.mrb[0].mxu0
      %3762 = vmatprep.mubr.bf16.mxu0 %v3456
      %3763 = vmatmul.mubr.bf16.gmra.mrb[0].mxu0 %v3447
      %v3764 = vpop.f32.mrb[0].mxu0
      %v3765 = vadd.f32 0.0, %v3764
      %v3766 = vpop.f32.mrb[0].mxu0
      %v3767 = vpop.f32.mrb[0].mxu0
      %v3768 = vadd.f32 0.0, %v3767
      %v3769 = vpop.f32.mrb[0].mxu0
      %3770 = vmatprep.mubr.bf16.mxu0 %v3469
      %3771 = vmatmul.mubr.bf16.gmra.mrb[0].mxu0 %v3460
      %v3772 = vpop.f32.mrb[0].mxu0
      %v3773 = vadd.f32 0.0, %v3772
      %v3774 = vpop.f32.mrb[0].mxu0
      %v3775 = vpop.f32.mrb[0].mxu0
      %v3776 = vadd.f32 0.0, %v3775
      %v3777 = vpop.f32.mrb[0].mxu0
      %3778 = vdwg.mxu0
      %v3779 = vadd.f32 %v3013, %v3637
      %v3780 = vadd.f32 %v3016, %v3640
      %v3781 = vadd.f32 %v3021, %v3645
      %v3782 = vadd.f32 %v3024, %v3648
      %v3783 = vadd.f32 %v3029, %v3653
      %v3784 = vadd.f32 %v3032, %v3656
      %v3785 = vadd.f32 %v3037, %v3661
      %v3786 = vadd.f32 %v3040, %v3664
      %v3787 = vadd.f32 %v3045, %v3669
      %v3788 = vadd.f32 %v3048, %v3672
      %v3789 = vadd.f32 %v3053, %v3677
      %v3790 = vadd.f32 %v3056, %v3680
      %v3791 = vadd.f32 %v3061, %v3685
      %v3792 = vadd.f32 %v3064, %v3688
      %v3793 = vadd.f32 %v3069, %v3693
      %v3794 = vadd.f32 %v3072, %v3696
      %v3795 = vadd.f32 %v3077, %v3701
      %v3796 = vadd.f32 %v3080, %v3704
      %v3797 = vadd.f32 %v3085, %v3709
      %v3798 = vadd.f32 %v3088, %v3712
      %v3799 = vadd.f32 %v3093, %v3717
      %v3800 = vadd.f32 %v3096, %v3720
      %v3801 = vadd.f32 %v3101, %v3725
      %v3802 = vadd.f32 %v3104, %v3728
      %v3803 = vadd.f32 %v3109, %v3733
      %v3804 = vadd.f32 %v3112, %v3736
      %v3805 = vadd.f32 %v3117, %v3741
      %v3806 = vadd.f32 %v3120, %v3744
      %v3807 = vadd.f32 %v3125, %v3749
      %v3808 = vadd.f32 %v3128, %v3752
      %v3809 = vadd.f32 %v3133, %v3757
      %v3810 = vadd.f32 %v3136, %v3760
      %v3811 = vadd.f32 %v3141, %v3765
      %v3812 = vadd.f32 %v3144, %v3768
      %v3813 = vadd.f32 %v3149, %v3773
      %v3814 = vadd.f32 %v3152, %v3776
      %v3815 = vld [vmem:[#allocation2 + $0x10] sm:$0xc]
      %v3816 = vld [vmem:[#allocation2 + $0x14] sm:$0xf]
      %v3817 = vld [vmem:[#allocation2 + $0x18] sm:$0xf]
      %v3818 = vld [vmem:[#allocation2 + $0x1c] sm:$0xf]
      %v3819 = vld [vmem:[#allocation2 + $0x20] sm:$0xf]
      %v3820 = vld [vmem:[#allocation2 + $0x24] sm:$0xf]
      %v3821 = vld [vmem:[#allocation2 + $0x28] sm:$0xf]
      %v3822 = vld [vmem:[#allocation2 + $0x2c] sm:$0xf]
      %v3823 = vld [vmem:[#allocation2 + $0x30] sm:$0xf]
      %v3824 = vld [vmem:[#allocation2 + $0x34] sm:$0xf]
      %v3825 = vld [vmem:[#allocation2 + $0x38] sm:$0xf]
      %v3826 = vld [vmem:[#allocation2 + $0x3c] sm:$0xf]
      %v3827 = vld [vmem:[#allocation2 + $0x40] sm:$0xf]
      %v3828 = vld [vmem:[#allocation2 + $0x44] sm:$0xf]
      %v3829 = vld [vmem:[#allocation2 + $0x48] sm:$0xf]
      %v3830 = vld [vmem:[#allocation2 + $0x4c] sm:$0xf]
      %v3831 = vld [vmem:[#allocation2 + $0x50] sm:$0xf]
      %v3832 = vld [vmem:[#allocation2 + $0x54] sm:$0xf]
      %v3833 = vld [vmem:[#allocation2 + $0x58] sm:$0xf]
      %v3834 = vld [vmem:[#allocation2 + $0x5c] sm:$0xf]
      %v3835 = vld [vmem:[#allocation2 + $0x60] sm:$0xf]
      %v3836 = vld [vmem:[#allocation2 + $0x64] sm:$0xf]
      %v3837 = vld [vmem:[#allocation2 + $0x68] sm:$0xf]
      %v3838 = vld [vmem:[#allocation2 + $0x6c] sm:$0xf]
      %v3839 = vld [vmem:[#allocation2 + $0x70] sm:$0xf]
      %v3840 = vld [vmem:[#allocation2 + $0x74] sm:$0xf]
      %v3841 = vld [vmem:[#allocation2 + $0x78] sm:$0xf]
      %v3842 = vld [vmem:[#allocation2 + $0x7c] sm:$0xf]
      %v3843 = vld [vmem:[#allocation2 + $0x80] sm:$0xf]
      %v3844 = vld [vmem:[#allocation2 + $0x84] sm:$0xf]
      %v3845 = vld [vmem:[#allocation2 + $0x88] sm:$0xf]
      %v3846 = vld [vmem:[#allocation2 + $0x8c] sm:$0xf]
      %v3847 = vld [vmem:[#allocation2 + $0x90] sm:$0xf]
      %v3848 = vld [vmem:[#allocation2 + $0x94] sm:$0xf]
      %v3849 = vld [vmem:[#allocation2 + $0x98] sm:$0xf]
      %v3850 = vld [vmem:[#allocation2 + $0x9c] sm:$0xf]
      %v3851 = vld [vmem:[#allocation2 + $0xa0] sm:$0x3]
      %v3852 = vld [vmem:[#allocation2 + $0xa0] sm:$0x7]
      %v3890 = vunpack.c.l.b16 %v3815
      %v3891 = vunpack.c.l.b16 %v3816
      %v3892 = vunpack.c.l.b16 %v3817
      %v3893 = vunpack.c.l.b16 %v3818
      %v3894 = vunpack.c.l.b16 %v3819
      %v3895 = vunpack.c.l.b16 %v3820
      %v3896 = vunpack.c.l.b16 %v3821
      %v3897 = vunpack.c.l.b16 %v3822
      %v3898 = vunpack.c.l.b16 %v3823
      %v3899 = vunpack.c.l.b16 %v3824
      %v3900 = vunpack.c.l.b16 %v3825
      %v3901 = vunpack.c.l.b16 %v3826
      %v3902 = vunpack.c.l.b16 %v3827
      %v3903 = vunpack.c.l.b16 %v3828
      %v3904 = vunpack.c.l.b16 %v3829
      %v3905 = vunpack.c.l.b16 %v3830
      %v3906 = vunpack.c.l.b16 %v3831
      %v3907 = vunpack.c.l.b16 %v3832
      %v3908 = vunpack.c.l.b16 %v3833
      %v3909 = vunpack.c.l.b16 %v3834
      %v3910 = vunpack.c.l.b16 %v3835
      %v3911 = vunpack.c.l.b16 %v3836
      %v3912 = vunpack.c.l.b16 %v3837
      %v3913 = vunpack.c.l.b16 %v3838
      %v3914 = vunpack.c.l.b16 %v3839
      %v3915 = vunpack.c.l.b16 %v3840
      %v3916 = vunpack.c.l.b16 %v3841
      %v3917 = vunpack.c.l.b16 %v3842
      %v3918 = vunpack.c.l.b16 %v3843
      %v3919 = vunpack.c.l.b16 %v3844
      %v3920 = vunpack.c.l.b16 %v3845
      %v3921 = vunpack.c.l.b16 %v3846
      %v3922 = vunpack.c.l.b16 %v3847
      %v3923 = vunpack.c.l.b16 %v3848
      %v3924 = vunpack.c.l.b16 %v3849
      %v3925 = vunpack.c.l.b16 %v3850
      %v3926 = vunpack.c.l.b16 %v3851
      %v3927 = vpack.c.b16 %v3891, %v3890
      %v3928 = vpack.c.b16 %v3893, %v3892
      %v3929 = vpack.c.b16 %v3895, %v3894
      %v3930 = vpack.c.b16 %v3897, %v3896
      %v3931 = vpack.c.b16 %v3899, %v3898
      %v3932 = vpack.c.b16 %v3901, %v3900
      %v3933 = vpack.c.b16 %v3903, %v3902
      %v3934 = vpack.c.b16 %v3905, %v3904
      %v3935 = vpack.c.b16 %v3907, %v3906
      %v3936 = vpack.c.b16 %v3909, %v3908
      %v3937 = vpack.c.b16 %v3911, %v3910
      %v3938 = vpack.c.b16 %v3913, %v3912
      %v3939 = vpack.c.b16 %v3915, %v3914
      %v3940 = vpack.c.b16 %v3917, %v3916
      %v3941 = vpack.c.b16 %v3919, %v3918
      %v3942 = vpack.c.b16 %v3921, %v3920
      %v3943 = vpack.c.b16 %v3923, %v3922
      %v3944 = vpack.c.b16 %v3925, %v3924
      %v3945 = vpack.c.b16 %v3926, %v3926
      %v3947 = vunpack.c.l.b16 %v3852
      %v3948 = vpack.c.b16 %v3947, %v3947
      %v3950 = vshrl.u32 %v3927, 16
      %v3952 = vshll.u32 %v3927, 16
      %v3954 = vrot.slane %v3952, 1
      %v3955 = vor.u32 %v3950, %v3954
      %v3957 = vshll.u32 %v3928, 16
      %v3959 = vrot.slane %v3957, 1
      %v3960 = vsel %vm2294, %v3955, %v3959
      %v3961 = vshrl.u32 %v3928, 16
      %v3963 = vor.u32 %v3961, %v3959
      %v3965 = vshll.u32 %v3929, 16
      %v3967 = vrot.slane %v3965, 1
      %v3968 = vsel %vm2294, %v3963, %v3967
      %v3969 = vshrl.u32 %v3929, 16
      %v3971 = vor.u32 %v3969, %v3967
      %v3973 = vshll.u32 %v3930, 16
      %v3975 = vrot.slane %v3973, 1
      %v3976 = vsel %vm2294, %v3971, %v3975
      %v3977 = vshrl.u32 %v3930, 16
      %v3979 = vor.u32 %v3977, %v3975
      %v3981 = vshll.u32 %v3931, 16
      %v3983 = vrot.slane %v3981, 1
      %v3984 = vsel %vm2294, %v3979, %v3983
      %v3985 = vshrl.u32 %v3931, 16
      %v3987 = vor.u32 %v3985, %v3983
      %v3989 = vshll.u32 %v3932, 16
      %v3991 = vrot.slane %v3989, 1
      %v3992 = vsel %vm2294, %v3987, %v3991
      %v3993 = vshrl.u32 %v3932, 16
      %v3995 = vor.u32 %v3993, %v3991
      %v3997 = vshll.u32 %v3933, 16
      %v3999 = vrot.slane %v3997, 1
      %v4000 = vsel %vm2294, %v3995, %v3999
      %v4001 = vshrl.u32 %v3933, 16
      %v4003 = vor.u32 %v4001, %v3999
      %v4005 = vshll.u32 %v3934, 16
      %v4007 = vrot.slane %v4005, 1
      %v4008 = vsel %vm2294, %v4003, %v4007
      %v4009 = vshrl.u32 %v3934, 16
      %v4011 = vor.u32 %v4009, %v4007
      %v4013 = vshll.u32 %v3935, 16
      %v4015 = vrot.slane %v4013, 1
      %v4016 = vsel %vm2294, %v4011, %v4015
      %v4017 = vshrl.u32 %v3935, 16
      %v4019 = vor.u32 %v4017, %v4015
      %v4021 = vshll.u32 %v3936, 16
      %v4023 = vrot.slane %v4021, 1
      %v4024 = vsel %vm2294, %v4019, %v4023
      %v4025 = vshrl.u32 %v3936, 16
      %v4027 = vor.u32 %v4025, %v4023
      %v4029 = vshll.u32 %v3937, 16
      %v4031 = vrot.slane %v4029, 1
      %v4032 = vsel %vm2294, %v4027, %v4031
      %v4033 = vshrl.u32 %v3937, 16
      %v4035 = vor.u32 %v4033, %v4031
      %v4037 = vshll.u32 %v3938, 16
      %v4039 = vrot.slane %v4037, 1
      %v4040 = vsel %vm2294, %v4035, %v4039
      %v4041 = vshrl.u32 %v3938, 16
      %v4043 = vor.u32 %v4041, %v4039
      %v4045 = vshll.u32 %v3939, 16
      %v4047 = vrot.slane %v4045, 1
      %v4048 = vsel %vm2294, %v4043, %v4047
      %v4049 = vshrl.u32 %v3939, 16
      %v4051 = vor.u32 %v4049, %v4047
      %v4053 = vshll.u32 %v3940, 16
      %v4055 = vrot.slane %v4053, 1
      %v4056 = vsel %vm2294, %v4051, %v4055
      %v4057 = vshrl.u32 %v3940, 16
      %v4059 = vor.u32 %v4057, %v4055
      %v4061 = vshll.u32 %v3941, 16
      %v4063 = vrot.slane %v4061, 1
      %v4064 = vsel %vm2294, %v4059, %v4063
      %v4065 = vshrl.u32 %v3941, 16
      %v4067 = vor.u32 %v4065, %v4063
      %v4069 = vshll.u32 %v3942, 16
      %v4071 = vrot.slane %v4069, 1
      %v4072 = vsel %vm2294, %v4067, %v4071
      %v4073 = vshrl.u32 %v3942, 16
      %v4075 = vor.u32 %v4073, %v4071
      %v4077 = vshll.u32 %v3943, 16
      %v4079 = vrot.slane %v4077, 1
      %v4080 = vsel %vm2294, %v4075, %v4079
      %v4081 = vshrl.u32 %v3943, 16
      %v4083 = vor.u32 %v4081, %v4079
      %v4085 = vshll.u32 %v3944, 16
      %v4087 = vrot.slane %v4085, 1
      %v4088 = vsel %vm2294, %v4083, %v4087
      %v4089 = vshrl.u32 %v3944, 16
      %v4091 = vor.u32 %v4089, %v4087
      %v4093 = vshll.u32 %v3948, 16
      %v4095 = vrot.slane %v4093, 1
      %v4096 = vsel %vm2294, %v4091, %v4095
      %v4097 = vshrl.u32 %v3948, 16
      %v4099 = vor.u32 %v4097, %v4095
      %v4100 = vld [vmem:[%s2 + $0x180] sm:$0xf]
      %v4101 = vld [vmem:[%s2 + $0x184] sm:$0xf]
      %v4102 = vld [vmem:[%s2 + $0x188] sm:$0xf]
      %v4103 = vld [vmem:[%s2 + $0x18c] sm:$0xf]
      %v4104 = vld [vmem:[%s2 + $0x190] sm:$0xf]
      %v4105 = vld [vmem:[%s2 + $0x194] sm:$0xf]
      %v4106 = vld [vmem:[%s2 + $0x198] sm:$0xf]
      %v4107 = vld [vmem:[%s2 + $0x19c] sm:$0xf]
      %v4108 = vld [vmem:[%s2 + $0x1a0] sm:$0xf]
      %v4109 = vld [vmem:[%s2 + $0x1a4] sm:$0xf]
      %v4110 = vld [vmem:[%s2 + $0x1a8] sm:$0xf]
      %v4111 = vld [vmem:[%s2 + $0x1ac] sm:$0xf]
      %v4112 = vld [vmem:[%s2 + $0x1b0] sm:$0xf]
      %v4113 = vld [vmem:[%s2 + $0x1b4] sm:$0xf]
      %v4114 = vld [vmem:[%s2 + $0x1b8] sm:$0xf]
      %v4115 = vld [vmem:[%s2 + $0x1bc] sm:$0xf]
      %v4116 = vld [vmem:[%s2 + $0x1c0] sm:$0xf]
      %v4117 = vld [vmem:[%s2 + $0x1c4] sm:$0xf]
      %v4118 = vld [vmem:[%s2 + $0x1c8] sm:$0xf]
      %v4119 = vld [vmem:[%s2 + $0x1cc] sm:$0xf]
      %v4120 = vld [vmem:[%s2 + $0x1d0] sm:$0xf]
      %v4121 = vld [vmem:[%s2 + $0x1d4] sm:$0xf]
      %v4122 = vld [vmem:[%s2 + $0x1d8] sm:$0xf]
      %v4123 = vld [vmem:[%s2 + $0x1dc] sm:$0xf]
      %v4124 = vld [vmem:[%s2 + $0x1e0] sm:$0xf]
      %v4125 = vld [vmem:[%s2 + $0x1e4] sm:$0xf]
      %v4126 = vld [vmem:[%s2 + $0x1e8] sm:$0xf]
      %v4127 = vld [vmem:[%s2 + $0x1ec] sm:$0xf]
      %v4128 = vld [vmem:[%s2 + $0x1f0] sm:$0xf]
      %v4129 = vld [vmem:[%s2 + $0x1f4] sm:$0xf]
      %v4130 = vld [vmem:[%s2 + $0x1f8] sm:$0xf]
      %v4131 = vld [vmem:[%s2 + $0x1fc] sm:$0xf]
      %vm4132 = vcmask 1045504
      %v4133 = vrot.slane %v3927, 2
      %v4134 = vrot.slane %v3928, 2
      %v4135 = vsel %vm4132, %v4133, %v4134
      %v4136 = vrot.slane %v3960, 2
      %v4137 = vrot.slane %v3968, 2
      %v4138 = vsel %vm4132, %v4136, %v4137
      %v4139 = vrot.slane %v3929, 2
      %v4140 = vsel %vm4132, %v4134, %v4139
      %v4141 = vrot.slane %v3976, 2
      %v4142 = vsel %vm4132, %v4137, %v4141
      %v4143 = vrot.slane %v3930, 2
      %v4144 = vsel %vm4132, %v4139, %v4143
      %v4145 = vrot.slane %v3984, 2
      %v4146 = vsel %vm4132, %v4141, %v4145
      %v4147 = vrot.slane %v3931, 2
      %v4148 = vsel %vm4132, %v4143, %v4147
      %v4149 = vrot.slane %v3992, 2
      %v4150 = vsel %vm4132, %v4145, %v4149
      %v4151 = vrot.slane %v3932, 2
      %v4152 = vsel %vm4132, %v4147, %v4151
      %v4153 = vrot.slane %v4000, 2
      %v4154 = vsel %vm4132, %v4149, %v4153
      %v4155 = vrot.slane %v3933, 2
      %v4156 = vsel %vm4132, %v4151, %v4155
      %v4157 = vrot.slane %v4008, 2
      %v4158 = vsel %vm4132, %v4153, %v4157
      %v4159 = vrot.slane %v3934, 2
      %v4160 = vsel %vm4132, %v4155, %v4159
      %v4161 = vrot.slane %v4016, 2
      %v4162 = vsel %vm4132, %v4157, %v4161
      %v4163 = vrot.slane %v3935, 2
      %v4164 = vsel %vm4132, %v4159, %v4163
      %v4165 = vrot.slane %v4024, 2
      %v4166 = vsel %vm4132, %v4161, %v4165
      %v4167 = vrot.slane %v3936, 2
      %v4168 = vsel %vm4132, %v4163, %v4167
      %v4169 = vrot.slane %v4032, 2
      %v4170 = vsel %vm4132, %v4165, %v4169
      %v4171 = vrot.slane %v3937, 2
      %v4172 = vsel %vm4132, %v4167, %v4171
      %v4173 = vrot.slane %v4040, 2
      %v4174 = vsel %vm4132, %v4169, %v4173
      %v4175 = vrot.slane %v3938, 2
      %v4176 = vsel %vm4132, %v4171, %v4175
      %v4177 = vrot.slane %v4048, 2
      %v4178 = vsel %vm4132, %v4173, %v4177
      %v4179 = vrot.slane %v3939, 2
      %v4180 = vsel %vm4132, %v4175, %v4179
      %v4181 = vrot.slane %v4056, 2
      %v4182 = vsel %vm4132, %v4177, %v4181
      %v4183 = vrot.slane %v3940, 2
      %v4184 = vsel %vm4132, %v4179, %v4183
      %v4185 = vrot.slane %v4064, 2
      %v4186 = vsel %vm4132, %v4181, %v4185
      %v4187 = vrot.slane %v3941, 2
      %v4188 = vsel %vm4132, %v4183, %v4187
      %v4189 = vrot.slane %v4072, 2
      %v4190 = vsel %vm4132, %v4185, %v4189
      %v4191 = vrot.slane %v3942, 2
      %v4192 = vsel %vm4132, %v4187, %v4191
      %v4193 = vrot.slane %v4080, 2
      %v4194 = vsel %vm4132, %v4189, %v4193
      %v4195 = vrot.slane %v3943, 2
      %v4196 = vsel %vm4132, %v4191, %v4195
      %v4197 = vrot.slane %v4088, 2
      %v4198 = vsel %vm4132, %v4193, %v4197
      %v4199 = vrot.slane %v3944, 2
      %v4200 = vsel %vm4132, %v4195, %v4199
      %v4201 = vrot.slane %v4096, 2
      %v4202 = vsel %vm4132, %v4197, %v4201
      %v4203 = vrot.slane %v3945, 2
      %v4204 = vsel %vm4132, %v4199, %v4203
      %v4205 = vrot.slane %v4099, 2
      %v4206 = vsel %vm4132, %v4201, %v4205
      %v4275 = vunpack.c.l.b16 %v4100
      %v4276 = vunpack.c.l.b16 %v4101
      %v4277 = vunpack.c.l.b16 %v4102
      %v4278 = vunpack.c.l.b16 %v4103
      %v4279 = vunpack.c.l.b16 %v4104
      %v4280 = vunpack.c.l.b16 %v4105
      %v4281 = vunpack.c.l.b16 %v4106
      %v4282 = vunpack.c.l.b16 %v4107
      %v4283 = vunpack.c.l.b16 %v4108
      %v4284 = vunpack.c.l.b16 %v4109
      %v4285 = vunpack.c.l.b16 %v4110
      %v4286 = vunpack.c.l.b16 %v4111
      %v4287 = vunpack.c.l.b16 %v4112
      %v4288 = vunpack.c.l.b16 %v4113
      %v4289 = vunpack.c.l.b16 %v4114
      %v4290 = vunpack.c.l.b16 %v4115
      %v4291 = vunpack.c.l.b16 %v4116
      %v4292 = vunpack.c.l.b16 %v4117
      %v4293 = vunpack.c.l.b16 %v4118
      %v4294 = vunpack.c.l.b16 %v4119
      %v4295 = vunpack.c.l.b16 %v4120
      %v4296 = vunpack.c.l.b16 %v4121
      %v4297 = vunpack.c.l.b16 %v4122
      %v4298 = vunpack.c.l.b16 %v4123
      %v4299 = vunpack.c.l.b16 %v4124
      %v4300 = vunpack.c.l.b16 %v4125
      %v4301 = vunpack.c.l.b16 %v4126
      %v4302 = vunpack.c.l.b16 %v4127
      %v4303 = vunpack.c.l.b16 %v4128
      %v4304 = vunpack.c.l.b16 %v4129
      %v4305 = vunpack.c.l.b16 %v4130
      %v4306 = vunpack.c.l.b16 %v4131
      %v4307 = vpack.c.b16 %v4276, %v4275
      %v4308 = vpack.c.b16 %v4278, %v4277
      %v4309 = vpack.c.b16 %v4280, %v4279
      %v4310 = vpack.c.b16 %v4282, %v4281
      %v4311 = vpack.c.b16 %v4284, %v4283
      %v4312 = vpack.c.b16 %v4286, %v4285
      %v4313 = vpack.c.b16 %v4288, %v4287
      %v4314 = vpack.c.b16 %v4290, %v4289
      %v4315 = vpack.c.b16 %v4292, %v4291
      %v4316 = vpack.c.b16 %v4294, %v4293
      %v4317 = vpack.c.b16 %v4296, %v4295
      %v4318 = vpack.c.b16 %v4298, %v4297
      %v4319 = vpack.c.b16 %v4300, %v4299
      %v4320 = vpack.c.b16 %v4302, %v4301
      %v4321 = vpack.c.b16 %v4304, %v4303
      %v4322 = vpack.c.b16 %v4306, %v4305
      %4339 = vmatprep.subr.bf16.mxu0 0
      %4340 = vmatpush1.bf16.msra.mxu0 %v4307
      %4341 = vmatprep.subr.bf16.mxu0 0
      %4342 = vmatpush1.bf16.msra.mxu0 %v4308
      %4343 = vmatprep.subr.bf16.mxu0 0
      %4344 = vmatpush1.bf16.msra.mxu0 %v4309
      %4345 = vmatprep.subr.bf16.mxu0 0
      %4346 = vmatpush1.bf16.msra.mxu0 %v4310
      %4347 = vmatprep.subr.bf16.mxu0 0
      %4348 = vmatpush1.bf16.msra.mxu0 %v4311
      %4349 = vmatprep.subr.bf16.mxu0 0
      %4350 = vmatpush1.bf16.msra.mxu0 %v4312
      %4351 = vmatprep.subr.bf16.mxu0 0
      %4352 = vmatpush1.bf16.msra.mxu0 %v4313
      %4353 = vmatprep.subr.bf16.mxu0 0
      %4354 = vmatpush1.bf16.msra.mxu0 %v4314
      %4355 = vmatprep.subr.bf16.mxu0 0
      %4356 = vmatpush1.bf16.msra.mxu0 %v4315
      %4357 = vmatprep.subr.bf16.mxu0 0
      %4358 = vmatpush1.bf16.msra.mxu0 %v4316
      %4359 = vmatprep.subr.bf16.mxu0 0
      %4360 = vmatpush1.bf16.msra.mxu0 %v4317
      %4361 = vmatprep.subr.bf16.mxu0 0
      %4362 = vmatpush1.bf16.msra.mxu0 %v4318
      %4363 = vmatprep.subr.bf16.mxu0 0
      %4364 = vmatpush1.bf16.msra.mxu0 %v4319
      %4365 = vmatprep.subr.bf16.mxu0 0
      %4366 = vmatpush1.bf16.msra.mxu0 %v4320
      %4367 = vmatprep.subr.bf16.mxu0 0
      %4368 = vmatpush1.bf16.msra.mxu0 %v4321
      %4369 = vmatprep.subr.bf16.mxu0 0
      %4370 = vmatpush1.bf16.msra.mxu0 %v4322
      %4371 = vmatprep.mubr.bf16.mxu0 %v4138
      %4372 = vmatmul.mubr.bf16.gmra.mrb[0].mxu0 %v4135
      %v4373 = vpop.f32.mrb[0].mxu0
      %v4374 = vadd.f32 0.0, %v4373
      %v4375 = vpop.f32.mrb[0].mxu0
      %v4376 = vpop.f32.mrb[0].mxu0
      %v4377 = vadd.f32 0.0, %v4376
      %v4378 = vpop.f32.mrb[0].mxu0
      %4379 = vmatprep.mubr.bf16.mxu0 %v4142
      %4380 = vmatmul.mubr.bf16.gmra.mrb[0].mxu0 %v4140
      %v4381 = vpop.f32.mrb[0].mxu0
      %v4382 = vadd.f32 0.0, %v4381
      %v4383 = vpop.f32.mrb[0].mxu0
      %v4384 = vpop.f32.mrb[0].mxu0
      %v4385 = vadd.f32 0.0, %v4384
      %v4386 = vpop.f32.mrb[0].mxu0
      %4387 = vmatprep.mubr.bf16.mxu0 %v4146
      %4388 = vmatmul.mubr.bf16.gmra.mrb[0].mxu0 %v4144
      %v4389 = vpop.f32.mrb[0].mxu0
      %v4390 = vadd.f32 0.0, %v4389
      %v4391 = vpop.f32.mrb[0].mxu0
      %v4392 = vpop.f32.mrb[0].mxu0
      %v4393 = vadd.f32 0.0, %v4392
      %v4394 = vpop.f32.mrb[0].mxu0
      %4395 = vmatprep.mubr.bf16.mxu0 %v4150
      %4396 = vmatmul.mubr.bf16.gmra.mrb[0].mxu0 %v4148
      %v4397 = vpop.f32.mrb[0].mxu0
      %v4398 = vadd.f32 0.0, %v4397
      %v4399 = vpop.f32.mrb[0].mxu0
      %v4400 = vpop.f32.mrb[0].mxu0
      %v4401 = vadd.f32 0.0, %v4400
      %v4402 = vpop.f32.mrb[0].mxu0
      %4403 = vmatprep.mubr.bf16.mxu0 %v4154
      %4404 = vmatmul.mubr.bf16.gmra.mrb[0].mxu0 %v4152
      %v4405 = vpop.f32.mrb[0].mxu0
      %v4406 = vadd.f32 0.0, %v4405
      %v4407 = vpop.f32.mrb[0].mxu0
      %v4408 = vpop.f32.mrb[0].mxu0
      %v4409 = vadd.f32 0.0, %v4408
      %v4410 = vpop.f32.mrb[0].mxu0
      %4411 = vmatprep.mubr.bf16.mxu0 %v4158
      %4412 = vmatmul.mubr.bf16.gmra.mrb[0].mxu0 %v4156
      %v4413 = vpop.f32.mrb[0].mxu0
      %v4414 = vadd.f32 0.0, %v4413
      %v4415 = vpop.f32.mrb[0].mxu0
      %v4416 = vpop.f32.mrb[0].mxu0
      %v4417 = vadd.f32 0.0, %v4416
      %v4418 = vpop.f32.mrb[0].mxu0
      %4419 = vmatprep.mubr.bf16.mxu0 %v4162
      %4420 = vmatmul.mubr.bf16.gmra.mrb[0].mxu0 %v4160
      %v4421 = vpop.f32.mrb[0].mxu0
      %v4422 = vadd.f32 0.0, %v4421
      %v4423 = vpop.f32.mrb[0].mxu0
      %v4424 = vpop.f32.mrb[0].mxu0
      %v4425 = vadd.f32 0.0, %v4424
      %v4426 = vpop.f32.mrb[0].mxu0
      %4427 = vmatprep.mubr.bf16.mxu0 %v4166
      %4428 = vmatmul.mubr.bf16.gmra.mrb[0].mxu0 %v4164
      %v4429 = vpop.f32.mrb[0].mxu0
      %v4430 = vadd.f32 0.0, %v4429
      %v4431 = vpop.f32.mrb[0].mxu0
      %v4432 = vpop.f32.mrb[0].mxu0
      %v4433 = vadd.f32 0.0, %v4432
      %v4434 = vpop.f32.mrb[0].mxu0
      %4435 = vmatprep.mubr.bf16.mxu0 %v4170
      %4436 = vmatmul.mubr.bf16.gmra.mrb[0].mxu0 %v4168
      %v4437 = vpop.f32.mrb[0].mxu0
      %v4438 = vadd.f32 0.0, %v4437
      %v4439 = vpop.f32.mrb[0].mxu0
      %v4440 = vpop.f32.mrb[0].mxu0
      %v4441 = vadd.f32 0.0, %v4440
      %v4442 = vpop.f32.mrb[0].mxu0
      %4443 = vmatprep.mubr.bf16.mxu0 %v4174
      %4444 = vmatmul.mubr.bf16.gmra.mrb[0].mxu0 %v4172
      %v4445 = vpop.f32.mrb[0].mxu0
      %v4446 = vadd.f32 0.0, %v4445
      %v4447 = vpop.f32.mrb[0].mxu0
      %v4448 = vpop.f32.mrb[0].mxu0
      %v4449 = vadd.f32 0.0, %v4448
      %v4450 = vpop.f32.mrb[0].mxu0
      %4451 = vmatprep.mubr.bf16.mxu0 %v4178
      %4452 = vmatmul.mubr.bf16.gmra.mrb[0].mxu0 %v4176
      %v4453 = vpop.f32.mrb[0].mxu0
      %v4454 = vadd.f32 0.0, %v4453
      %v4455 = vpop.f32.mrb[0].mxu0
      %v4456 = vpop.f32.mrb[0].mxu0
      %v4457 = vadd.f32 0.0, %v4456
      %v4458 = vpop.f32.mrb[0].mxu0
      %4459 = vmatprep.mubr.bf16.mxu0 %v4182
      %4460 = vmatmul.mubr.bf16.gmra.mrb[0].mxu0 %v4180
      %v4461 = vpop.f32.mrb[0].mxu0
      %v4462 = vadd.f32 0.0, %v4461
      %v4463 = vpop.f32.mrb[0].mxu0
      %v4464 = vpop.f32.mrb[0].mxu0
      %v4465 = vadd.f32 0.0, %v4464
      %v4466 = vpop.f32.mrb[0].mxu0
      %4467 = vmatprep.mubr.bf16.mxu0 %v4186
      %4468 = vmatmul.mubr.bf16.gmra.mrb[0].mxu0 %v4184
      %v4469 = vpop.f32.mrb[0].mxu0
      %v4470 = vadd.f32 0.0, %v4469
      %v4471 = vpop.f32.mrb[0].mxu0
      %v4472 = vpop.f32.mrb[0].mxu0
      %v4473 = vadd.f32 0.0, %v4472
      %v4474 = vpop.f32.mrb[0].mxu0
      %4475 = vmatprep.mubr.bf16.mxu0 %v4190
      %4476 = vmatmul.mubr.bf16.gmra.mrb[0].mxu0 %v4188
      %v4477 = vpop.f32.mrb[0].mxu0
      %v4478 = vadd.f32 0.0, %v4477
      %v4479 = vpop.f32.mrb[0].mxu0
      %v4480 = vpop.f32.mrb[0].mxu0
      %v4481 = vadd.f32 0.0, %v4480
      %v4482 = vpop.f32.mrb[0].mxu0
      %4483 = vmatprep.mubr.bf16.mxu0 %v4194
      %4484 = vmatmul.mubr.bf16.gmra.mrb[0].mxu0 %v4192
      %v4485 = vpop.f32.mrb[0].mxu0
      %v4486 = vadd.f32 0.0, %v4485
      %v4487 = vpop.f32.mrb[0].mxu0
      %v4488 = vpop.f32.mrb[0].mxu0
      %v4489 = vadd.f32 0.0, %v4488
      %v4490 = vpop.f32.mrb[0].mxu0
      %4491 = vmatprep.mubr.bf16.mxu0 %v4198
      %4492 = vmatmul.mubr.bf16.gmra.mrb[0].mxu0 %v4196
      %v4493 = vpop.f32.mrb[0].mxu0
      %v4494 = vadd.f32 0.0, %v4493
      %v4495 = vpop.f32.mrb[0].mxu0
      %v4496 = vpop.f32.mrb[0].mxu0
      %v4497 = vadd.f32 0.0, %v4496
      %v4498 = vpop.f32.mrb[0].mxu0
      %4499 = vmatprep.mubr.bf16.mxu0 %v4202
      %4500 = vmatmul.mubr.bf16.gmra.mrb[0].mxu0 %v4200
      %v4501 = vpop.f32.mrb[0].mxu0
      %v4502 = vadd.f32 0.0, %v4501
      %v4503 = vpop.f32.mrb[0].mxu0
      %v4504 = vpop.f32.mrb[0].mxu0
      %v4505 = vadd.f32 0.0, %v4504
      %v4506 = vpop.f32.mrb[0].mxu0
      %4507 = vmatprep.mubr.bf16.mxu0 %v4206
      %4508 = vmatmul.mubr.bf16.gmra.mrb[0].mxu0 %v4204
      %v4509 = vpop.f32.mrb[0].mxu0
      %v4510 = vadd.f32 0.0, %v4509
      %v4511 = vpop.f32.mrb[0].mxu0
      %v4512 = vpop.f32.mrb[0].mxu0
      %v4513 = vadd.f32 0.0, %v4512
      %v4514 = vpop.f32.mrb[0].mxu0
      %4515 = vdwg.mxu0
      %v4516 = vadd.f32 %v3779, %v4374
      %v4517 = vadd.f32 %v3780, %v4377
      %v4518 = vadd.f32 %v3781, %v4382
      %v4519 = vadd.f32 %v3782, %v4385
      %v4520 = vadd.f32 %v3783, %v4390
      %v4521 = vadd.f32 %v3784, %v4393
      %v4522 = vadd.f32 %v3785, %v4398
      %v4523 = vadd.f32 %v3786, %v4401
      %v4524 = vadd.f32 %v3787, %v4406
      %v4525 = vadd.f32 %v3788, %v4409
      %v4526 = vadd.f32 %v3789, %v4414
      %v4527 = vadd.f32 %v3790, %v4417
      %v4528 = vadd.f32 %v3791, %v4422
      %v4529 = vadd.f32 %v3792, %v4425
      %v4530 = vadd.f32 %v3793, %v4430
      %v4531 = vadd.f32 %v3794, %v4433
      %v4532 = vadd.f32 %v3795, %v4438
      %v4533 = vadd.f32 %v3796, %v4441
      %v4534 = vadd.f32 %v3797, %v4446
      %v4535 = vadd.f32 %v3798, %v4449
      %v4536 = vadd.f32 %v3799, %v4454
      %v4537 = vadd.f32 %v3800, %v4457
      %v4538 = vadd.f32 %v3801, %v4462
      %v4539 = vadd.f32 %v3802, %v4465
      %v4540 = vadd.f32 %v3803, %v4470
      %v4541 = vadd.f32 %v3804, %v4473
      %v4542 = vadd.f32 %v3805, %v4478
      %v4543 = vadd.f32 %v3806, %v4481
      %v4544 = vadd.f32 %v3807, %v4486
      %v4545 = vadd.f32 %v3808, %v4489
      %v4546 = vadd.f32 %v3809, %v4494
      %v4547 = vadd.f32 %v3810, %v4497
      %v4548 = vadd.f32 %v3811, %v4502
      %v4549 = vadd.f32 %v3812, %v4505
      %v4550 = vadd.f32 %v3813, %v4510
      %v4551 = vadd.f32 %v3814, %v4513
      %v4552 = vld [vmem:[#allocation2 + $0x10] sm:$0x8]
      %v4553 = vld [vmem:[%s2 + $0x200] sm:$0xf]
      %v4554 = vld [vmem:[%s2 + $0x204] sm:$0xf]
      %v4555 = vld [vmem:[%s2 + $0x208] sm:$0xf]
      %v4556 = vld [vmem:[%s2 + $0x20c] sm:$0xf]
      %v4557 = vld [vmem:[%s2 + $0x210] sm:$0xf]
      %v4558 = vld [vmem:[%s2 + $0x214] sm:$0xf]
      %v4559 = vld [vmem:[%s2 + $0x218] sm:$0xf]
      %v4560 = vld [vmem:[%s2 + $0x21c] sm:$0xf]
      %v4561 = vld [vmem:[%s2 + $0x220] sm:$0xf]
      %v4562 = vld [vmem:[%s2 + $0x224] sm:$0xf]
      %v4563 = vld [vmem:[%s2 + $0x228] sm:$0xf]
      %v4564 = vld [vmem:[%s2 + $0x22c] sm:$0xf]
      %v4565 = vld [vmem:[%s2 + $0x230] sm:$0xf]
      %v4566 = vld [vmem:[%s2 + $0x234] sm:$0xf]
      %v4567 = vld [vmem:[%s2 + $0x238] sm:$0xf]
      %v4568 = vld [vmem:[%s2 + $0x23c] sm:$0xf]
      %v4570 = vunpack.c.l.b16 %v4552
      %v4571 = vpack.c.b16 %v3891, %v4570
      %vm4572 = vcmask 1044480
      %v4573 = vrot.slane %v4571, 3
      %v4574 = vrot.slane %v3928, 3
      %v4575 = vsel %vm4572, %v4573, %v4574
      %v4576 = vrot.slane %v3929, 3
      %v4577 = vsel %vm4572, %v4574, %v4576
      %v4578 = vrot.slane %v3930, 3
      %v4579 = vsel %vm4572, %v4576, %v4578
      %v4580 = vrot.slane %v3931, 3
      %v4581 = vsel %vm4572, %v4578, %v4580
      %v4582 = vrot.slane %v3932, 3
      %v4583 = vsel %vm4572, %v4580, %v4582
      %v4584 = vrot.slane %v3933, 3
      %v4585 = vsel %vm4572, %v4582, %v4584
      %v4586 = vrot.slane %v3934, 3
      %v4587 = vsel %vm4572, %v4584, %v4586
      %v4588 = vrot.slane %v3935, 3
      %v4589 = vsel %vm4572, %v4586, %v4588
      %v4590 = vrot.slane %v3936, 3
      %v4591 = vsel %vm4572, %v4588, %v4590
      %v4592 = vrot.slane %v3937, 3
      %v4593 = vsel %vm4572, %v4590, %v4592
      %v4594 = vrot.slane %v3938, 3
      %v4595 = vsel %vm4572, %v4592, %v4594
      %v4596 = vrot.slane %v3939, 3
      %v4597 = vsel %vm4572, %v4594, %v4596
      %v4598 = vrot.slane %v3940, 3
      %v4599 = vsel %vm4572, %v4596, %v4598
      %v4600 = vrot.slane %v3941, 3
      %v4601 = vsel %vm4572, %v4598, %v4600
      %v4602 = vrot.slane %v3942, 3
      %v4603 = vsel %vm4572, %v4600, %v4602
      %v4604 = vrot.slane %v3943, 3
      %v4605 = vsel %vm4572, %v4602, %v4604
      %v4606 = vrot.slane %v3944, 3
      %v4607 = vsel %vm4572, %v4604, %v4606
      %v4608 = vrot.slane %v3948, 3
      %v4609 = vsel %vm4572, %v4606, %v4608
      %v4644 = vunpack.c.l.b16 %v4553
      %v4645 = vunpack.c.l.b16 %v4554
      %v4646 = vunpack.c.l.b16 %v4555
      %v4647 = vunpack.c.l.b16 %v4556
      %v4648 = vunpack.c.l.b16 %v4557
      %v4649 = vunpack.c.l.b16 %v4558
      %v4650 = vunpack.c.l.b16 %v4559
      %v4651 = vunpack.c.l.b16 %v4560
      %v4652 = vunpack.c.l.b16 %v4561
      %v4653 = vunpack.c.l.b16 %v4562
      %v4654 = vunpack.c.l.b16 %v4563
      %v4655 = vunpack.c.l.b16 %v4564
      %v4656 = vunpack.c.l.b16 %v4565
      %v4657 = vunpack.c.l.b16 %v4566
      %v4658 = vunpack.c.l.b16 %v4567
      %v4659 = vunpack.c.l.b16 %v4568
      %v4660 = vpack.c.b16 %v4645, %v4644
      %v4661 = vpack.c.b16 %v4647, %v4646
      %v4662 = vpack.c.b16 %v4649, %v4648
      %v4663 = vpack.c.b16 %v4651, %v4650
      %v4664 = vpack.c.b16 %v4653, %v4652
      %v4665 = vpack.c.b16 %v4655, %v4654
      %v4666 = vpack.c.b16 %v4657, %v4656
      %v4667 = vpack.c.b16 %v4659, %v4658
      %4676 = vmatprep.subr.bf16.mxu0 0
      %4677 = vmatpush1.bf16.msra.mxu0 %v4660
      %4678 = vmatprep.subr.bf16.mxu0 0
      %4679 = vmatpush1.bf16.msra.mxu0 %v4661
      %4680 = vmatprep.subr.bf16.mxu0 0
      %4681 = vmatpush1.bf16.msra.mxu0 %v4662
      %4682 = vmatprep.subr.bf16.mxu0 0
      %4683 = vmatpush1.bf16.msra.mxu0 %v4663
      %4684 = vmatprep.subr.bf16.mxu0 0
      %4685 = vmatpush1.bf16.msra.mxu0 %v4664
      %4686 = vmatprep.subr.bf16.mxu0 0
      %4687 = vmatpush1.bf16.msra.mxu0 %v4665
      %4688 = vmatprep.subr.bf16.mxu0 0
      %4689 = vmatpush1.bf16.msra.mxu0 %v4666
      %4690 = vmatprep.subr.bf16.mxu0 0
      %4691 = vmatpush1.bf16.msra.mxu0 %v4667
      %4692 = vmatprep.subr.bf16.mxu0 0
      %4693 = vmatpush1.bf16.msra.mxu0 0
      %4694 = vmatprep.subr.bf16.mxu0 0
      %4695 = vmatpush1.bf16.msra.mxu0 0
      %4696 = vmatprep.subr.bf16.mxu0 0
      %4697 = vmatpush1.bf16.msra.mxu0 0
      %4698 = vmatprep.subr.bf16.mxu0 0
      %4699 = vmatpush1.bf16.msra.mxu0 0
      %4700 = vmatprep.subr.bf16.mxu0 0
      %4701 = vmatpush1.bf16.msra.mxu0 0
      %4702 = vmatprep.subr.bf16.mxu0 0
      %4703 = vmatpush1.bf16.msra.mxu0 0
      %4704 = vmatprep.subr.bf16.mxu0 0
      %4705 = vmatpush1.bf16.msra.mxu0 0
      %4706 = vmatprep.subr.bf16.mxu0 0
      %4707 = vmatpush1.bf16.msra.mxu0 0
      %4708 = vmatprep.mubr.bf16.mxu0 0
      %4709 = vmatmul.mubr.bf16.gmra.mrb[0].mxu0 %v4575
      %v4710 = vpop.f32.mrb[0].mxu0
      %v4711 = vadd.f32 0.0, %v4710
      %v4712 = vpop.f32.mrb[0].mxu0
      %v4713 = vpop.f32.mrb[0].mxu0
      %v4714 = vadd.f32 0.0, %v4713
      %v4715 = vpop.f32.mrb[0].mxu0
      %4716 = vmatprep.mubr.bf16.mxu0 0
      %4717 = vmatmul.mubr.bf16.gmra.mrb[0].mxu0 %v4577
      %v4718 = vpop.f32.mrb[0].mxu0
      %v4719 = vadd.f32 0.0, %v4718
      %v4720 = vpop.f32.mrb[0].mxu0
      %v4721 = vpop.f32.mrb[0].mxu0
      %v4722 = vadd.f32 0.0, %v4721
      %v4723 = vpop.f32.mrb[0].mxu0
      %4724 = vmatprep.mubr.bf16.mxu0 0
      %4725 = vmatmul.mubr.bf16.gmra.mrb[0].mxu0 %v4579
      %v4726 = vpop.f32.mrb[0].mxu0
      %v4727 = vadd.f32 0.0, %v4726
      %v4728 = vpop.f32.mrb[0].mxu0
      %v4729 = vpop.f32.mrb[0].mxu0
      %v4730 = vadd.f32 0.0, %v4729
      %v4731 = vpop.f32.mrb[0].mxu0
      %4732 = vmatprep.mubr.bf16.mxu0 0
      %4733 = vmatmul.mubr.bf16.gmra.mrb[0].mxu0 %v4581
      %v4734 = vpop.f32.mrb[0].mxu0
      %v4735 = vadd.f32 0.0, %v4734
      %v4736 = vpop.f32.mrb[0].mxu0
      %v4737 = vpop.f32.mrb[0].mxu0
      %v4738 = vadd.f32 0.0, %v4737
      %v4739 = vpop.f32.mrb[0].mxu0
      %4740 = vmatprep.mubr.bf16.mxu0 0
      %4741 = vmatmul.mubr.bf16.gmra.mrb[0].mxu0 %v4583
      %v4742 = vpop.f32.mrb[0].mxu0
      %v4743 = vadd.f32 0.0, %v4742
      %v4744 = vpop.f32.mrb[0].mxu0
      %v4745 = vpop.f32.mrb[0].mxu0
      %v4746 = vadd.f32 0.0, %v4745
      %v4747 = vpop.f32.mrb[0].mxu0
      %4748 = vmatprep.mubr.bf16.mxu0 0
      %4749 = vmatmul.mubr.bf16.gmra.mrb[0].mxu0 %v4585
      %v4750 = vpop.f32.mrb[0].mxu0
      %v4751 = vadd.f32 0.0, %v4750
      %v4752 = vpop.f32.mrb[0].mxu0
      %v4753 = vpop.f32.mrb[0].mxu0
      %v4754 = vadd.f32 0.0, %v4753
      %v4755 = vpop.f32.mrb[0].mxu0
      %4756 = vmatprep.mubr.bf16.mxu0 0
      %4757 = vmatmul.mubr.bf16.gmra.mrb[0].mxu0 %v4587
      %v4758 = vpop.f32.mrb[0].mxu0
      %v4759 = vadd.f32 0.0, %v4758
      %v4760 = vpop.f32.mrb[0].mxu0
      %v4761 = vpop.f32.mrb[0].mxu0
      %v4762 = vadd.f32 0.0, %v4761
      %v4763 = vpop.f32.mrb[0].mxu0
      %4764 = vmatprep.mubr.bf16.mxu0 0
      %4765 = vmatmul.mubr.bf16.gmra.mrb[0].mxu0 %v4589
      %v4766 = vpop.f32.mrb[0].mxu0
      %v4767 = vadd.f32 0.0, %v4766
      %v4768 = vpop.f32.mrb[0].mxu0
      %v4769 = vpop.f32.mrb[0].mxu0
      %v4770 = vadd.f32 0.0, %v4769
      %v4771 = vpop.f32.mrb[0].mxu0
      %4772 = vmatprep.mubr.bf16.mxu0 0
      %4773 = vmatmul.mubr.bf16.gmra.mrb[0].mxu0 %v4591
      %v4774 = vpop.f32.mrb[0].mxu0
      %v4775 = vadd.f32 0.0, %v4774
      %v4776 = vpop.f32.mrb[0].mxu0
      %v4777 = vpop.f32.mrb[0].mxu0
      %v4778 = vadd.f32 0.0, %v4777
      %v4779 = vpop.f32.mrb[0].mxu0
      %4780 = vmatprep.mubr.bf16.mxu0 0
      %4781 = vmatmul.mubr.bf16.gmra.mrb[0].mxu0 %v4593
      %v4782 = vpop.f32.mrb[0].mxu0
      %v4783 = vadd.f32 0.0, %v4782
      %v4784 = vpop.f32.mrb[0].mxu0
      %v4785 = vpop.f32.mrb[0].mxu0
      %v4786 = vadd.f32 0.0, %v4785
      %v4787 = vpop.f32.mrb[0].mxu0
      %4788 = vmatprep.mubr.bf16.mxu0 0
      %4789 = vmatmul.mubr.bf16.gmra.mrb[0].mxu0 %v4595
      %v4790 = vpop.f32.mrb[0].mxu0
      %v4791 = vadd.f32 0.0, %v4790
      %v4792 = vpop.f32.mrb[0].mxu0
      %v4793 = vpop.f32.mrb[0].mxu0
      %v4794 = vadd.f32 0.0, %v4793
      %v4795 = vpop.f32.mrb[0].mxu0
      %4796 = vmatprep.mubr.bf16.mxu0 0
      %4797 = vmatmul.mubr.bf16.gmra.mrb[0].mxu0 %v4597
      %v4798 = vpop.f32.mrb[0].mxu0
      %v4799 = vadd.f32 0.0, %v4798
      %v4800 = vpop.f32.mrb[0].mxu0
      %v4801 = vpop.f32.mrb[0].mxu0
      %v4802 = vadd.f32 0.0, %v4801
      %v4803 = vpop.f32.mrb[0].mxu0
      %4804 = vmatprep.mubr.bf16.mxu0 0
      %4805 = vmatmul.mubr.bf16.gmra.mrb[0].mxu0 %v4599
      %v4806 = vpop.f32.mrb[0].mxu0
      %v4807 = vadd.f32 0.0, %v4806
      %v4808 = vpop.f32.mrb[0].mxu0
      %v4809 = vpop.f32.mrb[0].mxu0
      %v4810 = vadd.f32 0.0, %v4809
      %v4811 = vpop.f32.mrb[0].mxu0
      %4812 = vmatprep.mubr.bf16.mxu0 0
      %4813 = vmatmul.mubr.bf16.gmra.mrb[0].mxu0 %v4601
      %v4814 = vpop.f32.mrb[0].mxu0
      %v4815 = vadd.f32 0.0, %v4814
      %v4816 = vpop.f32.mrb[0].mxu0
      %v4817 = vpop.f32.mrb[0].mxu0
      %v4818 = vadd.f32 0.0, %v4817
      %v4819 = vpop.f32.mrb[0].mxu0
      %4820 = vmatprep.mubr.bf16.mxu0 0
      %4821 = vmatmul.mubr.bf16.gmra.mrb[0].mxu0 %v4603
      %v4822 = vpop.f32.mrb[0].mxu0
      %v4823 = vadd.f32 0.0, %v4822
      %v4824 = vpop.f32.mrb[0].mxu0
      %v4825 = vpop.f32.mrb[0].mxu0
      %v4826 = vadd.f32 0.0, %v4825
      %v4827 = vpop.f32.mrb[0].mxu0
      %4828 = vmatprep.mubr.bf16.mxu0 0
      %4829 = vmatmul.mubr.bf16.gmra.mrb[0].mxu0 %v4605
      %v4830 = vpop.f32.mrb[0].mxu0
      %v4831 = vadd.f32 0.0, %v4830
      %v4832 = vpop.f32.mrb[0].mxu0
      %v4833 = vpop.f32.mrb[0].mxu0
      %v4834 = vadd.f32 0.0, %v4833
      %v4835 = vpop.f32.mrb[0].mxu0
      %4836 = vmatprep.mubr.bf16.mxu0 0
      %4837 = vmatmul.mubr.bf16.gmra.mrb[0].mxu0 %v4607
      %v4838 = vpop.f32.mrb[0].mxu0
      %v4839 = vadd.f32 0.0, %v4838
      %v4840 = vpop.f32.mrb[0].mxu0
      %v4841 = vpop.f32.mrb[0].mxu0
      %v4842 = vadd.f32 0.0, %v4841
      %v4843 = vpop.f32.mrb[0].mxu0
      %4844 = vmatprep.mubr.bf16.mxu0 0
      %4845 = vmatmul.mubr.bf16.gmra.mrb[0].mxu0 %v4609
      %v4846 = vpop.f32.mrb[0].mxu0
      %v4847 = vadd.f32 0.0, %v4846
      %v4848 = vpop.f32.mrb[0].mxu0
      %v4849 = vpop.f32.mrb[0].mxu0
      %v4850 = vadd.f32 0.0, %v4849
      %v4851 = vpop.f32.mrb[0].mxu0
      %4852 = vdwg.mxu0
      %v4853 = vadd.f32 %v4516, %v4711
      %v4854 = vadd.f32 %v4517, %v4714
      %v4855 = vadd.f32 %v4518, %v4719
      %v4856 = vadd.f32 %v4519, %v4722
      %v4857 = vadd.f32 %v4520, %v4727
      %v4858 = vadd.f32 %v4521, %v4730
      %v4859 = vadd.f32 %v4522, %v4735
      %v4860 = vadd.f32 %v4523, %v4738
      %v4861 = vadd.f32 %v4524, %v4743
      %v4862 = vadd.f32 %v4525, %v4746
      %v4863 = vadd.f32 %v4526, %v4751
      %v4864 = vadd.f32 %v4527, %v4754
      %v4865 = vadd.f32 %v4528, %v4759
      %v4866 = vadd.f32 %v4529, %v4762
      %v4867 = vadd.f32 %v4530, %v4767
      %v4868 = vadd.f32 %v4531, %v4770
      %v4869 = vadd.f32 %v4532, %v4775
      %v4870 = vadd.f32 %v4533, %v4778
      %v4871 = vadd.f32 %v4534, %v4783
      %v4872 = vadd.f32 %v4535, %v4786
      %v4873 = vadd.f32 %v4536, %v4791
      %v4874 = vadd.f32 %v4537, %v4794
      %v4875 = vadd.f32 %v4538, %v4799
      %v4876 = vadd.f32 %v4539, %v4802
      %v4877 = vadd.f32 %v4540, %v4807
      %v4878 = vadd.f32 %v4541, %v4810
      %v4879 = vadd.f32 %v4542, %v4815
      %v4880 = vadd.f32 %v4543, %v4818
      %v4881 = vadd.f32 %v4544, %v4823
      %v4882 = vadd.f32 %v4545, %v4826
      %v4883 = vadd.f32 %v4546, %v4831
      %v4884 = vadd.f32 %v4547, %v4834
      %v4885 = vadd.f32 %v4548, %v4839
      %v4886 = vadd.f32 %v4549, %v4842
      %v4887 = vadd.f32 %v4550, %v4847
      %v4888 = vadd.f32 %v4551, %v4850
      %v4889 = vsel %vm1242, %v4853, 0.0
      %v4890 = vsel %vm1243, %v4854, 0.0
      %v4891 = vsel %vm1244, %v4855, 0.0
      %v4892 = vsel %vm1245, %v4856, 0.0
      %v4893 = vsel %vm1246, %v4857, 0.0
      %v4894 = vsel %vm1247, %v4858, 0.0
      %v4895 = vsel %vm1248, %v4859, 0.0
      %v4896 = vsel %vm1249, %v4860, 0.0
      %v4897 = vsel %vm1250, %v4861, 0.0
      %v4898 = vsel %vm1251, %v4862, 0.0
      %v4899 = vsel %vm1252, %v4863, 0.0
      %v4900 = vsel %vm1253, %v4864, 0.0
      %v4901 = vsel %vm1254, %v4865, 0.0
      %v4902 = vsel %vm1255, %v4866, 0.0
      %v4903 = vsel %vm1256, %v4867, 0.0
      %v4904 = vsel %vm1257, %v4868, 0.0
      %v4905 = vsel %vm1258, %v4869, 0.0
      %v4906 = vsel %vm1259, %v4870, 0.0
      %v4907 = vsel %vm1260, %v4871, 0.0
      %v4908 = vsel %vm1261, %v4872, 0.0
      %v4909 = vsel %vm1262, %v4873, 0.0
      %v4910 = vsel %vm1263, %v4874, 0.0
      %v4911 = vsel %vm1264, %v4875, 0.0
      %v4912 = vsel %vm1265, %v4876, 0.0
      %v4913 = vsel %vm1266, %v4877, 0.0
      %v4914 = vsel %vm1267, %v4878, 0.0
      %v4915 = vsel %vm1268, %v4879, 0.0
      %v4916 = vsel %vm1269, %v4880, 0.0
      %v4917 = vsel %vm1270, %v4881, 0.0
      %v4918 = vsel %vm1271, %v4882, 0.0
      %v4919 = vsel %vm1272, %v4883, 0.0
      %v4920 = vsel %vm1273, %v4884, 0.0
      %v4921 = vsel %vm1274, %v4885, 0.0
      %v4922 = vsel %vm1275, %v4886, 0.0
      %v4923 = vsel %vm1276, %v4887, 0.0
      %v4924 = vsel %vm1277, %v4888, 0.0
      %v4925 = vadd.f32 %v4889, %v4890
      %v4926 = vadd.f32 %v4925, %v4891
      %v4927 = vadd.f32 %v4926, %v4892
      %v4928 = vadd.f32 %v4927, %v4893
      %v4929 = vadd.f32 %v4928, %v4894
      %v4930 = vadd.f32 %v4929, %v4895
      %v4931 = vadd.f32 %v4930, %v4896
      %v4932 = vadd.f32 %v4931, %v4897
      %v4933 = vadd.f32 %v4932, %v4898
      %v4934 = vadd.f32 %v4933, %v4899
      %v4935 = vadd.f32 %v4934, %v4900
      %v4936 = vadd.f32 %v4935, %v4901
      %v4937 = vadd.f32 %v4936, %v4902
      %v4938 = vadd.f32 %v4937, %v4903
      %v4939 = vadd.f32 %v4938, %v4904
      %v4940 = vadd.f32 %v4939, %v4905
      %v4941 = vadd.f32 %v4940, %v4906
      %v4942 = vadd.f32 %v4941, %v4907
      %v4943 = vadd.f32 %v4942, %v4908
      %v4944 = vadd.f32 %v4943, %v4909
      %v4945 = vadd.f32 %v4944, %v4910
      %v4946 = vadd.f32 %v4945, %v4911
      %v4947 = vadd.f32 %v4946, %v4912
      %v4948 = vadd.f32 %v4947, %v4913
      %v4949 = vadd.f32 %v4948, %v4914
      %v4950 = vadd.f32 %v4949, %v4915
      %v4951 = vadd.f32 %v4950, %v4916
      %v4952 = vadd.f32 %v4951, %v4917
      %v4953 = vadd.f32 %v4952, %v4918
      %v4954 = vadd.f32 %v4953, %v4919
      %v4955 = vadd.f32 %v4954, %v4920
      %v4956 = vadd.f32 %v4955, %v4921
      %v4957 = vadd.f32 %v4956, %v4922
      %v4958 = vadd.f32 %v4957, %v4923
      %v4959 = vadd.f32 %v4958, %v4924
      %v4960 = vrot.slane %v4959, 4
      %v4961 = vadd.f32 %v4959, %v4960
      %v4962 = vrot.slane %v4961, 2
      %v4963 = vadd.f32 %v4961, %v4962
      %v4964 = vrot.slane %v4963, 1
      %v4965 = vadd.f32 %v4963, %v4964
      %v4966 = vmul.f32 %v4889, %v4889
      %v4967 = vmul.f32 %v4890, %v4890
      %v4968 = vmul.f32 %v4891, %v4891
      %v4969 = vmul.f32 %v4892, %v4892
      %v4970 = vmul.f32 %v4893, %v4893
      %v4971 = vmul.f32 %v4894, %v4894
      %v4972 = vmul.f32 %v4895, %v4895
      %v4973 = vmul.f32 %v4896, %v4896
      %v4974 = vmul.f32 %v4897, %v4897
      %v4975 = vmul.f32 %v4898, %v4898
      %v4976 = vmul.f32 %v4899, %v4899
      %v4977 = vmul.f32 %v4900, %v4900
      %v4978 = vmul.f32 %v4901, %v4901
      %v4979 = vmul.f32 %v4902, %v4902
      %v4980 = vmul.f32 %v4903, %v4903
      %v4981 = vmul.f32 %v4904, %v4904
      %v4982 = vmul.f32 %v4905, %v4905
      %v4983 = vmul.f32 %v4906, %v4906
      %v4984 = vmul.f32 %v4907, %v4907
      %v4985 = vmul.f32 %v4908, %v4908
      %v4986 = vmul.f32 %v4909, %v4909
      %v4987 = vmul.f32 %v4910, %v4910
      %v4988 = vmul.f32 %v4911, %v4911
      %v4989 = vmul.f32 %v4912, %v4912
      %v4990 = vmul.f32 %v4913, %v4913
      %v4991 = vmul.f32 %v4914, %v4914
      %v4992 = vmul.f32 %v4915, %v4915
      %v4993 = vmul.f32 %v4916, %v4916
      %v4994 = vmul.f32 %v4917, %v4917
      %v4995 = vmul.f32 %v4918, %v4918
      %v4996 = vmul.f32 %v4919, %v4919
      %v4997 = vmul.f32 %v4920, %v4920
      %v4998 = vmul.f32 %v4921, %v4921
      %v4999 = vmul.f32 %v4922, %v4922
      %v5000 = vmul.f32 %v4923, %v4923
      %v5001 = vmul.f32 %v4924, %v4924
      %v5002 = vadd.f32 %v4966, %v4967
      %v5003 = vadd.f32 %v5002, %v4968
      %v5004 = vadd.f32 %v5003, %v4969
      %v5005 = vadd.f32 %v5004, %v4970
      %v5006 = vadd.f32 %v5005, %v4971
      %v5007 = vadd.f32 %v5006, %v4972
      %v5008 = vadd.f32 %v5007, %v4973
      %v5009 = vadd.f32 %v5008, %v4974
      %v5010 = vadd.f32 %v5009, %v4975
      %v5011 = vadd.f32 %v5010, %v4976
      %v5012 = vadd.f32 %v5011, %v4977
      %v5013 = vadd.f32 %v5012, %v4978
      %v5014 = vadd.f32 %v5013, %v4979
      %v5015 = vadd.f32 %v5014, %v4980
      %v5016 = vadd.f32 %v5015, %v4981
      %v5017 = vadd.f32 %v5016, %v4982
      %v5018 = vadd.f32 %v5017, %v4983
      %v5019 = vadd.f32 %v5018, %v4984
      %v5020 = vadd.f32 %v5019, %v4985
      %v5021 = vadd.f32 %v5020, %v4986
      %v5022 = vadd.f32 %v5021, %v4987
      %v5023 = vadd.f32 %v5022, %v4988
      %v5024 = vadd.f32 %v5023, %v4989
      %v5025 = vadd.f32 %v5024, %v4990
      %v5026 = vadd.f32 %v5025, %v4991
      %v5027 = vadd.f32 %v5026, %v4992
      %v5028 = vadd.f32 %v5027, %v4993
      %v5029 = vadd.f32 %v5028, %v4994
      %v5030 = vadd.f32 %v5029, %v4995
      %v5031 = vadd.f32 %v5030, %v4996
      %v5032 = vadd.f32 %v5031, %v4997
      %v5033 = vadd.f32 %v5032, %v4998
      %v5034 = vadd.f32 %v5033, %v4999
      %v5035 = vadd.f32 %v5034, %v5000
      %v5036 = vadd.f32 %v5035, %v5001
      %v5037 = vrot.slane %v5036, 4
      %v5038 = vadd.f32 %v5036, %v5037
      %v5039 = vrot.slane %v5038, 2
      %v5040 = vadd.f32 %v5038, %v5039
      %v5041 = vrot.slane %v5040, 1
      %v5042 = vadd.f32 %v5040, %v5041
      %v5043 = vmul.f32 %v4965, 0.00390625
      %v5044 = vmul.f32 %v5042, 0.00390625
      %v5045 = vmul.f32 %v5043, %v5043
      %v5046 = vsub.f32 %v5044, %v5045
      %v5047 = vmax.f32 %v5046, 0.0
      %v5048 = vadd.f32 %v5047, 1e-05
      %v5049 = vrsqrt.pop %v5048
      %v5050 = vsub.f32 %v4853, %v5043
      %v5051 = vsub.f32 %v4854, %v5043
      %v5052 = vsub.f32 %v4855, %v5043
      %v5053 = vsub.f32 %v4856, %v5043
      %v5054 = vsub.f32 %v4857, %v5043
      %v5055 = vsub.f32 %v4858, %v5043
      %v5056 = vsub.f32 %v4859, %v5043
      %v5057 = vsub.f32 %v4860, %v5043
      %v5058 = vsub.f32 %v4861, %v5043
      %v5059 = vsub.f32 %v4862, %v5043
      %v5060 = vsub.f32 %v4863, %v5043
      %v5061 = vsub.f32 %v4864, %v5043
      %v5062 = vsub.f32 %v4865, %v5043
      %v5063 = vsub.f32 %v4866, %v5043
      %v5064 = vsub.f32 %v4867, %v5043
      %v5065 = vsub.f32 %v4868, %v5043
      %v5066 = vsub.f32 %v4869, %v5043
      %v5067 = vsub.f32 %v4870, %v5043
      %v5068 = vsub.f32 %v4871, %v5043
      %v5069 = vsub.f32 %v4872, %v5043
      %v5070 = vsub.f32 %v4873, %v5043
      %v5071 = vsub.f32 %v4874, %v5043
      %v5072 = vsub.f32 %v4875, %v5043
      %v5073 = vsub.f32 %v4876, %v5043
      %v5074 = vsub.f32 %v4877, %v5043
      %v5075 = vsub.f32 %v4878, %v5043
      %v5076 = vsub.f32 %v4879, %v5043
      %v5077 = vsub.f32 %v4880, %v5043
      %v5078 = vsub.f32 %v4881, %v5043
      %v5079 = vsub.f32 %v4882, %v5043
      %v5080 = vsub.f32 %v4883, %v5043
      %v5081 = vsub.f32 %v4884, %v5043
      %v5082 = vsub.f32 %v4885, %v5043
      %v5083 = vsub.f32 %v4886, %v5043
      %v5084 = vsub.f32 %v4887, %v5043
      %v5085 = vsub.f32 %v4888, %v5043
      %v5086 = vmul.f32 %v5050, %v5049
      %v5087 = vmul.f32 %v5051, %v5049
      %v5088 = vmul.f32 %v5052, %v5049
      %v5089 = vmul.f32 %v5053, %v5049
      %v5090 = vmul.f32 %v5054, %v5049
      %v5091 = vmul.f32 %v5055, %v5049
      %v5092 = vmul.f32 %v5056, %v5049
      %v5093 = vmul.f32 %v5057, %v5049
      %v5094 = vmul.f32 %v5058, %v5049
      %v5095 = vmul.f32 %v5059, %v5049
      %v5096 = vmul.f32 %v5060, %v5049
      %v5097 = vmul.f32 %v5061, %v5049
      %v5098 = vmul.f32 %v5062, %v5049
      %v5099 = vmul.f32 %v5063, %v5049
      %v5100 = vmul.f32 %v5064, %v5049
      %v5101 = vmul.f32 %v5065, %v5049
      %v5102 = vmul.f32 %v5066, %v5049
      %v5103 = vmul.f32 %v5067, %v5049
      %v5104 = vmul.f32 %v5068, %v5049
      %v5105 = vmul.f32 %v5069, %v5049
      %v5106 = vmul.f32 %v5070, %v5049
      %v5107 = vmul.f32 %v5071, %v5049
      %v5108 = vmul.f32 %v5072, %v5049
      %v5109 = vmul.f32 %v5073, %v5049
      %v5110 = vmul.f32 %v5074, %v5049
      %v5111 = vmul.f32 %v5075, %v5049
      %v5112 = vmul.f32 %v5076, %v5049
      %v5113 = vmul.f32 %v5077, %v5049
      %v5114 = vmul.f32 %v5078, %v5049
      %v5115 = vmul.f32 %v5079, %v5049
      %v5116 = vmul.f32 %v5080, %v5049
      %v5117 = vmul.f32 %v5081, %v5049
      %v5118 = vmul.f32 %v5082, %v5049
      %v5119 = vmul.f32 %v5083, %v5049
      %v5120 = vmul.f32 %v5084, %v5049
      %v5121 = vmul.f32 %v5085, %v5049
      %v5122 = vmax.f32 %v5086, 0.0
      %v5123 = vmax.f32 %v5087, 0.0
      %v5124 = vmax.f32 %v5088, 0.0
      %v5125 = vmax.f32 %v5089, 0.0
      %v5126 = vmax.f32 %v5090, 0.0
      %v5127 = vmax.f32 %v5091, 0.0
      %v5128 = vmax.f32 %v5092, 0.0
      %v5129 = vmax.f32 %v5093, 0.0
      %v5130 = vmax.f32 %v5094, 0.0
      %v5131 = vmax.f32 %v5095, 0.0
      %v5132 = vmax.f32 %v5096, 0.0
      %v5133 = vmax.f32 %v5097, 0.0
      %v5134 = vmax.f32 %v5098, 0.0
      %v5135 = vmax.f32 %v5099, 0.0
      %v5136 = vmax.f32 %v5100, 0.0
      %v5137 = vmax.f32 %v5101, 0.0
      %v5138 = vmax.f32 %v5102, 0.0
      %v5139 = vmax.f32 %v5103, 0.0
      %v5140 = vmax.f32 %v5104, 0.0
      %v5141 = vmax.f32 %v5105, 0.0
      %v5142 = vmax.f32 %v5106, 0.0
      %v5143 = vmax.f32 %v5107, 0.0
      %v5144 = vmax.f32 %v5108, 0.0
      %v5145 = vmax.f32 %v5109, 0.0
      %v5146 = vmax.f32 %v5110, 0.0
      %v5147 = vmax.f32 %v5111, 0.0
      %v5148 = vmax.f32 %v5112, 0.0
      %v5149 = vmax.f32 %v5113, 0.0
      %v5150 = vmax.f32 %v5114, 0.0
      %v5151 = vmax.f32 %v5115, 0.0
      %v5152 = vmax.f32 %v5116, 0.0
      %v5153 = vmax.f32 %v5117, 0.0
      %v5154 = vmax.f32 %v5118, 0.0
      %v5155 = vmax.f32 %v5119, 0.0
      %v5156 = vmax.f32 %v5120, 0.0
      %v5157 = vmax.f32 %v5121, 0.0
      %v5158 = vsel %vm1242, %v5122, 0.0
      %v5159 = vsel %vm1243, %v5123, 0.0
      %v5160 = vsel %vm1244, %v5124, 0.0
      %v5161 = vsel %vm1245, %v5125, 0.0
      %v5162 = vsel %vm1246, %v5126, 0.0
      %v5163 = vsel %vm1247, %v5127, 0.0
      %v5164 = vsel %vm1248, %v5128, 0.0
      %v5165 = vsel %vm1249, %v5129, 0.0
      %v5166 = vsel %vm1250, %v5130, 0.0
      %v5167 = vsel %vm1251, %v5131, 0.0
      %v5168 = vsel %vm1252, %v5132, 0.0
      %v5169 = vsel %vm1253, %v5133, 0.0
      %v5170 = vsel %vm1254, %v5134, 0.0
      %v5171 = vsel %vm1255, %v5135, 0.0
      %v5172 = vsel %vm1256, %v5136, 0.0
      %v5173 = vsel %vm1257, %v5137, 0.0
      %v5174 = vsel %vm1258, %v5138, 0.0
      %v5175 = vsel %vm1259, %v5139, 0.0
      %v5176 = vsel %vm1260, %v5140, 0.0
      %v5177 = vsel %vm1261, %v5141, 0.0
      %v5178 = vsel %vm1262, %v5142, 0.0
      %v5179 = vsel %vm1263, %v5143, 0.0
      %v5180 = vsel %vm1264, %v5144, 0.0
      %v5181 = vsel %vm1265, %v5145, 0.0
      %v5182 = vsel %vm1266, %v5146, 0.0
      %v5183 = vsel %vm1267, %v5147, 0.0
      %v5184 = vsel %vm1268, %v5148, 0.0
      %v5185 = vsel %vm1269, %v5149, 0.0
      %v5186 = vsel %vm1270, %v5150, 0.0
      %v5187 = vsel %vm1271, %v5151, 0.0
      %v5188 = vsel %vm1272, %v5152, 0.0
      %v5189 = vsel %vm1273, %v5153, 0.0
      %v5190 = vsel %vm1274, %v5154, 0.0
      %v5191 = vsel %vm1275, %v5155, 0.0
      %v5192 = vsel %vm1276, %v5156, 0.0
      %v5193 = vsel %vm1277, %v5157, 0.0
      %v5194 = vpack.c.bf16 %v5159, %v5158
      %v5195 = vpack.c.bf16 %v5161, %v5160
      %v5196 = vpack.c.bf16 %v5163, %v5162
      %v5197 = vpack.c.bf16 %v5165, %v5164
      %v5198 = vpack.c.bf16 %v5167, %v5166
      %v5199 = vpack.c.bf16 %v5169, %v5168
      %v5200 = vpack.c.bf16 %v5171, %v5170
      %v5201 = vpack.c.bf16 %v5173, %v5172
      %v5202 = vpack.c.bf16 %v5175, %v5174
      %v5203 = vpack.c.bf16 %v5177, %v5176
      %v5204 = vpack.c.bf16 %v5179, %v5178
      %v5205 = vpack.c.bf16 %v5181, %v5180
      %v5206 = vpack.c.bf16 %v5183, %v5182
      %v5207 = vpack.c.bf16 %v5185, %v5184
      %v5208 = vpack.c.bf16 %v5187, %v5186
      %v5209 = vpack.c.bf16 %v5189, %v5188
      %v5210 = vpack.c.bf16 %v5191, %v5190
      %v5211 = vpack.c.bf16 %v5193, %v5192
      %v5230 = vunpack.c.l.b16 %v5194
      %v5231 = vunpack.c.h.b16 %v5194
      %v5232 = vunpack.c.l.b16 %v5195
      %v5233 = vunpack.c.h.b16 %v5195
      %v5234 = vunpack.c.l.b16 %v5196
      %v5235 = vunpack.c.h.b16 %v5196
      %v5236 = vunpack.c.l.b16 %v5197
      %v5237 = vunpack.c.h.b16 %v5197
      %v5238 = vunpack.c.l.b16 %v5198
      %v5239 = vunpack.c.h.b16 %v5198
      %v5240 = vunpack.c.l.b16 %v5199
      %v5241 = vunpack.c.h.b16 %v5199
      %v5242 = vunpack.c.l.b16 %v5200
      %v5243 = vunpack.c.h.b16 %v5200
      %v5244 = vunpack.c.l.b16 %v5201
      %v5245 = vunpack.c.h.b16 %v5201
      %v5246 = vunpack.c.l.b16 %v5202
      %v5247 = vunpack.c.h.b16 %v5202
      %v5248 = vunpack.c.l.b16 %v5203
      %v5249 = vunpack.c.h.b16 %v5203
      %v5250 = vunpack.c.l.b16 %v5204
      %v5251 = vunpack.c.h.b16 %v5204
      %v5252 = vunpack.c.l.b16 %v5205
      %v5253 = vunpack.c.h.b16 %v5205
      %v5254 = vunpack.c.l.b16 %v5206
      %v5255 = vunpack.c.h.b16 %v5206
      %v5256 = vunpack.c.l.b16 %v5207
      %v5257 = vunpack.c.h.b16 %v5207
      %v5258 = vunpack.c.l.b16 %v5208
      %v5259 = vunpack.c.h.b16 %v5208
      %v5260 = vunpack.c.l.b16 %v5209
      %v5261 = vunpack.c.h.b16 %v5209
      %v5262 = vunpack.c.l.b16 %v5210
      %v5263 = vunpack.c.h.b16 %v5210
      %v5264 = vunpack.c.l.b16 %v5211
      %v5265 = vunpack.c.h.b16 %v5211
      %v5266 = vpack.c.b16 %v5230, %v5230
      %v5267 = vpack.c.b16 %v5231, %v5231
      %v5268 = vpack.c.b16 %v5232, %v5232
      %v5269 = vpack.c.b16 %v5233, %v5233
      %v5270 = vpack.c.b16 %v5234, %v5234
      %v5271 = vpack.c.b16 %v5235, %v5235
      %v5272 = vpack.c.b16 %v5236, %v5236
      %v5273 = vpack.c.b16 %v5237, %v5237
      %v5274 = vpack.c.b16 %v5238, %v5238
      %v5275 = vpack.c.b16 %v5239, %v5239
      %v5276 = vpack.c.b16 %v5240, %v5240
      %v5277 = vpack.c.b16 %v5241, %v5241
      %v5278 = vpack.c.b16 %v5242, %v5242
      %v5279 = vpack.c.b16 %v5243, %v5243
      %v5280 = vpack.c.b16 %v5244, %v5244
      %v5281 = vpack.c.b16 %v5245, %v5245
      %v5282 = vpack.c.b16 %v5246, %v5246
      %v5283 = vpack.c.b16 %v5247, %v5247
      %v5284 = vpack.c.b16 %v5248, %v5248
      %v5285 = vpack.c.b16 %v5249, %v5249
      %v5286 = vpack.c.b16 %v5250, %v5250
      %v5287 = vpack.c.b16 %v5251, %v5251
      %v5288 = vpack.c.b16 %v5252, %v5252
      %v5289 = vpack.c.b16 %v5253, %v5253
      %v5290 = vpack.c.b16 %v5254, %v5254
      %v5291 = vpack.c.b16 %v5255, %v5255
      %v5292 = vpack.c.b16 %v5256, %v5256
      %v5293 = vpack.c.b16 %v5257, %v5257
      %v5294 = vpack.c.b16 %v5258, %v5258
      %v5295 = vpack.c.b16 %v5259, %v5259
      %v5296 = vpack.c.b16 %v5260, %v5260
      %v5297 = vpack.c.b16 %v5261, %v5261
      %v5298 = vpack.c.b16 %v5262, %v5262
      %v5299 = vpack.c.b16 %v5263, %v5263
      %v5300 = vpack.c.b16 %v5264, %v5264
      %v5301 = vpack.c.b16 %v5265, %v5265
      %5338 = vst [vmem:[%s170] sm:$0xf] %v5266
      %5339 = vst [vmem:[%s170 + $0x4] sm:$0xf] %v5267
      %5340 = vst [vmem:[%s170 + $0x8] sm:$0xf] %v5268
      %5341 = vst [vmem:[%s170 + $0xc] sm:$0xf] %v5269
      %5342 = vst [vmem:[%s170 + $0x10] sm:$0xf] %v5270
      %5343 = vst [vmem:[%s170 + $0x14] sm:$0xf] %v5271
      %5344 = vst [vmem:[%s170 + $0x18] sm:$0xf] %v5272
      %5345 = vst [vmem:[%s170 + $0x1c] sm:$0xf] %v5273
      %5346 = vst [vmem:[%s170 + $0x20] sm:$0xf] %v5274
      %5347 = vst [vmem:[%s170 + $0x24] sm:$0xf] %v5275
      %5348 = vst [vmem:[%s170 + $0x28] sm:$0xf] %v5276
      %5349 = vst [vmem:[%s170 + $0x2c] sm:$0xf] %v5277
      %5350 = vst [vmem:[%s170 + $0x30] sm:$0xf] %v5278
      %5351 = vst [vmem:[%s170 + $0x34] sm:$0xf] %v5279
      %5352 = vst [vmem:[%s170 + $0x38] sm:$0xf] %v5280
      %5353 = vst [vmem:[%s170 + $0x3c] sm:$0xf] %v5281
      %5354 = vst [vmem:[%s170 + $0x40] sm:$0xf] %v5282
      %5355 = vst [vmem:[%s170 + $0x44] sm:$0xf] %v5283
      %5356 = vst [vmem:[%s170 + $0x48] sm:$0xf] %v5284
      %5357 = vst [vmem:[%s170 + $0x4c] sm:$0xf] %v5285
      %5358 = vst [vmem:[%s170 + $0x50] sm:$0xf] %v5286
      %5359 = vst [vmem:[%s170 + $0x54] sm:$0xf] %v5287
      %5360 = vst [vmem:[%s170 + $0x58] sm:$0xf] %v5288
      %5361 = vst [vmem:[%s170 + $0x5c] sm:$0xf] %v5289
      %5362 = vst [vmem:[%s170 + $0x60] sm:$0xf] %v5290
      %5363 = vst [vmem:[%s170 + $0x64] sm:$0xf] %v5291
      %5364 = vst [vmem:[%s170 + $0x68] sm:$0xf] %v5292
      %5365 = vst [vmem:[%s170 + $0x6c] sm:$0xf] %v5293
      %5366 = vst [vmem:[%s170 + $0x70] sm:$0xf] %v5294
      %5367 = vst [vmem:[%s170 + $0x74] sm:$0xf] %v5295
      %5368 = vst [vmem:[%s170 + $0x78] sm:$0xf] %v5296
      %5369 = vst [vmem:[%s170 + $0x7c] sm:$0xf] %v5297
      %5370 = vst [vmem:[%s170 + $0x80] sm:$0xf] %v5298
      %5371 = vst [vmem:[%s170 + $0x84] sm:$0xf] %v5299
      %5372 = vst [vmem:[%s170 + $0x88] sm:$0xf] %v5300
      %5373 = vst [vmem:[%s170 + $0x8c] sm:$0xf] %v5301
      %p5374 = scmp.lt.s32.totalorder %s14, 1
      %s5375 = scalar_select %p5374, %s14, 1
      %s5376 = smul.addr %s5375, 36
      %s5377 = smul.addr %s5376, 4
      %s5378 = scalar_lea.vmem %s3, %s5377
      // Predicated region
      $region33: #{double_conv_forward.1} parent=31 // pred_check
        %p5379 = pneg %p100
      $region34: #{double_conv_forward.1} parent=31 // pred_check_branch
        %5381 = sbr.rel (%p5379) target = $region36
      $region35: #{double_conv_forward.1} parent=31 // pred_region
        _
      $region36: #{double_conv_forward.1} parent=31 // pred_fallthru
        _
    $region32: #{double_conv_forward.1} parent=5 // pred_fallthru
      _
    %p5382 = scmp.le.s32.totalorder 2, %s9
    // Predicated region
    $region37: #{double_conv_forward.1} parent=5 // pred_check
      %p5383 = pneg %p5382
    $region38: #{double_conv_forward.1} parent=5 // pred_check_branch
      %5385 = sbr.rel (%p5383) target = $region40
    $region39: #{double_conv_forward.1} parent=5 // pred_region
      %s5386 = ssub.s32 %s9, 2
      // Predicated region
      $region41: #{double_conv_forward.1} parent=39 // pred_check
        %p5387 = pneg %p106
      $region42: #{double_conv_forward.1} parent=39 // pred_check_branch
        %5389 = sbr.rel (%p5387) target = $region44
      $region43: #{double_conv_forward.1} parent=39 // pred_region
        %p5390 = scmp.lt.s32.totalorder %s15, 1
        %s5391 = scalar_select %p5390, %s15, 1
        %s5392 = smul.addr %s5391, 36
        %s5393 = smul.addr %s5392, 4
        %s5394 = scalar_lea.vmem %s3, %s5393
      $region44: #{double_conv_forward.1} parent=39 // pred_fallthru
        _
    $region40: #{double_conv_forward.1} parent=5 // pred_fallthru
      _
  $region6: #{double_conv_forward.1} parent=0 // loop_footer
    %s13 = sadd.s32 1, %s9
  $region7: #{double_conv_forward.1} parent=0 // loop_footer_branch
    %8 = sbr.rel target = $region3
  $region8: #{double_conv_forward.1} parent=0 // loop_exit
    _

</llo_original>
